<compile_context>
chip_gen: v7x
topology: tpu7x:2x2x1
jax: 0.10.0
libtpu: 0.0.40
codegen_flags: <defaults>
</compile_context>

<pallas_src>
import jax
import jax.numpy as jnp
from jax.experimental import pallas as pl
from jax.experimental.pallas import tpu as pltpu

ALPHA = 0.2                        # LeakyReLU negative slope
BN_EPS = 1e-5                      # PyTorch BatchNorm2d default eps
LANE = 128
ROW_ALIGN = 16                     # bf16 packs 2 rows/sublane -> dense vregs


def _round_up(x, m):
    return (x + m - 1) // m * m


def _vmem_budgets():
    """Chip-aware VMEM budget: ~3/4 of physical VMEM (<=100 MiB), with an
    8 MiB margin for the tile working set.  Falls back to a v7x-safe 64 MiB
    assumption if the hardware query is unavailable."""
    phys = 64 * 1024 * 1024
    try:
        info = pltpu.get_tpu_info()
        phys = int(getattr(info, "vmem_capacity_bytes", phys)) or phys
    except Exception:
        pass
    vmem_limit = min(phys * 3 // 4, 100 * 1024 * 1024)
    tile_budget = max(vmem_limit - (8 << 20), 16 << 20)
    return vmem_limit, tile_budget


VMEM_LIMIT, TILE_BUDGET = _vmem_budgets()


def _pick_tm(m_rows, bytes_per_row, resident_bytes=0, cap=2048):
    """Largest multiple-of-16 row tile whose double-buffered working set (plus
    resident weight buffers) fits the tile budget; keeps >= 4 grid steps when
    the problem is big enough so both v7x TensorCores get work."""
    budget = max(TILE_BUDGET - resident_bytes, 2 << 20)
    tm = (budget // max(2 * bytes_per_row, 1)) // ROW_ALIGN * ROW_ALIGN
    tm = max(ROW_ALIGN, min(tm, cap))
    tm = min(tm, _round_up(m_rows, ROW_ALIGN))
    while tm >= 512 and pl.cdiv(m_rows, tm) < 4:
        tm = max(ROW_ALIGN, (tm // 2) // ROW_ALIGN * ROW_ALIGN)
    return tm


# ---------------- Pallas kernels ----------------

def _matmul_leaky_kernel(p_ref, w_ref, o_ref):
    # (TM, K) @ (K, C) -> f32 accumulate -> LeakyReLU -> bf16 store
    y = jnp.dot(p_ref[...], w_ref[...], preferred_element_type=jnp.float32)
    o_ref[...] = jnp.where(y > 0, y, ALPHA * y).astype(o_ref.dtype)


def _matmul_stats_kernel(p_ref, w_ref, o_ref, stats_ref):
    # Conv matmul with fused per-tile BatchNorm statistics: the f32 MXU
    # accumulator is reduced in-kernel to per-channel sum / sum-of-squares
    # (rides on otherwise idle VALU/XLU slots), so the f32 intermediate never
    # touches HBM; only the bf16 activation and a tiny stats block go out.
    y = jnp.dot(p_ref[...], w_ref[...], preferred_element_type=jnp.float32)
    o_ref[...] = y.astype(o_ref.dtype)
    stats_ref[0, 0:1, :] = jnp.sum(y, axis=0, keepdims=True)
    stats_ref[0, 1:2, :] = jnp.sum(y * y, axis=0, keepdims=True)


def _bn_leaky_kernel(y_ref, scale_ref, shift_ref, o_ref):
    # per-channel affine (folded BatchNorm) + LeakyReLU; bf16 in, f32 math
    z = y_ref[...].astype(jnp.float32) * scale_ref[...] + shift_ref[...]
    o_ref[...] = jnp.where(z > 0, z, ALPHA * z).astype(o_ref.dtype)


def _matmul_sigmoid_kernel(p_ref, w_ref, o_ref):
    y = jnp.dot(p_ref[...], w_ref[...], preferred_element_type=jnp.float32)
    o_ref[...] = jax.nn.sigmoid(y)


# ---------------- tiled pallas_call wrappers ----------------

def _tiled_matmul(kernel, patches, w_mat, out_dtype, with_stats=False):
    """(M, K) @ (K, C) tiled over M; the weight is a constant-index resident
    block.  Optionally emits per-tile (sum, sum-of-squares) statistics.
    Returns (row-padded output, stats-or-None, true row count M)."""
    M, K = patches.shape
    C = w_mat.shape[1]
    in_b = patches.dtype.itemsize
    out_b = jnp.dtype(out_dtype).itemsize
    per_row = K * in_b + C * out_b
    w_bytes = 2 * K * C * w_mat.dtype.itemsize   # double-buffered resident weight
    TM = _pick_tm(M, per_row, resident_bytes=w_bytes)
    M_pad = _round_up(M, TM)
    if M_pad != M:
        patches = jnp.pad(patches, ((0, M_pad - M), (0, 0)))
    n_tiles = M_pad // TM

    out_shape = [jax.ShapeDtypeStruct((M_pad, C), out_dtype)]
    out_specs = [pl.BlockSpec((TM, C), lambda i: (i, 0))]
    if with_stats:
        out_shape.append(jax.ShapeDtypeStruct((n_tiles, 2, C), jnp.float32))
        out_specs.append(pl.BlockSpec((1, 2, C), lambda i: (i, 0, 0)))

    bytes_accessed = (M_pad * K * in_b + K * C * w_mat.dtype.itemsize
                      + M_pad * C * out_b
                      + (n_tiles * 2 * C * 4 if with_stats else 0))
    res = pl.pallas_call(
        kernel,
        out_shape=tuple(out_shape),
        grid=(n_tiles,),
        in_specs=[pl.BlockSpec((TM, K), lambda i: (i, 0)),
                  pl.BlockSpec((K, C), lambda i: (0, 0))],
        out_specs=tuple(out_specs),
        compiler_params=pltpu.CompilerParams(
            dimension_semantics=("parallel",),
            vmem_limit_bytes=VMEM_LIMIT),
        cost_estimate=pl.CostEstimate(
            flops=2 * M_pad * K * C + (3 * M_pad * C if with_stats else 0),
            transcendentals=0,
            bytes_accessed=bytes_accessed),
    )(patches, w_mat)
    if with_stats:
        return res[0], res[1], M
    return res[0], None, M


def _bn_leaky(y, scale, shift):
    """Fused (y * scale + shift) -> LeakyReLU, tiled over rows; bf16 in/out."""
    M, C = y.shape
    per_row = C * y.dtype.itemsize + C * 2
    TM = _pick_tm(M, per_row, cap=4096)
    M_pad = _round_up(M, TM)
    if M_pad != M:
        y = jnp.pad(y, ((0, M_pad - M), (0, 0)))
    return pl.pallas_call(
        _bn_leaky_kernel,
        out_shape=jax.ShapeDtypeStruct((M_pad, C), jnp.bfloat16),
        grid=(M_pad // TM,),
        in_specs=[pl.BlockSpec((TM, C), lambda i: (i, 0)),
                  pl.BlockSpec((1, C), lambda i: (0, 0)),
                  pl.BlockSpec((1, C), lambda i: (0, 0))],
        out_specs=pl.BlockSpec((TM, C), lambda i: (i, 0)),
        compiler_params=pltpu.CompilerParams(
            dimension_semantics=("parallel",),
            vmem_limit_bytes=VMEM_LIMIT),
        cost_estimate=pl.CostEstimate(
            flops=4 * M_pad * C, transcendentals=0,
            bytes_accessed=M_pad * C * 4 + 2 * C * 4),
    )(y, scale, shift)


# ---------------- JAX glue ----------------

def im2col(x_nhwc, k, stride, pad, k_pad_to=None):
    """x: (N, H, W, C) -> ((N*OH*OW, k*k*C [padded to k_pad_to]), (N, OH, OW)).
    Patch column ordering is (kh, kw, Cin); the lane padding is built into the
    single concat so no second full-tensor pad copy is materialized."""
    if pad > 0:
        x_nhwc = jnp.pad(x_nhwc, ((0, 0), (pad, pad), (pad, pad), (0, 0)))
    N, H, W, C = x_nhwc.shape
    OH = (H - k) // stride + 1
    OW = (W - k) // stride + 1
    cols = []
    for i in range(k):
        for j in range(k):
            cols.append(
                x_nhwc[:,
                       i:i + (OH - 1) * stride + 1:stride,
                       j:j + (OW - 1) * stride + 1:stride,
                       :])
    kk = k * k * C
    if k_pad_to is not None and k_pad_to > kk:
        cols.append(jnp.zeros((N, OH, OW, k_pad_to - kk), x_nhwc.dtype))
        kk = k_pad_to
    patches = jnp.concatenate(cols, axis=-1)
    return patches.reshape(N * OH * OW, kk), (N, OH, OW)


def _prep_matmul_operands(x_nhwc, w_pt, k, stride, pad):
    """im2col + weight reshape, zero-padded so K and Cout are lane multiples,
    cast to bf16 for the MXU."""
    Cout, Cin = w_pt.shape[0], w_pt.shape[1]
    K = k * k * Cin
    Kp = _round_up(K, LANE)
    Cp = _round_up(Cout, LANE)
    patches, (N, OH, OW) = im2col(x_nhwc.astype(jnp.bfloat16), k, stride, pad,
                                  k_pad_to=Kp)
    # PyTorch conv weight (Cout, Cin, kh, kw) -> (kh, kw, Cin, Cout) -> (K, Cout)
    w_mat = jnp.transpose(w_pt, (2, 3, 1, 0)).reshape(K, Cout)
    w_mat = jnp.pad(w_mat, ((0, Kp - K), (0, Cp - Cout))).astype(jnp.bfloat16)
    return patches, w_mat, (N, OH, OW, Cout, Cp)


def conv_layer(x_nhwc, w_pt, k, stride, pad, kind, gamma=None, beta=None):
    """One conv (+ optional BatchNorm) (+ activation) layer."""
    patches, w_mat, (N, OH, OW, Cout, Cp) = _prep_matmul_operands(
        x_nhwc, w_pt, k, stride, pad)

    if kind == "leaky":
        y, _, M = _tiled_matmul(_matmul_leaky_kernel, patches, w_mat,
                                jnp.bfloat16)
        out = y[:M, :Cout]
    elif kind == "bn_leaky":
        # Pass 1: conv matmul with fused per-tile batch statistics from the
        # f32 accumulator; the activation intermediate is stored as bf16.
        y, stats, M = _tiled_matmul(_matmul_stats_kernel, patches, w_mat,
                                    jnp.bfloat16, with_stats=True)
        # Training-mode batch statistics over the true N*OH*OW rows (biased
        # variance, PyTorch default eps).  Padded rows/channels contribute 0
        # to both partial sums, so dividing by the true M keeps them exact.
        s = jnp.sum(stats[:, 0, :], axis=0)
        ss = jnp.sum(stats[:, 1, :], axis=0)
        mean = s / M
        var = jnp.maximum(ss / M - mean * mean, 0.0)
        g = jnp.pad(gamma.astype(jnp.float32), (0, Cp - Cout))
        b = jnp.pad(beta.astype(jnp.float32), (0, Cp - Cout))
        scale = g * jax.lax.rsqrt(var + BN_EPS)
        shift = b - mean * scale
        # Pass 2: fused normalize + LeakyReLU, tiled over rows (bf16 in/out).
        z = _bn_leaky(y, scale.reshape(1, Cp), shift.reshape(1, Cp))
        out = z[:M, :Cout]
    else:
        raise ValueError(kind)
    return out.reshape(N, OH, OW, Cout)


def head_layer(x_nhwc, w_pt):
    """Final Conv(8nf, 1, 4, 1, 0) + Sigmoid -> (N, 1). Tiny: single call."""
    patches, w_mat, (N, OH, OW, Cout, Cp) = _prep_matmul_operands(
        x_nhwc, w_pt, 4, 1, 0)
    assert OH == 1 and OW == 1 and Cout == 1
    Kp = patches.shape[1]
    vmem = pl.BlockSpec(memory_space=pltpu.MemorySpace.VMEM)
    out = pl.pallas_call(
        _matmul_sigmoid_kernel,
        out_shape=jax.ShapeDtypeStruct((N, Cp), jnp.float32),
        in_specs=[vmem, vmem],
        out_specs=vmem,
        compiler_params=pltpu.CompilerParams(vmem_limit_bytes=VMEM_LIMIT),
        cost_estimate=pl.CostEstimate(
            flops=2 * N * Kp * Cp, transcendentals=N * Cp,
            bytes_accessed=N * Kp * 2 + Kp * Cp * 2 + N * Cp * 4),
    )(patches, w_mat)
    return out[:, :1]


def discriminator_forward(x_nchw, params):
    """Discriminator(nf, nc).forward(x) — x in NCHW like PyTorch."""
    h = jnp.transpose(x_nchw, (0, 2, 3, 1)).astype(jnp.bfloat16)  # NCHW->NHWC
    # Conv(nc, nf, 4, 2, 1) + LeakyReLU
    h = conv_layer(h, params["w1"], 4, 2, 1, "leaky")
    # ConvBlock(nf, 2nf) / (2nf, 4nf) / (4nf, 8nf): Conv + BN + LeakyReLU
    h = conv_layer(h, params["w2"], 4, 2, 1, "bn_leaky", params["g2"], params["b2"])
    h = conv_layer(h, params["w3"], 4, 2, 1, "bn_leaky", params["g3"], params["b3"])
    h = conv_layer(h, params["w4"], 4, 2, 1, "bn_leaky", params["g4"], params["b4"])
    # Conv(8nf, 1, 4, 1, 0) + Sigmoid
    out = head_layer(h, params["w5"])                              # (N, 1)
    return out.reshape(-1, 1, 1, 1)                                # NCHW


def init_params(key, nf, nc):
    """Deterministic init matching init_weights: conv ~ N(0, 0.02),
    BN weight ~ N(1, 0.02), BN bias = 0."""
    ks = jax.random.split(key, 8)
    p = {}
    p["w1"] = 0.02 * jax.random.normal(ks[0], (nf, nc, 4, 4), jnp.float32)
    p["w2"] = 0.02 * jax.random.normal(ks[1], (nf * 2, nf, 4, 4), jnp.float32)
    p["g2"] = 1.0 + 0.02 * jax.random.normal(ks[2], (nf * 2,), jnp.float32)
    p["b2"] = jnp.zeros((nf * 2,), jnp.float32)
    p["w3"] = 0.02 * jax.random.normal(ks[3], (nf * 4, nf * 2, 4, 4), jnp.float32)
    p["g3"] = 1.0 + 0.02 * jax.random.normal(ks[4], (nf * 4,), jnp.float32)
    p["b3"] = jnp.zeros((nf * 4,), jnp.float32)
    p["w4"] = 0.02 * jax.random.normal(ks[5], (nf * 8, nf * 4, 4, 4), jnp.float32)
    p["g4"] = 1.0 + 0.02 * jax.random.normal(ks[6], (nf * 8,), jnp.float32)
    p["b4"] = jnp.zeros((nf * 8,), jnp.float32)
    p["w5"] = 0.02 * jax.random.normal(ks[7], (1, nf * 8, 4, 4), jnp.float32)
    return p


if __name__ == "__main__":
    key = jax.random.PRNGKey(0)
    k_x, k_p = jax.random.split(key)

    # DCGAN-style discriminator needs 64x64 spatial input (4 stride-2 convs
    # down to 4x4, then a 4x4 valid conv to 1x1).  Keep batch/channels small.
    N, nc, nf, S = 2, 3, 8, 64
    x = jax.random.normal(k_x, (N, nc, S, S), jnp.float32)  # NCHW like PyTorch
    params = init_params(k_p, nf, nc)

    fwd = jax.jit(discriminator_forward)
    out = fwd(x, params)
    jax.block_until_ready(out)
    assert out.shape == (N, 1, 1, 1)
    assert bool(jnp.all((out >= 0.0) & (out <= 1.0)))
    assert bool(jnp.all(jnp.isfinite(out)))
    print("KERNEL_OK")
</pallas_src>

<mosaic_0001>
module attributes {stable_mosaic.version = 11 : i64} {
  func.func @_matmul_leaky_kernel(%arg0: i32, %arg1: memref<512x128xbf16, #tpu.memory_space<vmem>>, %arg2: memref<128x128xbf16, #tpu.memory_space<vmem>>, %arg3: memref<512x128xbf16, #tpu.memory_space<vmem>>) attributes {dimension_semantics = [#tpu.dimension_semantics<parallel>], iteration_bounds = array<i64: 4>, scalar_prefetch = 0 : i64, scratch_operands = 0 : i64, tpu.core_type = #tpu.core_type<tc>, window_params = [{transform_indices = @transform_0, window_bounds = array<i64: 512, 128>}, {pipeline_mode = #tpu.pipeline_mode<synchronous>, transform_indices = @transform_1, window_bounds = array<i64: 128, 128>}, {transform_indices = @transform_2, window_bounds = array<i64: 512, 128>}]} {
    %c0 = arith.constant 0 : index
    %c0_0 = arith.constant 0 : index
    %0 = vector.load %arg1[%c0, %c0_0] : memref<512x128xbf16, #tpu.memory_space<vmem>>, vector<512x128xbf16>
    %c0_1 = arith.constant 0 : index
    %c0_2 = arith.constant 0 : index
    %1 = vector.load %arg2[%c0_1, %c0_2] : memref<128x128xbf16, #tpu.memory_space<vmem>>, vector<128x128xbf16>
    %cst = arith.constant dense<0.000000e+00> : vector<512x128xf32>
    %2 = tpu.matmul %0, %1, %cst {dimension_numbers = #tpu.dot_dimension_numbers<[1], [0], [0], [1], [0, 0, 1, 1], [], []>} : vector<512x128xbf16>, vector<128x128xbf16>, vector<512x128xf32> -> vector<512x128xf32>
    %cst_3 = arith.constant 0.000000e+00 : f32
    %3 = vector.broadcast %cst_3 : f32 to vector<512x128xf32>
    %4 = arith.cmpf ogt, %2, %3 : vector<512x128xf32>
    %cst_4 = arith.constant 2.000000e-01 : f32
    %5 = vector.broadcast %cst_4 : f32 to vector<512x128xf32>
    %6 = arith.mulf %5, %2 : vector<512x128xf32>
    %7 = arith.select %4, %2, %6 : vector<512x128xi1>, vector<512x128xf32>
    %8 = arith.truncf %7 : vector<512x128xf32> to vector<512x128xbf16>
    %c0_5 = arith.constant 0 : index
    %c0_6 = arith.constant 0 : index
    %9 = vector.load %arg3[%c0_5, %c0_6] : memref<512x128xbf16, #tpu.memory_space<vmem>>, vector<512x128xbf16>
    tpu.vector_store %arg3[%c0_5, %c0_6], %8 {strides = array<i32>} : memref<512x128xbf16, #tpu.memory_space<vmem>>, vector<512x128xbf16>,
    return
  }
  func.func @transform_0(%arg0: i32) -> (i32, i32) {
    %c0_i32 = arith.constant 0 : i32
    %c0_i32_0 = arith.constant 0 : i32
    return %arg0, %c0_i32 : i32, i32
  }
  func.func @transform_1(%arg0: i32) -> (i32, i32) {
    %c0_i32 = arith.constant 0 : i32
    %c0_i32_0 = arith.constant 0 : i32
    %c0_i32_1 = arith.constant 0 : i32
    return %c0_i32, %c0_i32_0 : i32, i32
  }
  func.func @transform_2(%arg0: i32) -> (i32, i32) {
    %c0_i32 = arith.constant 0 : i32
    %c0_i32_0 = arith.constant 0 : i32
    return %arg0, %c0_i32 : i32, i32
  }
}

module attributes {stable_mosaic.version = 11 : i64} {
  func.func @_matmul_stats_kernel(%arg0: i32, %arg1: memref<256x128xbf16, #tpu.memory_space<vmem>>, %arg2: memref<128x128xbf16, #tpu.memory_space<vmem>>, %arg3: memref<256x128xbf16, #tpu.memory_space<vmem>>, %arg4: memref<1x2x128xf32, #tpu.memory_space<vmem>>) attributes {dimension_semantics = [#tpu.dimension_semantics<parallel>], iteration_bounds = array<i64: 2>, scalar_prefetch = 0 : i64, scratch_operands = 0 : i64, tpu.core_type = #tpu.core_type<tc>, window_params = [{transform_indices = @transform_0, window_bounds = array<i64: 256, 128>}, {pipeline_mode = #tpu.pipeline_mode<synchronous>, transform_indices = @transform_1, window_bounds = array<i64: 128, 128>}, {transform_indices = @transform_2, window_bounds = array<i64: 256, 128>}, {transform_indices = @transform_3, window_bounds = array<i64: 1, 2, 128>}]} {
    %c0 = arith.constant 0 : index
    %c0_0 = arith.constant 0 : index
    %0 = vector.load %arg1[%c0, %c0_0] : memref<256x128xbf16, #tpu.memory_space<vmem>>, vector<256x128xbf16>
    %c0_1 = arith.constant 0 : index
    %c0_2 = arith.constant 0 : index
    %1 = vector.load %arg2[%c0_1, %c0_2] : memref<128x128xbf16, #tpu.memory_space<vmem>>, vector<128x128xbf16>
    %cst = arith.constant dense<0.000000e+00> : vector<256x128xf32>
    %2 = tpu.matmul %0, %1, %cst {dimension_numbers = #tpu.dot_dimension_numbers<[1], [0], [0], [1], [0, 0, 1, 1], [], []>} : vector<256x128xbf16>, vector<128x128xbf16>, vector<256x128xf32> -> vector<256x128xf32>
    %3 = arith.truncf %2 : vector<256x128xf32> to vector<256x128xbf16>
    %c0_3 = arith.constant 0 : index
    %c0_4 = arith.constant 0 : index
    %4 = vector.load %arg3[%c0_3, %c0_4] : memref<256x128xbf16, #tpu.memory_space<vmem>>, vector<256x128xbf16>
    tpu.vector_store %arg3[%c0_3, %c0_4], %3 {strides = array<i32>} : memref<256x128xbf16, #tpu.memory_space<vmem>>, vector<256x128xbf16>,
    %cst_5 = arith.constant dense<0.000000e+00> : vector<128xf32>
    %5 = vector.multi_reduction <add>, %2, %cst_5 [0] : vector<256x128xf32> to vector<128xf32>
    %6 = vector.shape_cast %5 : vector<128xf32> to vector<1x128xf32>
    %c0_6 = arith.constant 0 : index
    %c0_7 = arith.constant 0 : index
    %c0_8 = arith.constant 0 : index
    %7 = vector.load %arg4[%c0_6, %c0_7, %c0_8] : memref<1x2x128xf32, #tpu.memory_space<vmem>>, vector<1x1x128xf32>
    %8 = vector.shape_cast %7 : vector<1x1x128xf32> to vector<1x128xf32>
    %9 = vector.shape_cast %6 : vector<1x128xf32> to vector<1x1x128xf32>
    tpu.vector_store %arg4[%c0_6, %c0_7, %c0_8], %9 {strides = array<i32>} : memref<1x2x128xf32, #tpu.memory_space<vmem>>, vector<1x1x128xf32>,
    %10 = arith.mulf %2, %2 : vector<256x128xf32>
    %cst_9 = arith.constant dense<0.000000e+00> : vector<128xf32>
    %11 = vector.multi_reduction <add>, %10, %cst_9 [0] : vector<256x128xf32> to vector<128xf32>
    %12 = vector.shape_cast %11 : vector<128xf32> to vector<1x128xf32>
    %c0_10 = arith.constant 0 : index
    %c1 = arith.constant 1 : index
    %c0_11 = arith.constant 0 : index
    %13 = vector.load %arg4[%c0_10, %c1, %c0_11] : memref<1x2x128xf32, #tpu.memory_space<vmem>>, vector<1x1x128xf32>
    %14 = vector.shape_cast %13 : vector<1x1x128xf32> to vector<1x128xf32>
    %15 = vector.shape_cast %12 : vector<1x128xf32> to vector<1x1x128xf32>
    tpu.vector_store %arg4[%c0_10, %c1, %c0_11], %15 {strides = array<i32>} : memref<1x2x128xf32, #tpu.memory_space<vmem>>, vector<1x1x128xf32>,
    return
  }
  func.func @transform_0(%arg0: i32) -> (i32, i32) {
    %c0_i32 = arith.constant 0 : i32
    %c0_i32_0 = arith.constant 0 : i32
    return %arg0, %c0_i32 : i32, i32
  }
  func.func @transform_1(%arg0: i32) -> (i32, i32) {
    %c0_i32 = arith.constant 0 : i32
    %c0_i32_0 = arith.constant 0 : i32
    %c0_i32_1 = arith.constant 0 : i32
    return %c0_i32, %c0_i32_0 : i32, i32
  }
  func.func @transform_2(%arg0: i32) -> (i32, i32) {
    %c0_i32 = arith.constant 0 : i32
    %c0_i32_0 = arith.constant 0 : i32
    return %arg0, %c0_i32 : i32, i32
  }
  func.func @transform_3(%arg0: i32) -> (i32, i32, i32) {
    %c0_i32 = arith.constant 0 : i32
    %c0_i32_0 = arith.constant 0 : i32
    %c0_i32_1 = arith.constant 0 : i32
    return %arg0, %c0_i32, %c0_i32_0 : i32, i32, i32
  }
}

module attributes {stable_mosaic.version = 11 : i64} {
  func.func @_bn_leaky_kernel(%arg0: i32, %arg1: memref<256x128xbf16, #tpu.memory_space<vmem>>, %arg2: memref<1x128xf32, #tpu.memory_space<vmem>>, %arg3: memref<1x128xf32, #tpu.memory_space<vmem>>, %arg4: memref<256x128xbf16, #tpu.memory_space<vmem>>) attributes {dimension_semantics = [#tpu.dimension_semantics<parallel>], iteration_bounds = array<i64: 2>, scalar_prefetch = 0 : i64, scratch_operands = 0 : i64, tpu.core_type = #tpu.core_type<tc>, window_params = [{transform_indices = @transform_0, window_bounds = array<i64: 256, 128>}, {pipeline_mode = #tpu.pipeline_mode<synchronous>, transform_indices = @transform_1, window_bounds = array<i64: 1, 128>}, {pipeline_mode = #tpu.pipeline_mode<synchronous>, transform_indices = @transform_2, window_bounds = array<i64: 1, 128>}, {transform_indices = @transform_3, window_bounds = array<i64: 256, 128>}]} {
    %c0 = arith.constant 0 : index
    %c0_0 = arith.constant 0 : index
    %0 = vector.load %arg1[%c0, %c0_0] : memref<256x128xbf16, #tpu.memory_space<vmem>>, vector<256x128xbf16>
    %1 = arith.extf %0 : vector<256x128xbf16> to vector<256x128xf32>
    %c0_1 = arith.constant 0 : index
    %c0_2 = arith.constant 0 : index
    %2 = vector.load %arg2[%c0_1, %c0_2] : memref<1x128xf32, #tpu.memory_space<vmem>>, vector<1x128xf32>
    %3 = vector.broadcast %2 : vector<1x128xf32> to vector<256x128xf32>
    %4 = arith.mulf %1, %3 : vector<256x128xf32>
    %c0_3 = arith.constant 0 : index
    %c0_4 = arith.constant 0 : index
    %5 = vector.load %arg3[%c0_3, %c0_4] : memref<1x128xf32, #tpu.memory_space<vmem>>, vector<1x128xf32>
    %6 = vector.broadcast %5 : vector<1x128xf32> to vector<256x128xf32>
    %7 = arith.addf %4, %6 : vector<256x128xf32>
    %cst = arith.constant 0.000000e+00 : f32
    %8 = vector.broadcast %cst : f32 to vector<256x128xf32>
    %9 = arith.cmpf ogt, %7, %8 : vector<256x128xf32>
    %cst_5 = arith.constant 2.000000e-01 : f32
    %10 = vector.broadcast %cst_5 : f32 to vector<256x128xf32>
    %11 = arith.mulf %10, %7 : vector<256x128xf32>
    %12 = arith.select %9, %7, %11 : vector<256x128xi1>, vector<256x128xf32>
    %13 = arith.truncf %12 : vector<256x128xf32> to vector<256x128xbf16>
    %c0_6 = arith.constant 0 : index
    %c0_7 = arith.constant 0 : index
    %14 = vector.load %arg4[%c0_6, %c0_7] : memref<256x128xbf16, #tpu.memory_space<vmem>>, vector<256x128xbf16>
    tpu.vector_store %arg4[%c0_6, %c0_7], %13 {strides = array<i32>} : memref<256x128xbf16, #tpu.memory_space<vmem>>, vector<256x128xbf16>,
    return
  }
  func.func @transform_0(%arg0: i32) -> (i32, i32) {
    %c0_i32 = arith.constant 0 : i32
    %c0_i32_0 = arith.constant 0 : i32
    return %arg0, %c0_i32 : i32, i32
  }
  func.func @transform_1(%arg0: i32) -> (i32, i32) {
    %c0_i32 = arith.constant 0 : i32
    %c0_i32_0 = arith.constant 0 : i32
    %c0_i32_1 = arith.constant 0 : i32
    return %c0_i32, %c0_i32_0 : i32, i32
  }
  func.func @transform_2(%arg0: i32) -> (i32, i32) {
    %c0_i32 = arith.constant 0 : i32
    %c0_i32_0 = arith.constant 0 : i32
    %c0_i32_1 = arith.constant 0 : i32
    return %c0_i32, %c0_i32_0 : i32, i32
  }
  func.func @transform_3(%arg0: i32) -> (i32, i32) {
    %c0_i32 = arith.constant 0 : i32
    %c0_i32_0 = arith.constant 0 : i32
    return %arg0, %c0_i32 : i32, i32
  }
}

module attributes {stable_mosaic.version = 11 : i64} {
  func.func @_matmul_stats_kernel(%arg0: i32, %arg1: memref<128x256xbf16, #tpu.memory_space<vmem>>, %arg2: memref<256x128xbf16, #tpu.memory_space<vmem>>, %arg3: memref<128x128xbf16, #tpu.memory_space<vmem>>, %arg4: memref<1x2x128xf32, #tpu.memory_space<vmem>>) attributes {dimension_semantics = [#tpu.dimension_semantics<parallel>], iteration_bounds = array<i64: 1>, scalar_prefetch = 0 : i64, scratch_operands = 0 : i64, tpu.core_type = #tpu.core_type<tc>, window_params = [{transform_indices = @transform_0, window_bounds = array<i64: 128, 256>}, {pipeline_mode = #tpu.pipeline_mode<synchronous>, transform_indices = @transform_1, window_bounds = array<i64: 256, 128>}, {transform_indices = @transform_2, window_bounds = array<i64: 128, 128>}, {transform_indices = @transform_3, window_bounds = array<i64: 1, 2, 128>}]} {
    %c0 = arith.constant 0 : index
    %c0_0 = arith.constant 0 : index
    %0 = vector.load %arg1[%c0, %c0_0] : memref<128x256xbf16, #tpu.memory_space<vmem>>, vector<128x256xbf16>
    %c0_1 = arith.constant 0 : index
    %c0_2 = arith.constant 0 : index
    %1 = vector.load %arg2[%c0_1, %c0_2] : memref<256x128xbf16, #tpu.memory_space<vmem>>, vector<256x128xbf16>
    %cst = arith.constant dense<0.000000e+00> : vector<128x128xf32>
    %2 = tpu.matmul %0, %1, %cst {dimension_numbers = #tpu.dot_dimension_numbers<[1], [0], [0], [1], [0, 0, 1, 1], [], []>} : vector<128x256xbf16>, vector<256x128xbf16>, vector<128x128xf32> -> vector<128x128xf32>
    %3 = arith.truncf %2 : vector<128x128xf32> to vector<128x128xbf16>
    %c0_3 = arith.constant 0 : index
    %c0_4 = arith.constant 0 : index
    %4 = vector.load %arg3[%c0_3, %c0_4] : memref<128x128xbf16, #tpu.memory_space<vmem>>, vector<128x128xbf16>
    tpu.vector_store %arg3[%c0_3, %c0_4], %3 {strides = array<i32>} : memref<128x128xbf16, #tpu.memory_space<vmem>>, vector<128x128xbf16>,
    %cst_5 = arith.constant dense<0.000000e+00> : vector<128xf32>
    %5 = vector.multi_reduction <add>, %2, %cst_5 [0] : vector<128x128xf32> to vector<128xf32>
    %6 = vector.shape_cast %5 : vector<128xf32> to vector<1x128xf32>
    %c0_6 = arith.constant 0 : index
    %c0_7 = arith.constant 0 : index
    %c0_8 = arith.constant 0 : index
    %7 = vector.load %arg4[%c0_6, %c0_7, %c0_8] : memref<1x2x128xf32, #tpu.memory_space<vmem>>, vector<1x1x128xf32>
    %8 = vector.shape_cast %7 : vector<1x1x128xf32> to vector<1x128xf32>
    %9 = vector.shape_cast %6 : vector<1x128xf32> to vector<1x1x128xf32>
    tpu.vector_store %arg4[%c0_6, %c0_7, %c0_8], %9 {strides = array<i32>} : memref<1x2x128xf32, #tpu.memory_space<vmem>>, vector<1x1x128xf32>,
    %10 = arith.mulf %2, %2 : vector<128x128xf32>
    %cst_9 = arith.constant dense<0.000000e+00> : vector<128xf32>
    %11 = vector.multi_reduction <add>, %10, %cst_9 [0] : vector<128x128xf32> to vector<128xf32>
    %12 = vector.shape_cast %11 : vector<128xf32> to vector<1x128xf32>
    %c0_10 = arith.constant 0 : index
    %c1 = arith.constant 1 : index
    %c0_11 = arith.constant 0 : index
    %13 = vector.load %arg4[%c0_10, %c1, %c0_11] : memref<1x2x128xf32, #tpu.memory_space<vmem>>, vector<1x1x128xf32>
    %14 = vector.shape_cast %13 : vector<1x1x128xf32> to vector<1x128xf32>
    %15 = vector.shape_cast %12 : vector<1x128xf32> to vector<1x1x128xf32>
    tpu.vector_store %arg4[%c0_10, %c1, %c0_11], %15 {strides = array<i32>} : memref<1x2x128xf32, #tpu.memory_space<vmem>>, vector<1x1x128xf32>,
    return
  }
  func.func @transform_0(%arg0: i32) -> (i32, i32) {
    %c0_i32 = arith.constant 0 : i32
    %c0_i32_0 = arith.constant 0 : i32
    return %arg0, %c0_i32 : i32, i32
  }
  func.func @transform_1(%arg0: i32) -> (i32, i32) {
    %c0_i32 = arith.constant 0 : i32
    %c0_i32_0 = arith.constant 0 : i32
    %c0_i32_1 = arith.constant 0 : i32
    return %c0_i32, %c0_i32_0 : i32, i32
  }
  func.func @transform_2(%arg0: i32) -> (i32, i32) {
    %c0_i32 = arith.constant 0 : i32
    %c0_i32_0 = arith.constant 0 : i32
    return %arg0, %c0_i32 : i32, i32
  }
  func.func @transform_3(%arg0: i32) -> (i32, i32, i32) {
    %c0_i32 = arith.constant 0 : i32
    %c0_i32_0 = arith.constant 0 : i32
    %c0_i32_1 = arith.constant 0 : i32
    return %arg0, %c0_i32, %c0_i32_0 : i32, i32, i32
  }
}

module attributes {stable_mosaic.version = 11 : i64} {
  func.func @_bn_leaky_kernel(%arg0: i32, %arg1: memref<128x128xbf16, #tpu.memory_space<vmem>>, %arg2: memref<1x128xf32, #tpu.memory_space<vmem>>, %arg3: memref<1x128xf32, #tpu.memory_space<vmem>>, %arg4: memref<128x128xbf16, #tpu.memory_space<vmem>>) attributes {dimension_semantics = [#tpu.dimension_semantics<parallel>], iteration_bounds = array<i64: 1>, scalar_prefetch = 0 : i64, scratch_operands = 0 : i64, tpu.core_type = #tpu.core_type<tc>, window_params = [{transform_indices = @transform_0, window_bounds = array<i64: 128, 128>}, {pipeline_mode = #tpu.pipeline_mode<synchronous>, transform_indices = @transform_1, window_bounds = array<i64: 1, 128>}, {pipeline_mode = #tpu.pipeline_mode<synchronous>, transform_indices = @transform_2, window_bounds = array<i64: 1, 128>}, {transform_indices = @transform_3, window_bounds = array<i64: 128, 128>}]} {
    %c0 = arith.constant 0 : index
    %c0_0 = arith.constant 0 : index
    %0 = vector.load %arg1[%c0, %c0_0] : memref<128x128xbf16, #tpu.memory_space<vmem>>, vector<128x128xbf16>
    %1 = arith.extf %0 : vector<128x128xbf16> to vector<128x128xf32>
    %c0_1 = arith.constant 0 : index
    %c0_2 = arith.constant 0 : index
    %2 = vector.load %arg2[%c0_1, %c0_2] : memref<1x128xf32, #tpu.memory_space<vmem>>, vector<1x128xf32>
    %3 = vector.broadcast %2 : vector<1x128xf32> to vector<128x128xf32>
    %4 = arith.mulf %1, %3 : vector<128x128xf32>
    %c0_3 = arith.constant 0 : index
    %c0_4 = arith.constant 0 : index
    %5 = vector.load %arg3[%c0_3, %c0_4] : memref<1x128xf32, #tpu.memory_space<vmem>>, vector<1x128xf32>
    %6 = vector.broadcast %5 : vector<1x128xf32> to vector<128x128xf32>
    %7 = arith.addf %4, %6 : vector<128x128xf32>
    %cst = arith.constant 0.000000e+00 : f32
    %8 = vector.broadcast %cst : f32 to vector<128x128xf32>
    %9 = arith.cmpf ogt, %7, %8 : vector<128x128xf32>
    %cst_5 = arith.constant 2.000000e-01 : f32
    %10 = vector.broadcast %cst_5 : f32 to vector<128x128xf32>
    %11 = arith.mulf %10, %7 : vector<128x128xf32>
    %12 = arith.select %9, %7, %11 : vector<128x128xi1>, vector<128x128xf32>
    %13 = arith.truncf %12 : vector<128x128xf32> to vector<128x128xbf16>
    %c0_6 = arith.constant 0 : index
    %c0_7 = arith.constant 0 : index
    %14 = vector.load %arg4[%c0_6, %c0_7] : memref<128x128xbf16, #tpu.memory_space<vmem>>, vector<128x128xbf16>
    tpu.vector_store %arg4[%c0_6, %c0_7], %13 {strides = array<i32>} : memref<128x128xbf16, #tpu.memory_space<vmem>>, vector<128x128xbf16>,
    return
  }
  func.func @transform_0(%arg0: i32) -> (i32, i32) {
    %c0_i32 = arith.constant 0 : i32
    %c0_i32_0 = arith.constant 0 : i32
    return %arg0, %c0_i32 : i32, i32
  }
  func.func @transform_1(%arg0: i32) -> (i32, i32) {
    %c0_i32 = arith.constant 0 : i32
    %c0_i32_0 = arith.constant 0 : i32
    %c0_i32_1 = arith.constant 0 : i32
    return %c0_i32, %c0_i32_0 : i32, i32
  }
  func.func @transform_2(%arg0: i32) -> (i32, i32) {
    %c0_i32 = arith.constant 0 : i32
    %c0_i32_0 = arith.constant 0 : i32
    %c0_i32_1 = arith.constant 0 : i32
    return %c0_i32, %c0_i32_0 : i32, i32
  }
  func.func @transform_3(%arg0: i32) -> (i32, i32) {
    %c0_i32 = arith.constant 0 : i32
    %c0_i32_0 = arith.constant 0 : i32
    return %arg0, %c0_i32 : i32, i32
  }
}

module attributes {stable_mosaic.version = 11 : i64} {
  func.func @_matmul_stats_kernel(%arg0: i32, %arg1: memref<32x512xbf16, #tpu.memory_space<vmem>>, %arg2: memref<512x128xbf16, #tpu.memory_space<vmem>>, %arg3: memref<32x128xbf16, #tpu.memory_space<vmem>>, %arg4: memref<1x2x128xf32, #tpu.memory_space<vmem>>) attributes {dimension_semantics = [#tpu.dimension_semantics<parallel>], iteration_bounds = array<i64: 1>, scalar_prefetch = 0 : i64, scratch_operands = 0 : i64, tpu.core_type = #tpu.core_type<tc>, window_params = [{transform_indices = @transform_0, window_bounds = array<i64: 32, 512>}, {pipeline_mode = #tpu.pipeline_mode<synchronous>, transform_indices = @transform_1, window_bounds = array<i64: 512, 128>}, {transform_indices = @transform_2, window_bounds = array<i64: 32, 128>}, {transform_indices = @transform_3, window_bounds = array<i64: 1, 2, 128>}]} {
    %c0 = arith.constant 0 : index
    %c0_0 = arith.constant 0 : index
    %0 = vector.load %arg1[%c0, %c0_0] : memref<32x512xbf16, #tpu.memory_space<vmem>>, vector<32x512xbf16>
    %c0_1 = arith.constant 0 : index
    %c0_2 = arith.constant 0 : index
    %1 = vector.load %arg2[%c0_1, %c0_2] : memref<512x128xbf16, #tpu.memory_space<vmem>>, vector<512x128xbf16>
    %cst = arith.constant dense<0.000000e+00> : vector<32x128xf32>
    %2 = tpu.matmul %0, %1, %cst {dimension_numbers = #tpu.dot_dimension_numbers<[1], [0], [0], [1], [0, 0, 1, 1], [], []>} : vector<32x512xbf16>, vector<512x128xbf16>, vector<32x128xf32> -> vector<32x128xf32>
    %3 = arith.truncf %2 : vector<32x128xf32> to vector<32x128xbf16>
    %c0_3 = arith.constant 0 : index
    %c0_4 = arith.constant 0 : index
    %4 = vector.load %arg3[%c0_3, %c0_4] : memref<32x128xbf16, #tpu.memory_space<vmem>>, vector<32x128xbf16>
    tpu.vector_store %arg3[%c0_3, %c0_4], %3 {strides = array<i32>} : memref<32x128xbf16, #tpu.memory_space<vmem>>, vector<32x128xbf16>,
    %cst_5 = arith.constant dense<0.000000e+00> : vector<128xf32>
    %5 = vector.multi_reduction <add>, %2, %cst_5 [0] : vector<32x128xf32> to vector<128xf32>
    %6 = vector.shape_cast %5 : vector<128xf32> to vector<1x128xf32>
    %c0_6 = arith.constant 0 : index
    %c0_7 = arith.constant 0 : index
    %c0_8 = arith.constant 0 : index
    %7 = vector.load %arg4[%c0_6, %c0_7, %c0_8] : memref<1x2x128xf32, #tpu.memory_space<vmem>>, vector<1x1x128xf32>
    %8 = vector.shape_cast %7 : vector<1x1x128xf32> to vector<1x128xf32>
    %9 = vector.shape_cast %6 : vector<1x128xf32> to vector<1x1x128xf32>
    tpu.vector_store %arg4[%c0_6, %c0_7, %c0_8], %9 {strides = array<i32>} : memref<1x2x128xf32, #tpu.memory_space<vmem>>, vector<1x1x128xf32>,
    %10 = arith.mulf %2, %2 : vector<32x128xf32>
    %cst_9 = arith.constant dense<0.000000e+00> : vector<128xf32>
    %11 = vector.multi_reduction <add>, %10, %cst_9 [0] : vector<32x128xf32> to vector<128xf32>
    %12 = vector.shape_cast %11 : vector<128xf32> to vector<1x128xf32>
    %c0_10 = arith.constant 0 : index
    %c1 = arith.constant 1 : index
    %c0_11 = arith.constant 0 : index
    %13 = vector.load %arg4[%c0_10, %c1, %c0_11] : memref<1x2x128xf32, #tpu.memory_space<vmem>>, vector<1x1x128xf32>
    %14 = vector.shape_cast %13 : vector<1x1x128xf32> to vector<1x128xf32>
    %15 = vector.shape_cast %12 : vector<1x128xf32> to vector<1x1x128xf32>
    tpu.vector_store %arg4[%c0_10, %c1, %c0_11], %15 {strides = array<i32>} : memref<1x2x128xf32, #tpu.memory_space<vmem>>, vector<1x1x128xf32>,
    return
  }
  func.func @transform_0(%arg0: i32) -> (i32, i32) {
    %c0_i32 = arith.constant 0 : i32
    %c0_i32_0 = arith.constant 0 : i32
    return %arg0, %c0_i32 : i32, i32
  }
  func.func @transform_1(%arg0: i32) -> (i32, i32) {
    %c0_i32 = arith.constant 0 : i32
    %c0_i32_0 = arith.constant 0 : i32
    %c0_i32_1 = arith.constant 0 : i32
    return %c0_i32, %c0_i32_0 : i32, i32
  }
  func.func @transform_2(%arg0: i32) -> (i32, i32) {
    %c0_i32 = arith.constant 0 : i32
    %c0_i32_0 = arith.constant 0 : i32
    return %arg0, %c0_i32 : i32, i32
  }
  func.func @transform_3(%arg0: i32) -> (i32, i32, i32) {
    %c0_i32 = arith.constant 0 : i32
    %c0_i32_0 = arith.constant 0 : i32
    %c0_i32_1 = arith.constant 0 : i32
    return %arg0, %c0_i32, %c0_i32_0 : i32, i32, i32
  }
}

module attributes {stable_mosaic.version = 11 : i64} {
  func.func @_bn_leaky_kernel(%arg0: i32, %arg1: memref<32x128xbf16, #tpu.memory_space<vmem>>, %arg2: memref<1x128xf32, #tpu.memory_space<vmem>>, %arg3: memref<1x128xf32, #tpu.memory_space<vmem>>, %arg4: memref<32x128xbf16, #tpu.memory_space<vmem>>) attributes {dimension_semantics = [#tpu.dimension_semantics<parallel>], iteration_bounds = array<i64: 1>, scalar_prefetch = 0 : i64, scratch_operands = 0 : i64, tpu.core_type = #tpu.core_type<tc>, window_params = [{transform_indices = @transform_0, window_bounds = array<i64: 32, 128>}, {pipeline_mode = #tpu.pipeline_mode<synchronous>, transform_indices = @transform_1, window_bounds = array<i64: 1, 128>}, {pipeline_mode = #tpu.pipeline_mode<synchronous>, transform_indices = @transform_2, window_bounds = array<i64: 1, 128>}, {transform_indices = @transform_3, window_bounds = array<i64: 32, 128>}]} {
    %c0 = arith.constant 0 : index
    %c0_0 = arith.constant 0 : index
    %0 = vector.load %arg1[%c0, %c0_0] : memref<32x128xbf16, #tpu.memory_space<vmem>>, vector<32x128xbf16>
    %1 = arith.extf %0 : vector<32x128xbf16> to vector<32x128xf32>
    %c0_1 = arith.constant 0 : index
    %c0_2 = arith.constant 0 : index
    %2 = vector.load %arg2[%c0_1, %c0_2] : memref<1x128xf32, #tpu.memory_space<vmem>>, vector<1x128xf32>
    %3 = vector.broadcast %2 : vector<1x128xf32> to vector<32x128xf32>
    %4 = arith.mulf %1, %3 : vector<32x128xf32>
    %c0_3 = arith.constant 0 : index
    %c0_4 = arith.constant 0 : index
    %5 = vector.load %arg3[%c0_3, %c0_4] : memref<1x128xf32, #tpu.memory_space<vmem>>, vector<1x128xf32>
    %6 = vector.broadcast %5 : vector<1x128xf32> to vector<32x128xf32>
    %7 = arith.addf %4, %6 : vector<32x128xf32>
    %cst = arith.constant 0.000000e+00 : f32
    %8 = vector.broadcast %cst : f32 to vector<32x128xf32>
    %9 = arith.cmpf ogt, %7, %8 : vector<32x128xf32>
    %cst_5 = arith.constant 2.000000e-01 : f32
    %10 = vector.broadcast %cst_5 : f32 to vector<32x128xf32>
    %11 = arith.mulf %10, %7 : vector<32x128xf32>
    %12 = arith.select %9, %7, %11 : vector<32x128xi1>, vector<32x128xf32>
    %13 = arith.truncf %12 : vector<32x128xf32> to vector<32x128xbf16>
    %c0_6 = arith.constant 0 : index
    %c0_7 = arith.constant 0 : index
    %14 = vector.load %arg4[%c0_6, %c0_7] : memref<32x128xbf16, #tpu.memory_space<vmem>>, vector<32x128xbf16>
    tpu.vector_store %arg4[%c0_6, %c0_7], %13 {strides = array<i32>} : memref<32x128xbf16, #tpu.memory_space<vmem>>, vector<32x128xbf16>,
    return
  }
  func.func @transform_0(%arg0: i32) -> (i32, i32) {
    %c0_i32 = arith.constant 0 : i32
    %c0_i32_0 = arith.constant 0 : i32
    return %arg0, %c0_i32 : i32, i32
  }
  func.func @transform_1(%arg0: i32) -> (i32, i32) {
    %c0_i32 = arith.constant 0 : i32
    %c0_i32_0 = arith.constant 0 : i32
    %c0_i32_1 = arith.constant 0 : i32
    return %c0_i32, %c0_i32_0 : i32, i32
  }
  func.func @transform_2(%arg0: i32) -> (i32, i32) {
    %c0_i32 = arith.constant 0 : i32
    %c0_i32_0 = arith.constant 0 : i32
    %c0_i32_1 = arith.constant 0 : i32
    return %c0_i32, %c0_i32_0 : i32, i32
  }
  func.func @transform_3(%arg0: i32) -> (i32, i32) {
    %c0_i32 = arith.constant 0 : i32
    %c0_i32_0 = arith.constant 0 : i32
    return %arg0, %c0_i32 : i32, i32
  }
}

module attributes {stable_mosaic.version = 11 : i64} {
  func.func @_matmul_sigmoid_kernel(%arg0: memref<2x1024xbf16, #tpu.memory_space<vmem>>, %arg1: memref<1024x128xbf16, #tpu.memory_space<vmem>>, %arg2: memref<2x128xf32, #tpu.memory_space<vmem>>) attributes {dimension_semantics = [], scalar_prefetch = 0 : i64, scratch_operands = 0 : i64, tpu.core_type = #tpu.core_type<tc>} {
    %c0 = arith.constant 0 : index
    %c0_0 = arith.constant 0 : index
    %0 = vector.load %arg0[%c0, %c0_0] : memref<2x1024xbf16, #tpu.memory_space<vmem>>, vector<2x1024xbf16>
    %c0_1 = arith.constant 0 : index
    %c0_2 = arith.constant 0 : index
    %1 = vector.load %arg1[%c0_1, %c0_2] : memref<1024x128xbf16, #tpu.memory_space<vmem>>, vector<1024x128xbf16>
    %cst = arith.constant dense<0.000000e+00> : vector<2x128xf32>
    %2 = tpu.matmul %0, %1, %cst {dimension_numbers = #tpu.dot_dimension_numbers<[1], [0], [0], [1], [0, 0, 1, 1], [], []>} : vector<2x1024xbf16>, vector<1024x128xbf16>, vector<2x128xf32> -> vector<2x128xf32>
    %3 = arith.negf %2 : vector<2x128xf32>
    %4 = math.exp %3 : vector<2x128xf32>
    %cst_3 = arith.constant 1.000000e+00 : f32
    %5 = vector.broadcast %cst_3 : f32 to vector<2x128xf32>
    %6 = arith.addf %5, %4 : vector<2x128xf32>
    %7 = arith.divf %5, %6 : vector<2x128xf32>
    %c0_4 = arith.constant 0 : index
    %c0_5 = arith.constant 0 : index
    %8 = vector.load %arg2[%c0_4, %c0_5] : memref<2x128xf32, #tpu.memory_space<vmem>>, vector<2x128xf32>
    tpu.vector_store %arg2[%c0_4, %c0_5], %7 {strides = array<i32>} : memref<2x128xf32, #tpu.memory_space<vmem>>, vector<2x128xf32>,
    return
  }
}

</mosaic_0001>

<llo_original>
// kernel: discriminator_forward.8
$region0: #{discriminator_forward.8}
  #allocation0 [shape = 'u32[]', space=smem, size = 0x4, offset = 0x4, fixed_abs, tag = 'smem constant byte address 0x4 - core index']
  #allocation1 [shape = 'u32[144,128]{1,0:T(1,128)}', space=vmem, size = 0x12000, scoped, tag = 'internal scratch']
  %s0 = inlined_call_operand.vmem [shape: bf16[2048,128], index: 0, kind: input, shape index: {}]
  %s1 = inlined_call_operand.vmem [shape: bf16[128,128], index: 1, kind: input, shape index: {}]
  %s2 = inlined_call_operand.vmem [shape: bf16[2048,128], index: 2, kind: output, shape index: {}]
  %s3 = sld [smem:[#allocation0]]
  $region41: #{discriminator_forward.8} parent=0
    _
  %s5 = ssub.s32 1, %s3
  %s6 = scalar_select 0, %s5, %s3
  loop: start=0, step=1, limit=6
  $region2: #{discriminator_forward.8} parent=0 // loop_pre_header
    _
  $region3: #{discriminator_forward.8} parent=0 // loop_header
    %s8 = sphi 0, %s12
    %p9 = scmp.ge.s32.totalorder %s8, 6
    %s18 = sphi 0, %s20
    %s21 = sphi 0, %s18
    %s22 = sphi 0, %s21
    %s38 = sphi 0, %s22
    %s42 = sphi 0, %s42
    %s44 = sphi 0, %s42
    %s45 = sphi 0, %s44
    %s59 = sphi 0, %s45
    %s65 = sphi 0, %s67
    %s68 = sphi 0, %s65
    %s69 = sphi 0, %s68
    %s85 = sphi 0, %s69
  $region4: #{discriminator_forward.8} parent=0 // loop_header_branch
    %11 = sbr.rel (%p9) target = $region8
  $region5: #{discriminator_forward.8} parent=0 // loop_body
    %s13 = ssub.s32 %s8, 1
    %s14 = ssub.s32 %s8, 2
    %s15 = sadd.s32 %s8, 1
    %s16 = ssub.s32 %s8, %s15
    %p17 = scmp.eq.s32.totalorder %s16, 0
    %s19 = sadd.s32 %s18, 1
    %s20 = scalar_select %p17, %s18, %s19
    %p23 = pneg %p17
    %p24 = scmp.eq.s32.totalorder %s8, 3
    %p25 = por %p23, %p24
    %p26 = scmp.ne.s32.totalorder %s18, %s21
    %p27 = scmp.eq.s32.totalorder %s8, 0
    %p28 = por %p26, %p27
    %p29 = scmp.ne.s32.totalorder %s18, %s21
    %p30 = scmp.eq.s32.totalorder %s13, 3
    %p31 = por %p29, %p30
    %p32 = scmp.ne.s32.totalorder %s21, %s22
    %p33 = scmp.eq.s32.totalorder %s13, 0
    %p34 = por %p32, %p33
    %p35 = scmp.ne.s32.totalorder %s21, %s22
    %p36 = scmp.eq.s32.totalorder %s14, 3
    %p37 = por %p35, %p36
    %p39 = scmp.ne.s32.totalorder %s22, %s38
    %p40 = scmp.eq.s32.totalorder %s14, 0
    %p41 = por %p39, %p40
    %s43 = sadd.s32 %s42, 1
    %p46 = scmp.eq.s32.totalorder %s8, 3
    %p47 = scmp.ne.s32.totalorder %s42, %s44
    %p48 = scmp.eq.s32.totalorder %s8, 0
    %p49 = por %p47, %p48
    %p50 = scmp.ne.s32.totalorder %s42, %s44
    %p51 = scmp.eq.s32.totalorder %s13, 3
    %p52 = por %p50, %p51
    %p53 = scmp.ne.s32.totalorder %s44, %s45
    %p54 = scmp.eq.s32.totalorder %s13, 0
    %p55 = por %p53, %p54
    %p56 = scmp.ne.s32.totalorder %s44, %s45
    %p57 = scmp.eq.s32.totalorder %s14, 3
    %p58 = por %p56, %p57
    %p60 = scmp.ne.s32.totalorder %s45, %s59
    %p61 = scmp.eq.s32.totalorder %s14, 0
    %p62 = por %p60, %p61
    %s63 = ssub.s32 %s8, %s15
    %p64 = scmp.eq.s32.totalorder %s63, 0
    %s66 = sadd.s32 %s65, 1
    %s67 = scalar_select %p64, %s65, %s66
    %p70 = pneg %p64
    %p71 = scmp.eq.s32.totalorder %s8, 3
    %p72 = por %p70, %p71
    %p73 = scmp.ne.s32.totalorder %s65, %s68
    %p74 = scmp.eq.s32.totalorder %s8, 0
    %p75 = por %p73, %p74
    %p76 = scmp.ne.s32.totalorder %s65, %s68
    %p77 = scmp.eq.s32.totalorder %s13, 3
    %p78 = por %p76, %p77
    %p79 = scmp.ne.s32.totalorder %s68, %s69
    %p80 = scmp.eq.s32.totalorder %s13, 0
    %p81 = por %p79, %p80
    %p82 = scmp.ne.s32.totalorder %s68, %s69
    %p83 = scmp.eq.s32.totalorder %s14, 3
    %p84 = por %p82, %p83
    %p86 = scmp.ne.s32.totalorder %s69, %s85
    %p87 = scmp.eq.s32.totalorder %s14, 0
    %p88 = por %p86, %p87
    %p89 = scmp.le.s32.totalorder 1, %s8
    %p90 = scmp.lt.s32.totalorder %s8, 5
    %p91 = pnand %p89, %p90
    %p92 = pneg %p91
    // Predicated region
    $region9: #{discriminator_forward.8} parent=5 // pred_check
      _
    $region10: #{discriminator_forward.8} parent=5 // pred_check_branch
      %94 = sbr.rel (%p91) target = $region12
    $region11: #{discriminator_forward.8} parent=5 // pred_region
      %s95 = ssub.s32 %s8, 1
      // Predicated region
      $region13: #{discriminator_forward.8} parent=11 // pred_check
        %p96 = pneg %p55
      $region14: #{discriminator_forward.8} parent=11 // pred_check_branch
        %98 = sbr.rel (%p96) target = $region16
      $region15: #{discriminator_forward.8} parent=11 // pred_region
        _
      $region16: #{discriminator_forward.8} parent=11 // pred_fallthru
        _
    $region12: #{discriminator_forward.8} parent=5 // pred_fallthru
      _
    %p99 = scmp.lt.s32.totalorder %s8, 4
    // Predicated region
    $region17: #{discriminator_forward.8} parent=5 // pred_check
      %p100 = pneg %p99
    $region18: #{discriminator_forward.8} parent=5 // pred_check_branch
      %102 = sbr.rel (%p100) target = $region20
    $region19: #{discriminator_forward.8} parent=5 // pred_region
      // Predicated region
      $region21: #{discriminator_forward.8} parent=19 // pred_check
        %p103 = pneg %p28
      $region22: #{discriminator_forward.8} parent=19 // pred_check_branch
        %105 = sbr.rel (%p103) target = $region24
      $region23: #{discriminator_forward.8} parent=19 // pred_region
        %s106 = smul.u32 64, %s8
        %p107 = scmp.lt.s32.totalorder %s106, 255
        %s108 = scalar_select %p107, %s106, 255
        %s109 = smul.addr %s108, 4
        %s110 = scalar_lea.vmem %s0, %s109
        %s111 = smul.u32 64, %s8
      $region24: #{discriminator_forward.8} parent=19 // pred_fallthru
        _
    $region20: #{discriminator_forward.8} parent=5 // pred_fallthru
      _
    %p112 = scmp.le.s32.totalorder 1, %s8
    %p113 = scmp.lt.s32.totalorder %s8, 5
    %p114 = pnand %p112, %p113
    %p115 = pneg %p114
    // Predicated region
    $region25: #{discriminator_forward.8} parent=5 // pred_check
      _
    $region26: #{discriminator_forward.8} parent=5 // pred_check_branch
      %117 = sbr.rel (%p114) target = $region28
    $region27: #{discriminator_forward.8} parent=5 // pred_region
      %s118 = ssub.s32 %s8, 1
      %s119 = smul.u32 64, %s13
      %p120 = scmp.lt.s32.totalorder %s119, 255
      %s121 = scalar_select %p120, %s119, 255
      %s122 = smul.addr %s121, 4
      %s123 = scalar_lea.vmem %s0, %s122
      %p124 = pneg %p34
      %p125 = pneg %p31
      %p126 = pneg %p55
      %p127 = pneg %p52
      %p128 = pneg %p81
      %p129 = pneg %p78
      %s130 = smul.u32 64, %s13
      %p131 = scmp.lt.s32.totalorder %s130, 255
      %s132 = scalar_select %p131, %s130, 255
      %s133 = smul.addr %s132, 4
      %s134 = scalar_lea.vmem %s2, %s133
      %s135 = smul.u32 64, %s13
      %p136 = scmp.lt.s32.totalorder %s135, 255
      %s137 = scalar_select %p136, %s135, 255
      %s138 = smul.addr %s137, 4
      %s139 = scalar_lea.vmem %s0, %s138
      %s140 = smul.u32 64, %s13
      %s141 = smul.u32 64, %s13
      %p142 = scmp.lt.s32.totalorder %s141, 255
      %s143 = scalar_select %p142, %s141, 255
      %s144 = smul.addr %s143, 4
      %s145 = scalar_lea.vmem %s2, %s144
      %s146 = smul.u32 64, %s13
      %v148 = vld [vmem:[%s139] sm:$0xf]
      %v149 = vld [vmem:[%s139 + $0x4] sm:$0xf]
      %v150 = vld [vmem:[%s139 + $0x8] sm:$0xf]
      %v151 = vld [vmem:[%s139 + $0xc] sm:$0xf]
      %v152 = vld [vmem:[%s139 + $0x10] sm:$0xf]
      %v153 = vld [vmem:[%s139 + $0x14] sm:$0xf]
      %v154 = vld [vmem:[%s139 + $0x18] sm:$0xf]
      %v155 = vld [vmem:[%s139 + $0x1c] sm:$0xf]
      %v156 = vld [vmem:[%s139 + $0x20] sm:$0xf]
      %v157 = vld [vmem:[%s139 + $0x24] sm:$0xf]
      %v158 = vld [vmem:[%s139 + $0x28] sm:$0xf]
      %v159 = vld [vmem:[%s139 + $0x2c] sm:$0xf]
      %v160 = vld [vmem:[%s139 + $0x30] sm:$0xf]
      %v161 = vld [vmem:[%s139 + $0x34] sm:$0xf]
      %v162 = vld [vmem:[%s139 + $0x38] sm:$0xf]
      %v163 = vld [vmem:[%s139 + $0x3c] sm:$0xf]
      %v164 = vld [vmem:[%s139 + $0x40] sm:$0xf]
      %v165 = vld [vmem:[%s139 + $0x44] sm:$0xf]
      %v166 = vld [vmem:[%s139 + $0x48] sm:$0xf]
      %v167 = vld [vmem:[%s139 + $0x4c] sm:$0xf]
      %v168 = vld [vmem:[%s139 + $0x50] sm:$0xf]
      %v169 = vld [vmem:[%s139 + $0x54] sm:$0xf]
      %v170 = vld [vmem:[%s139 + $0x58] sm:$0xf]
      %v171 = vld [vmem:[%s139 + $0x5c] sm:$0xf]
      %v172 = vld [vmem:[%s139 + $0x60] sm:$0xf]
      %v173 = vld [vmem:[%s139 + $0x64] sm:$0xf]
      %v174 = vld [vmem:[%s139 + $0x68] sm:$0xf]
      %v175 = vld [vmem:[%s139 + $0x6c] sm:$0xf]
      %v176 = vld [vmem:[%s139 + $0x70] sm:$0xf]
      %v177 = vld [vmem:[%s139 + $0x74] sm:$0xf]
      %v178 = vld [vmem:[%s139 + $0x78] sm:$0xf]
      %v179 = vld [vmem:[%s139 + $0x7c] sm:$0xf]
      %v180 = vld [vmem:[%s139 + $0x80] sm:$0xf]
      %v181 = vld [vmem:[%s139 + $0x84] sm:$0xf]
      %v182 = vld [vmem:[%s139 + $0x88] sm:$0xf]
      %v183 = vld [vmem:[%s139 + $0x8c] sm:$0xf]
      %v184 = vld [vmem:[%s139 + $0x90] sm:$0xf]
      %v185 = vld [vmem:[%s139 + $0x94] sm:$0xf]
      %v186 = vld [vmem:[%s139 + $0x98] sm:$0xf]
      %v187 = vld [vmem:[%s139 + $0x9c] sm:$0xf]
      %v188 = vld [vmem:[%s139 + $0xa0] sm:$0xf]
      %v189 = vld [vmem:[%s139 + $0xa4] sm:$0xf]
      %v190 = vld [vmem:[%s139 + $0xa8] sm:$0xf]
      %v191 = vld [vmem:[%s139 + $0xac] sm:$0xf]
      %v192 = vld [vmem:[%s139 + $0xb0] sm:$0xf]
      %v193 = vld [vmem:[%s139 + $0xb4] sm:$0xf]
      %v194 = vld [vmem:[%s139 + $0xb8] sm:$0xf]
      %v195 = vld [vmem:[%s139 + $0xbc] sm:$0xf]
      %v196 = vld [vmem:[%s139 + $0xc0] sm:$0xf]
      %v197 = vld [vmem:[%s139 + $0xc4] sm:$0xf]
      %v198 = vld [vmem:[%s139 + $0xc8] sm:$0xf]
      %v199 = vld [vmem:[%s139 + $0xcc] sm:$0xf]
      %v200 = vld [vmem:[%s139 + $0xd0] sm:$0xf]
      %v201 = vld [vmem:[%s139 + $0xd4] sm:$0xf]
      %v202 = vld [vmem:[%s139 + $0xd8] sm:$0xf]
      %v203 = vld [vmem:[%s139 + $0xdc] sm:$0xf]
      %v204 = vld [vmem:[%s139 + $0xe0] sm:$0xf]
      %v205 = vld [vmem:[%s139 + $0xe4] sm:$0xf]
      %v206 = vld [vmem:[%s139 + $0xe8] sm:$0xf]
      %v207 = vld [vmem:[%s139 + $0xec] sm:$0xf]
      %v208 = vld [vmem:[%s139 + $0xf0] sm:$0xf]
      %v209 = vld [vmem:[%s139 + $0xf4] sm:$0xf]
      %v210 = vld [vmem:[%s139 + $0xf8] sm:$0xf]
      %v211 = vld [vmem:[%s139 + $0xfc] sm:$0xf]
      %v212 = vld [vmem:[%s1] sm:$0xf]
      %v213 = vld [vmem:[%s1 + $0x4] sm:$0xf]
      %v214 = vld [vmem:[%s1 + $0x8] sm:$0xf]
      %v215 = vld [vmem:[%s1 + $0xc] sm:$0xf]
      %v216 = vld [vmem:[%s1 + $0x10] sm:$0xf]
      %v217 = vld [vmem:[%s1 + $0x14] sm:$0xf]
      %v218 = vld [vmem:[%s1 + $0x18] sm:$0xf]
      %v219 = vld [vmem:[%s1 + $0x1c] sm:$0xf]
      %v220 = vld [vmem:[%s1 + $0x20] sm:$0xf]
      %v221 = vld [vmem:[%s1 + $0x24] sm:$0xf]
      %v222 = vld [vmem:[%s1 + $0x28] sm:$0xf]
      %v223 = vld [vmem:[%s1 + $0x2c] sm:$0xf]
      %v224 = vld [vmem:[%s1 + $0x30] sm:$0xf]
      %v225 = vld [vmem:[%s1 + $0x34] sm:$0xf]
      %v226 = vld [vmem:[%s1 + $0x38] sm:$0xf]
      %v227 = vld [vmem:[%s1 + $0x3c] sm:$0xf]
      %v292 = vunpack.c.l.b16 %v148
      %v293 = vunpack.c.l.b16 %v149
      %v294 = vunpack.c.l.b16 %v150
      %v295 = vunpack.c.l.b16 %v151
      %v296 = vunpack.c.l.b16 %v152
      %v297 = vunpack.c.l.b16 %v153
      %v298 = vunpack.c.l.b16 %v154
      %v299 = vunpack.c.l.b16 %v155
      %v300 = vunpack.c.l.b16 %v156
      %v301 = vunpack.c.l.b16 %v157
      %v302 = vunpack.c.l.b16 %v158
      %v303 = vunpack.c.l.b16 %v159
      %v304 = vunpack.c.l.b16 %v160
      %v305 = vunpack.c.l.b16 %v161
      %v306 = vunpack.c.l.b16 %v162
      %v307 = vunpack.c.l.b16 %v163
      %v308 = vunpack.c.l.b16 %v164
      %v309 = vunpack.c.l.b16 %v165
      %v310 = vunpack.c.l.b16 %v166
      %v311 = vunpack.c.l.b16 %v167
      %v312 = vunpack.c.l.b16 %v168
      %v313 = vunpack.c.l.b16 %v169
      %v314 = vunpack.c.l.b16 %v170
      %v315 = vunpack.c.l.b16 %v171
      %v316 = vunpack.c.l.b16 %v172
      %v317 = vunpack.c.l.b16 %v173
      %v318 = vunpack.c.l.b16 %v174
      %v319 = vunpack.c.l.b16 %v175
      %v320 = vunpack.c.l.b16 %v176
      %v321 = vunpack.c.l.b16 %v177
      %v322 = vunpack.c.l.b16 %v178
      %v323 = vunpack.c.l.b16 %v179
      %v324 = vunpack.c.l.b16 %v180
      %v325 = vunpack.c.l.b16 %v181
      %v326 = vunpack.c.l.b16 %v182
      %v327 = vunpack.c.l.b16 %v183
      %v328 = vunpack.c.l.b16 %v184
      %v329 = vunpack.c.l.b16 %v185
      %v330 = vunpack.c.l.b16 %v186
      %v331 = vunpack.c.l.b16 %v187
      %v332 = vunpack.c.l.b16 %v188
      %v333 = vunpack.c.l.b16 %v189
      %v334 = vunpack.c.l.b16 %v190
      %v335 = vunpack.c.l.b16 %v191
      %v336 = vunpack.c.l.b16 %v192
      %v337 = vunpack.c.l.b16 %v193
      %v338 = vunpack.c.l.b16 %v194
      %v339 = vunpack.c.l.b16 %v195
      %v340 = vunpack.c.l.b16 %v196
      %v341 = vunpack.c.l.b16 %v197
      %v342 = vunpack.c.l.b16 %v198
      %v343 = vunpack.c.l.b16 %v199
      %v344 = vunpack.c.l.b16 %v200
      %v345 = vunpack.c.l.b16 %v201
      %v346 = vunpack.c.l.b16 %v202
      %v347 = vunpack.c.l.b16 %v203
      %v348 = vunpack.c.l.b16 %v204
      %v349 = vunpack.c.l.b16 %v205
      %v350 = vunpack.c.l.b16 %v206
      %v351 = vunpack.c.l.b16 %v207
      %v352 = vunpack.c.l.b16 %v208
      %v353 = vunpack.c.l.b16 %v209
      %v354 = vunpack.c.l.b16 %v210
      %v355 = vunpack.c.l.b16 %v211
      %v356 = vpack.c.b16 %v293, %v292
      %v357 = vpack.c.b16 %v295, %v294
      %v358 = vpack.c.b16 %v297, %v296
      %v359 = vpack.c.b16 %v299, %v298
      %v360 = vpack.c.b16 %v301, %v300
      %v361 = vpack.c.b16 %v303, %v302
      %v362 = vpack.c.b16 %v305, %v304
      %v363 = vpack.c.b16 %v307, %v306
      %v364 = vpack.c.b16 %v309, %v308
      %v365 = vpack.c.b16 %v311, %v310
      %v366 = vpack.c.b16 %v313, %v312
      %v367 = vpack.c.b16 %v315, %v314
      %v368 = vpack.c.b16 %v317, %v316
      %v369 = vpack.c.b16 %v319, %v318
      %v370 = vpack.c.b16 %v321, %v320
      %v371 = vpack.c.b16 %v323, %v322
      %v372 = vpack.c.b16 %v325, %v324
      %v373 = vpack.c.b16 %v327, %v326
      %v374 = vpack.c.b16 %v329, %v328
      %v375 = vpack.c.b16 %v331, %v330
      %v376 = vpack.c.b16 %v333, %v332
      %v377 = vpack.c.b16 %v335, %v334
      %v378 = vpack.c.b16 %v337, %v336
      %v379 = vpack.c.b16 %v339, %v338
      %v380 = vpack.c.b16 %v341, %v340
      %v381 = vpack.c.b16 %v343, %v342
      %v382 = vpack.c.b16 %v345, %v344
      %v383 = vpack.c.b16 %v347, %v346
      %v384 = vpack.c.b16 %v349, %v348
      %v385 = vpack.c.b16 %v351, %v350
      %v386 = vpack.c.b16 %v353, %v352
      %v387 = vpack.c.b16 %v355, %v354
      %v436 = vunpack.c.l.b16 %v212
      %v437 = vunpack.c.l.b16 %v213
      %v438 = vunpack.c.l.b16 %v214
      %v439 = vunpack.c.l.b16 %v215
      %v440 = vunpack.c.l.b16 %v216
      %v441 = vunpack.c.l.b16 %v217
      %v442 = vunpack.c.l.b16 %v218
      %v443 = vunpack.c.l.b16 %v219
      %v444 = vunpack.c.l.b16 %v220
      %v445 = vunpack.c.l.b16 %v221
      %v446 = vunpack.c.l.b16 %v222
      %v447 = vunpack.c.l.b16 %v223
      %v448 = vunpack.c.l.b16 %v224
      %v449 = vunpack.c.l.b16 %v225
      %v450 = vunpack.c.l.b16 %v226
      %v451 = vunpack.c.l.b16 %v227
      %v452 = vpack.c.b16 %v437, %v436
      %v453 = vpack.c.b16 %v439, %v438
      %v454 = vpack.c.b16 %v441, %v440
      %v455 = vpack.c.b16 %v443, %v442
      %v456 = vpack.c.b16 %v445, %v444
      %v457 = vpack.c.b16 %v447, %v446
      %v458 = vpack.c.b16 %v449, %v448
      %v459 = vpack.c.b16 %v451, %v450
      %468 = vmatprep.subr.bf16.mxu0 0
      %469 = vmatpush1.bf16.msra.mxu0 %v452
      %470 = vmatprep.subr.bf16.mxu0 0
      %471 = vmatpush1.bf16.msra.mxu0 %v453
      %472 = vmatprep.subr.bf16.mxu0 0
      %473 = vmatpush1.bf16.msra.mxu0 %v454
      %474 = vmatprep.subr.bf16.mxu0 0
      %475 = vmatpush1.bf16.msra.mxu0 %v455
      %476 = vmatprep.subr.bf16.mxu0 0
      %477 = vmatpush1.bf16.msra.mxu0 %v456
      %478 = vmatprep.subr.bf16.mxu0 0
      %479 = vmatpush1.bf16.msra.mxu0 %v457
      %480 = vmatprep.subr.bf16.mxu0 0
      %481 = vmatpush1.bf16.msra.mxu0 %v458
      %482 = vmatprep.subr.bf16.mxu0 0
      %483 = vmatpush1.bf16.msra.mxu0 %v459
      %484 = vmatprep.subr.bf16.mxu0 0
      %485 = vmatpush1.bf16.msra.mxu0 0
      %486 = vmatprep.subr.bf16.mxu0 0
      %487 = vmatpush1.bf16.msra.mxu0 0
      %488 = vmatprep.subr.bf16.mxu0 0
      %489 = vmatpush1.bf16.msra.mxu0 0
      %490 = vmatprep.subr.bf16.mxu0 0
      %491 = vmatpush1.bf16.msra.mxu0 0
      %492 = vmatprep.subr.bf16.mxu0 0
      %493 = vmatpush1.bf16.msra.mxu0 0
      %494 = vmatprep.subr.bf16.mxu0 0
      %495 = vmatpush1.bf16.msra.mxu0 0
      %496 = vmatprep.subr.bf16.mxu0 0
      %497 = vmatpush1.bf16.msra.mxu0 0
      %498 = vmatprep.subr.bf16.mxu0 0
      %499 = vmatpush1.bf16.msra.mxu0 0
      %500 = vmatprep.mubr.bf16.mxu0 0
      %501 = vmatmul.mubr.bf16.gmra.mrb[0].mxu0 %v356
      %v502 = vpop.f32.mrb[0].mxu0
      %v503 = vadd.f32 0.0, %v502
      %v504 = vpop.f32.mrb[0].mxu0
      %v505 = vpop.f32.mrb[0].mxu0
      %v506 = vadd.f32 0.0, %v505
      %v507 = vpop.f32.mrb[0].mxu0
      %508 = vmatprep.mubr.bf16.mxu0 0
      %509 = vmatmul.mubr.bf16.gmra.mrb[0].mxu0 %v357
      %v510 = vpop.f32.mrb[0].mxu0
      %v511 = vadd.f32 0.0, %v510
      %v512 = vpop.f32.mrb[0].mxu0
      %v513 = vpop.f32.mrb[0].mxu0
      %v514 = vadd.f32 0.0, %v513
      %v515 = vpop.f32.mrb[0].mxu0
      %516 = vmatprep.mubr.bf16.mxu0 0
      %517 = vmatmul.mubr.bf16.gmra.mrb[0].mxu0 %v358
      %v518 = vpop.f32.mrb[0].mxu0
      %v519 = vadd.f32 0.0, %v518
      %v520 = vpop.f32.mrb[0].mxu0
      %v521 = vpop.f32.mrb[0].mxu0
      %v522 = vadd.f32 0.0, %v521
      %v523 = vpop.f32.mrb[0].mxu0
      %524 = vmatprep.mubr.bf16.mxu0 0
      %525 = vmatmul.mubr.bf16.gmra.mrb[0].mxu0 %v359
      %v526 = vpop.f32.mrb[0].mxu0
      %v527 = vadd.f32 0.0, %v526
      %v528 = vpop.f32.mrb[0].mxu0
      %v529 = vpop.f32.mrb[0].mxu0
      %v530 = vadd.f32 0.0, %v529
      %v531 = vpop.f32.mrb[0].mxu0
      %532 = vmatprep.mubr.bf16.mxu0 0
      %533 = vmatmul.mubr.bf16.gmra.mrb[0].mxu0 %v360
      %v534 = vpop.f32.mrb[0].mxu0
      %v535 = vadd.f32 0.0, %v534
      %v536 = vpop.f32.mrb[0].mxu0
      %v537 = vpop.f32.mrb[0].mxu0
      %v538 = vadd.f32 0.0, %v537
      %v539 = vpop.f32.mrb[0].mxu0
      %540 = vmatprep.mubr.bf16.mxu0 0
      %541 = vmatmul.mubr.bf16.gmra.mrb[0].mxu0 %v361
      %v542 = vpop.f32.mrb[0].mxu0
      %v543 = vadd.f32 0.0, %v542
      %v544 = vpop.f32.mrb[0].mxu0
      %v545 = vpop.f32.mrb[0].mxu0
      %v546 = vadd.f32 0.0, %v545
      %v547 = vpop.f32.mrb[0].mxu0
      %548 = vmatprep.mubr.bf16.mxu0 0
      %549 = vmatmul.mubr.bf16.gmra.mrb[0].mxu0 %v362
      %v550 = vpop.f32.mrb[0].mxu0
      %v551 = vadd.f32 0.0, %v550
      %v552 = vpop.f32.mrb[0].mxu0
      %v553 = vpop.f32.mrb[0].mxu0
      %v554 = vadd.f32 0.0, %v553
      %v555 = vpop.f32.mrb[0].mxu0
      %556 = vmatprep.mubr.bf16.mxu0 0
      %557 = vmatmul.mubr.bf16.gmra.mrb[0].mxu0 %v363
      %v558 = vpop.f32.mrb[0].mxu0
      %v559 = vadd.f32 0.0, %v558
      %v560 = vpop.f32.mrb[0].mxu0
      %v561 = vpop.f32.mrb[0].mxu0
      %v562 = vadd.f32 0.0, %v561
      %v563 = vpop.f32.mrb[0].mxu0
      %564 = vmatprep.mubr.bf16.mxu0 0
      %565 = vmatmul.mubr.bf16.gmra.mrb[0].mxu0 %v364
      %v566 = vpop.f32.mrb[0].mxu0
      %v567 = vadd.f32 0.0, %v566
      %v568 = vpop.f32.mrb[0].mxu0
      %v569 = vpop.f32.mrb[0].mxu0
      %v570 = vadd.f32 0.0, %v569
      %v571 = vpop.f32.mrb[0].mxu0
      %572 = vmatprep.mubr.bf16.mxu0 0
      %573 = vmatmul.mubr.bf16.gmra.mrb[0].mxu0 %v365
      %v574 = vpop.f32.mrb[0].mxu0
      %v575 = vadd.f32 0.0, %v574
      %v576 = vpop.f32.mrb[0].mxu0
      %v577 = vpop.f32.mrb[0].mxu0
      %v578 = vadd.f32 0.0, %v577
      %v579 = vpop.f32.mrb[0].mxu0
      %580 = vmatprep.mubr.bf16.mxu0 0
      %581 = vmatmul.mubr.bf16.gmra.mrb[0].mxu0 %v366
      %v582 = vpop.f32.mrb[0].mxu0
      %v583 = vadd.f32 0.0, %v582
      %v584 = vpop.f32.mrb[0].mxu0
      %v585 = vpop.f32.mrb[0].mxu0
      %v586 = vadd.f32 0.0, %v585
      %v587 = vpop.f32.mrb[0].mxu0
      %588 = vmatprep.mubr.bf16.mxu0 0
      %589 = vmatmul.mubr.bf16.gmra.mrb[0].mxu0 %v367
      %v590 = vpop.f32.mrb[0].mxu0
      %v591 = vadd.f32 0.0, %v590
      %v592 = vpop.f32.mrb[0].mxu0
      %v593 = vpop.f32.mrb[0].mxu0
      %v594 = vadd.f32 0.0, %v593
      %v595 = vpop.f32.mrb[0].mxu0
      %596 = vmatprep.mubr.bf16.mxu0 0
      %597 = vmatmul.mubr.bf16.gmra.mrb[0].mxu0 %v368
      %v598 = vpop.f32.mrb[0].mxu0
      %v599 = vadd.f32 0.0, %v598
      %v600 = vpop.f32.mrb[0].mxu0
      %v601 = vpop.f32.mrb[0].mxu0
      %v602 = vadd.f32 0.0, %v601
      %v603 = vpop.f32.mrb[0].mxu0
      %604 = vmatprep.mubr.bf16.mxu0 0
      %605 = vmatmul.mubr.bf16.gmra.mrb[0].mxu0 %v369
      %v606 = vpop.f32.mrb[0].mxu0
      %v607 = vadd.f32 0.0, %v606
      %v608 = vpop.f32.mrb[0].mxu0
      %v609 = vpop.f32.mrb[0].mxu0
      %v610 = vadd.f32 0.0, %v609
      %v611 = vpop.f32.mrb[0].mxu0
      %612 = vmatprep.mubr.bf16.mxu0 0
      %613 = vmatmul.mubr.bf16.gmra.mrb[0].mxu0 %v370
      %v614 = vpop.f32.mrb[0].mxu0
      %v615 = vadd.f32 0.0, %v614
      %v616 = vpop.f32.mrb[0].mxu0
      %v617 = vpop.f32.mrb[0].mxu0
      %v618 = vadd.f32 0.0, %v617
      %v619 = vpop.f32.mrb[0].mxu0
      %620 = vmatprep.mubr.bf16.mxu0 0
      %621 = vmatmul.mubr.bf16.gmra.mrb[0].mxu0 %v371
      %v622 = vpop.f32.mrb[0].mxu0
      %v623 = vadd.f32 0.0, %v622
      %v624 = vpop.f32.mrb[0].mxu0
      %v625 = vpop.f32.mrb[0].mxu0
      %v626 = vadd.f32 0.0, %v625
      %v627 = vpop.f32.mrb[0].mxu0
      %628 = vmatprep.mubr.bf16.mxu0 0
      %629 = vmatmul.mubr.bf16.gmra.mrb[0].mxu0 %v372
      %v630 = vpop.f32.mrb[0].mxu0
      %v631 = vadd.f32 0.0, %v630
      %v632 = vpop.f32.mrb[0].mxu0
      %v633 = vpop.f32.mrb[0].mxu0
      %v634 = vadd.f32 0.0, %v633
      %v635 = vpop.f32.mrb[0].mxu0
      %636 = vmatprep.mubr.bf16.mxu0 0
      %637 = vmatmul.mubr.bf16.gmra.mrb[0].mxu0 %v373
      %v638 = vpop.f32.mrb[0].mxu0
      %v639 = vadd.f32 0.0, %v638
      %v640 = vpop.f32.mrb[0].mxu0
      %v641 = vpop.f32.mrb[0].mxu0
      %v642 = vadd.f32 0.0, %v641
      %v643 = vpop.f32.mrb[0].mxu0
      %644 = vmatprep.mubr.bf16.mxu0 0
      %645 = vmatmul.mubr.bf16.gmra.mrb[0].mxu0 %v374
      %v646 = vpop.f32.mrb[0].mxu0
      %v647 = vadd.f32 0.0, %v646
      %v648 = vpop.f32.mrb[0].mxu0
      %v649 = vpop.f32.mrb[0].mxu0
      %v650 = vadd.f32 0.0, %v649
      %v651 = vpop.f32.mrb[0].mxu0
      %652 = vmatprep.mubr.bf16.mxu0 0
      %653 = vmatmul.mubr.bf16.gmra.mrb[0].mxu0 %v375
      %v654 = vpop.f32.mrb[0].mxu0
      %v655 = vadd.f32 0.0, %v654
      %v656 = vpop.f32.mrb[0].mxu0
      %v657 = vpop.f32.mrb[0].mxu0
      %v658 = vadd.f32 0.0, %v657
      %v659 = vpop.f32.mrb[0].mxu0
      %660 = vmatprep.mubr.bf16.mxu0 0
      %661 = vmatmul.mubr.bf16.gmra.mrb[0].mxu0 %v376
      %v662 = vpop.f32.mrb[0].mxu0
      %v663 = vadd.f32 0.0, %v662
      %v664 = vpop.f32.mrb[0].mxu0
      %v665 = vpop.f32.mrb[0].mxu0
      %v666 = vadd.f32 0.0, %v665
      %v667 = vpop.f32.mrb[0].mxu0
      %668 = vmatprep.mubr.bf16.mxu0 0
      %669 = vmatmul.mubr.bf16.gmra.mrb[0].mxu0 %v377
      %v670 = vpop.f32.mrb[0].mxu0
      %v671 = vadd.f32 0.0, %v670
      %v672 = vpop.f32.mrb[0].mxu0
      %v673 = vpop.f32.mrb[0].mxu0
      %v674 = vadd.f32 0.0, %v673
      %v675 = vpop.f32.mrb[0].mxu0
      %676 = vmatprep.mubr.bf16.mxu0 0
      %677 = vmatmul.mubr.bf16.gmra.mrb[0].mxu0 %v378
      %v678 = vpop.f32.mrb[0].mxu0
      %v679 = vadd.f32 0.0, %v678
      %v680 = vpop.f32.mrb[0].mxu0
      %v681 = vpop.f32.mrb[0].mxu0
      %v682 = vadd.f32 0.0, %v681
      %v683 = vpop.f32.mrb[0].mxu0
      %684 = vmatprep.mubr.bf16.mxu0 0
      %685 = vmatmul.mubr.bf16.gmra.mrb[0].mxu0 %v379
      %v686 = vpop.f32.mrb[0].mxu0
      %v687 = vadd.f32 0.0, %v686
      %v688 = vpop.f32.mrb[0].mxu0
      %v689 = vpop.f32.mrb[0].mxu0
      %v690 = vadd.f32 0.0, %v689
      %v691 = vpop.f32.mrb[0].mxu0
      %692 = vmatprep.mubr.bf16.mxu0 0
      %693 = vmatmul.mubr.bf16.gmra.mrb[0].mxu0 %v380
      %v694 = vpop.f32.mrb[0].mxu0
      %v695 = vadd.f32 0.0, %v694
      %v696 = vpop.f32.mrb[0].mxu0
      %v697 = vpop.f32.mrb[0].mxu0
      %v698 = vadd.f32 0.0, %v697
      %v699 = vpop.f32.mrb[0].mxu0
      %700 = vmatprep.mubr.bf16.mxu0 0
      %701 = vmatmul.mubr.bf16.gmra.mrb[0].mxu0 %v381
      %v702 = vpop.f32.mrb[0].mxu0
      %v703 = vadd.f32 0.0, %v702
      %v704 = vpop.f32.mrb[0].mxu0
      %v705 = vpop.f32.mrb[0].mxu0
      %v706 = vadd.f32 0.0, %v705
      %v707 = vpop.f32.mrb[0].mxu0
      %708 = vmatprep.mubr.bf16.mxu0 0
      %709 = vmatmul.mubr.bf16.gmra.mrb[0].mxu0 %v382
      %v710 = vpop.f32.mrb[0].mxu0
      %v711 = vadd.f32 0.0, %v710
      %v712 = vpop.f32.mrb[0].mxu0
      %v713 = vpop.f32.mrb[0].mxu0
      %v714 = vadd.f32 0.0, %v713
      %v715 = vpop.f32.mrb[0].mxu0
      %716 = vmatprep.mubr.bf16.mxu0 0
      %717 = vmatmul.mubr.bf16.gmra.mrb[0].mxu0 %v383
      %v718 = vpop.f32.mrb[0].mxu0
      %v719 = vadd.f32 0.0, %v718
      %v720 = vpop.f32.mrb[0].mxu0
      %v721 = vpop.f32.mrb[0].mxu0
      %v722 = vadd.f32 0.0, %v721
      %v723 = vpop.f32.mrb[0].mxu0
      %724 = vmatprep.mubr.bf16.mxu0 0
      %725 = vmatmul.mubr.bf16.gmra.mrb[0].mxu0 %v384
      %v726 = vpop.f32.mrb[0].mxu0
      %v727 = vadd.f32 0.0, %v726
      %v728 = vpop.f32.mrb[0].mxu0
      %v729 = vpop.f32.mrb[0].mxu0
      %v730 = vadd.f32 0.0, %v729
      %v731 = vpop.f32.mrb[0].mxu0
      %732 = vmatprep.mubr.bf16.mxu0 0
      %733 = vmatmul.mubr.bf16.gmra.mrb[0].mxu0 %v385
      %v734 = vpop.f32.mrb[0].mxu0
      %v735 = vadd.f32 0.0, %v734
      %v736 = vpop.f32.mrb[0].mxu0
      %v737 = vpop.f32.mrb[0].mxu0
      %v738 = vadd.f32 0.0, %v737
      %v739 = vpop.f32.mrb[0].mxu0
      %740 = vmatprep.mubr.bf16.mxu0 0
      %741 = vmatmul.mubr.bf16.gmra.mrb[0].mxu0 %v386
      %v742 = vpop.f32.mrb[0].mxu0
      %v743 = vadd.f32 0.0, %v742
      %v744 = vpop.f32.mrb[0].mxu0
      %v745 = vpop.f32.mrb[0].mxu0
      %v746 = vadd.f32 0.0, %v745
      %v747 = vpop.f32.mrb[0].mxu0
      %748 = vmatprep.mubr.bf16.mxu0 0
      %749 = vmatmul.mubr.bf16.gmra.mrb[0].mxu0 %v387
      %v750 = vpop.f32.mrb[0].mxu0
      %v751 = vadd.f32 0.0, %v750
      %v752 = vpop.f32.mrb[0].mxu0
      %v753 = vpop.f32.mrb[0].mxu0
      %v754 = vadd.f32 0.0, %v753
      %v755 = vpop.f32.mrb[0].mxu0
      %756 = vdwg.mxu0
      %vm757 = vcmp.gt.f32.partialorder %v503, 0.0
      %vm758 = vcmp.gt.f32.partialorder %v506, 0.0
      %vm759 = vcmp.gt.f32.partialorder %v511, 0.0
      %vm760 = vcmp.gt.f32.partialorder %v514, 0.0
      %vm761 = vcmp.gt.f32.partialorder %v519, 0.0
      %vm762 = vcmp.gt.f32.partialorder %v522, 0.0
      %vm763 = vcmp.gt.f32.partialorder %v527, 0.0
      %vm764 = vcmp.gt.f32.partialorder %v530, 0.0
      %vm765 = vcmp.gt.f32.partialorder %v535, 0.0
      %vm766 = vcmp.gt.f32.partialorder %v538, 0.0
      %vm767 = vcmp.gt.f32.partialorder %v543, 0.0
      %vm768 = vcmp.gt.f32.partialorder %v546, 0.0
      %vm769 = vcmp.gt.f32.partialorder %v551, 0.0
      %vm770 = vcmp.gt.f32.partialorder %v554, 0.0
      %vm771 = vcmp.gt.f32.partialorder %v559, 0.0
      %vm772 = vcmp.gt.f32.partialorder %v562, 0.0
      %vm773 = vcmp.gt.f32.partialorder %v567, 0.0
      %vm774 = vcmp.gt.f32.partialorder %v570, 0.0
      %vm775 = vcmp.gt.f32.partialorder %v575, 0.0
      %vm776 = vcmp.gt.f32.partialorder %v578, 0.0
      %vm777 = vcmp.gt.f32.partialorder %v583, 0.0
      %vm778 = vcmp.gt.f32.partialorder %v586, 0.0
      %vm779 = vcmp.gt.f32.partialorder %v591, 0.0
      %vm780 = vcmp.gt.f32.partialorder %v594, 0.0
      %vm781 = vcmp.gt.f32.partialorder %v599, 0.0
      %vm782 = vcmp.gt.f32.partialorder %v602, 0.0
      %vm783 = vcmp.gt.f32.partialorder %v607, 0.0
      %vm784 = vcmp.gt.f32.partialorder %v610, 0.0
      %vm785 = vcmp.gt.f32.partialorder %v615, 0.0
      %vm786 = vcmp.gt.f32.partialorder %v618, 0.0
      %vm787 = vcmp.gt.f32.partialorder %v623, 0.0
      %vm788 = vcmp.gt.f32.partialorder %v626, 0.0
      %vm789 = vcmp.gt.f32.partialorder %v631, 0.0
      %vm790 = vcmp.gt.f32.partialorder %v634, 0.0
      %vm791 = vcmp.gt.f32.partialorder %v639, 0.0
      %vm792 = vcmp.gt.f32.partialorder %v642, 0.0
      %vm793 = vcmp.gt.f32.partialorder %v647, 0.0
      %vm794 = vcmp.gt.f32.partialorder %v650, 0.0
      %vm795 = vcmp.gt.f32.partialorder %v655, 0.0
      %vm796 = vcmp.gt.f32.partialorder %v658, 0.0
      %vm797 = vcmp.gt.f32.partialorder %v663, 0.0
      %vm798 = vcmp.gt.f32.partialorder %v666, 0.0
      %vm799 = vcmp.gt.f32.partialorder %v671, 0.0
      %vm800 = vcmp.gt.f32.partialorder %v674, 0.0
      %vm801 = vcmp.gt.f32.partialorder %v679, 0.0
      %vm802 = vcmp.gt.f32.partialorder %v682, 0.0
      %vm803 = vcmp.gt.f32.partialorder %v687, 0.0
      %vm804 = vcmp.gt.f32.partialorder %v690, 0.0
      %vm805 = vcmp.gt.f32.partialorder %v695, 0.0
      %vm806 = vcmp.gt.f32.partialorder %v698, 0.0
      %vm807 = vcmp.gt.f32.partialorder %v703, 0.0
      %vm808 = vcmp.gt.f32.partialorder %v706, 0.0
      %vm809 = vcmp.gt.f32.partialorder %v711, 0.0
      %vm810 = vcmp.gt.f32.partialorder %v714, 0.0
      %vm811 = vcmp.gt.f32.partialorder %v719, 0.0
      %vm812 = vcmp.gt.f32.partialorder %v722, 0.0
      %vm813 = vcmp.gt.f32.partialorder %v727, 0.0
      %vm814 = vcmp.gt.f32.partialorder %v730, 0.0
      %vm815 = vcmp.gt.f32.partialorder %v735, 0.0
      %vm816 = vcmp.gt.f32.partialorder %v738, 0.0
      %vm817 = vcmp.gt.f32.partialorder %v743, 0.0
      %vm818 = vcmp.gt.f32.partialorder %v746, 0.0
      %vm819 = vcmp.gt.f32.partialorder %v751, 0.0
      %vm820 = vcmp.gt.f32.partialorder %v754, 0.0
      %v821 = vmul.f32 %v503, 0.2
      %v822 = vmul.f32 %v506, 0.2
      %v823 = vmul.f32 %v511, 0.2
      %v824 = vmul.f32 %v514, 0.2
      %v825 = vmul.f32 %v519, 0.2
      %v826 = vmul.f32 %v522, 0.2
      %v827 = vmul.f32 %v527, 0.2
      %v828 = vmul.f32 %v530, 0.2
      %v829 = vmul.f32 %v535, 0.2
      %v830 = vmul.f32 %v538, 0.2
      %v831 = vmul.f32 %v543, 0.2
      %v832 = vmul.f32 %v546, 0.2
      %v833 = vmul.f32 %v551, 0.2
      %v834 = vmul.f32 %v554, 0.2
      %v835 = vmul.f32 %v559, 0.2
      %v836 = vmul.f32 %v562, 0.2
      %v837 = vmul.f32 %v567, 0.2
      %v838 = vmul.f32 %v570, 0.2
      %v839 = vmul.f32 %v575, 0.2
      %v840 = vmul.f32 %v578, 0.2
      %v841 = vmul.f32 %v583, 0.2
      %v842 = vmul.f32 %v586, 0.2
      %v843 = vmul.f32 %v591, 0.2
      %v844 = vmul.f32 %v594, 0.2
      %v845 = vmul.f32 %v599, 0.2
      %v846 = vmul.f32 %v602, 0.2
      %v847 = vmul.f32 %v607, 0.2
      %v848 = vmul.f32 %v610, 0.2
      %v849 = vmul.f32 %v615, 0.2
      %v850 = vmul.f32 %v618, 0.2
      %v851 = vmul.f32 %v623, 0.2
      %v852 = vmul.f32 %v626, 0.2
      %v853 = vmul.f32 %v631, 0.2
      %v854 = vmul.f32 %v634, 0.2
      %v855 = vmul.f32 %v639, 0.2
      %v856 = vmul.f32 %v642, 0.2
      %v857 = vmul.f32 %v647, 0.2
      %v858 = vmul.f32 %v650, 0.2
      %v859 = vmul.f32 %v655, 0.2
      %v860 = vmul.f32 %v658, 0.2
      %v861 = vmul.f32 %v663, 0.2
      %v862 = vmul.f32 %v666, 0.2
      %v863 = vmul.f32 %v671, 0.2
      %v864 = vmul.f32 %v674, 0.2
      %v865 = vmul.f32 %v679, 0.2
      %v866 = vmul.f32 %v682, 0.2
      %v867 = vmul.f32 %v687, 0.2
      %v868 = vmul.f32 %v690, 0.2
      %v869 = vmul.f32 %v695, 0.2
      %v870 = vmul.f32 %v698, 0.2
      %v871 = vmul.f32 %v703, 0.2
      %v872 = vmul.f32 %v706, 0.2
      %v873 = vmul.f32 %v711, 0.2
      %v874 = vmul.f32 %v714, 0.2
      %v875 = vmul.f32 %v719, 0.2
      %v876 = vmul.f32 %v722, 0.2
      %v877 = vmul.f32 %v727, 0.2
      %v878 = vmul.f32 %v730, 0.2
      %v879 = vmul.f32 %v735, 0.2
      %v880 = vmul.f32 %v738, 0.2
      %v881 = vmul.f32 %v743, 0.2
      %v882 = vmul.f32 %v746, 0.2
      %v883 = vmul.f32 %v751, 0.2
      %v884 = vmul.f32 %v754, 0.2
      %v885 = vsel %vm757, %v503, %v821
      %v886 = vsel %vm758, %v506, %v822
      %v887 = vsel %vm759, %v511, %v823
      %v888 = vsel %vm760, %v514, %v824
      %v889 = vsel %vm761, %v519, %v825
      %v890 = vsel %vm762, %v522, %v826
      %v891 = vsel %vm763, %v527, %v827
      %v892 = vsel %vm764, %v530, %v828
      %v893 = vsel %vm765, %v535, %v829
      %v894 = vsel %vm766, %v538, %v830
      %v895 = vsel %vm767, %v543, %v831
      %v896 = vsel %vm768, %v546, %v832
      %v897 = vsel %vm769, %v551, %v833
      %v898 = vsel %vm770, %v554, %v834
      %v899 = vsel %vm771, %v559, %v835
      %v900 = vsel %vm772, %v562, %v836
      %v901 = vsel %vm773, %v567, %v837
      %v902 = vsel %vm774, %v570, %v838
      %v903 = vsel %vm775, %v575, %v839
      %v904 = vsel %vm776, %v578, %v840
      %v905 = vsel %vm777, %v583, %v841
      %v906 = vsel %vm778, %v586, %v842
      %v907 = vsel %vm779, %v591, %v843
      %v908 = vsel %vm780, %v594, %v844
      %v909 = vsel %vm781, %v599, %v845
      %v910 = vsel %vm782, %v602, %v846
      %v911 = vsel %vm783, %v607, %v847
      %v912 = vsel %vm784, %v610, %v848
      %v913 = vsel %vm785, %v615, %v849
      %v914 = vsel %vm786, %v618, %v850
      %v915 = vsel %vm787, %v623, %v851
      %v916 = vsel %vm788, %v626, %v852
      %v917 = vsel %vm789, %v631, %v853
      %v918 = vsel %vm790, %v634, %v854
      %v919 = vsel %vm791, %v639, %v855
      %v920 = vsel %vm792, %v642, %v856
      %v921 = vsel %vm793, %v647, %v857
      %v922 = vsel %vm794, %v650, %v858
      %v923 = vsel %vm795, %v655, %v859
      %v924 = vsel %vm796, %v658, %v860
      %v925 = vsel %vm797, %v663, %v861
      %v926 = vsel %vm798, %v666, %v862
      %v927 = vsel %vm799, %v671, %v863
      %v928 = vsel %vm800, %v674, %v864
      %v929 = vsel %vm801, %v679, %v865
      %v930 = vsel %vm802, %v682, %v866
      %v931 = vsel %vm803, %v687, %v867
      %v932 = vsel %vm804, %v690, %v868
      %v933 = vsel %vm805, %v695, %v869
      %v934 = vsel %vm806, %v698, %v870
      %v935 = vsel %vm807, %v703, %v871
      %v936 = vsel %vm808, %v706, %v872
      %v937 = vsel %vm809, %v711, %v873
      %v938 = vsel %vm810, %v714, %v874
      %v939 = vsel %vm811, %v719, %v875
      %v940 = vsel %vm812, %v722, %v876
      %v941 = vsel %vm813, %v727, %v877
      %v942 = vsel %vm814, %v730, %v878
      %v943 = vsel %vm815, %v735, %v879
      %v944 = vsel %vm816, %v738, %v880
      %v945 = vsel %vm817, %v743, %v881
      %v946 = vsel %vm818, %v746, %v882
      %v947 = vsel %vm819, %v751, %v883
      %v948 = vsel %vm820, %v754, %v884
      %v949 = vpack.c.bf16 %v886, %v885
      %v950 = vpack.c.bf16 %v888, %v887
      %v951 = vpack.c.bf16 %v890, %v889
      %v952 = vpack.c.bf16 %v892, %v891
      %v953 = vpack.c.bf16 %v894, %v893
      %v954 = vpack.c.bf16 %v896, %v895
      %v955 = vpack.c.bf16 %v898, %v897
      %v956 = vpack.c.bf16 %v900, %v899
      %v957 = vpack.c.bf16 %v902, %v901
      %v958 = vpack.c.bf16 %v904, %v903
      %v959 = vpack.c.bf16 %v906, %v905
      %v960 = vpack.c.bf16 %v908, %v907
      %v961 = vpack.c.bf16 %v910, %v909
      %v962 = vpack.c.bf16 %v912, %v911
      %v963 = vpack.c.bf16 %v914, %v913
      %v964 = vpack.c.bf16 %v916, %v915
      %v965 = vpack.c.bf16 %v918, %v917
      %v966 = vpack.c.bf16 %v920, %v919
      %v967 = vpack.c.bf16 %v922, %v921
      %v968 = vpack.c.bf16 %v924, %v923
      %v969 = vpack.c.bf16 %v926, %v925
      %v970 = vpack.c.bf16 %v928, %v927
      %v971 = vpack.c.bf16 %v930, %v929
      %v972 = vpack.c.bf16 %v932, %v931
      %v973 = vpack.c.bf16 %v934, %v933
      %v974 = vpack.c.bf16 %v936, %v935
      %v975 = vpack.c.bf16 %v938, %v937
      %v976 = vpack.c.bf16 %v940, %v939
      %v977 = vpack.c.bf16 %v942, %v941
      %v978 = vpack.c.bf16 %v944, %v943
      %v979 = vpack.c.bf16 %v946, %v945
      %v980 = vpack.c.bf16 %v948, %v947
      %v1013 = vunpack.c.l.b16 %v949
      %v1014 = vunpack.c.h.b16 %v949
      %v1015 = vunpack.c.l.b16 %v950
      %v1016 = vunpack.c.h.b16 %v950
      %v1017 = vunpack.c.l.b16 %v951
      %v1018 = vunpack.c.h.b16 %v951
      %v1019 = vunpack.c.l.b16 %v952
      %v1020 = vunpack.c.h.b16 %v952
      %v1021 = vunpack.c.l.b16 %v953
      %v1022 = vunpack.c.h.b16 %v953
      %v1023 = vunpack.c.l.b16 %v954
      %v1024 = vunpack.c.h.b16 %v954
      %v1025 = vunpack.c.l.b16 %v955
      %v1026 = vunpack.c.h.b16 %v955
      %v1027 = vunpack.c.l.b16 %v956
      %v1028 = vunpack.c.h.b16 %v956
      %v1029 = vunpack.c.l.b16 %v957
      %v1030 = vunpack.c.h.b16 %v957
      %v1031 = vunpack.c.l.b16 %v958
      %v1032 = vunpack.c.h.b16 %v958
      %v1033 = vunpack.c.l.b16 %v959
      %v1034 = vunpack.c.h.b16 %v959
      %v1035 = vunpack.c.l.b16 %v960
      %v1036 = vunpack.c.h.b16 %v960
      %v1037 = vunpack.c.l.b16 %v961
      %v1038 = vunpack.c.h.b16 %v961
      %v1039 = vunpack.c.l.b16 %v962
      %v1040 = vunpack.c.h.b16 %v962
      %v1041 = vunpack.c.l.b16 %v963
      %v1042 = vunpack.c.h.b16 %v963
      %v1043 = vunpack.c.l.b16 %v964
      %v1044 = vunpack.c.h.b16 %v964
      %v1045 = vunpack.c.l.b16 %v965
      %v1046 = vunpack.c.h.b16 %v965
      %v1047 = vunpack.c.l.b16 %v966
      %v1048 = vunpack.c.h.b16 %v966
      %v1049 = vunpack.c.l.b16 %v967
      %v1050 = vunpack.c.h.b16 %v967
      %v1051 = vunpack.c.l.b16 %v968
      %v1052 = vunpack.c.h.b16 %v968
      %v1053 = vunpack.c.l.b16 %v969
      %v1054 = vunpack.c.h.b16 %v969
      %v1055 = vunpack.c.l.b16 %v970
      %v1056 = vunpack.c.h.b16 %v970
      %v1057 = vunpack.c.l.b16 %v971
      %v1058 = vunpack.c.h.b16 %v971
      %v1059 = vunpack.c.l.b16 %v972
      %v1060 = vunpack.c.h.b16 %v972
      %v1061 = vunpack.c.l.b16 %v973
      %v1062 = vunpack.c.h.b16 %v973
      %v1063 = vunpack.c.l.b16 %v974
      %v1064 = vunpack.c.h.b16 %v974
      %v1065 = vunpack.c.l.b16 %v975
      %v1066 = vunpack.c.h.b16 %v975
      %v1067 = vunpack.c.l.b16 %v976
      %v1068 = vunpack.c.h.b16 %v976
      %v1069 = vunpack.c.l.b16 %v977
      %v1070 = vunpack.c.h.b16 %v977
      %v1071 = vunpack.c.l.b16 %v978
      %v1072 = vunpack.c.h.b16 %v978
      %v1073 = vunpack.c.l.b16 %v979
      %v1074 = vunpack.c.h.b16 %v979
      %v1075 = vunpack.c.l.b16 %v980
      %v1076 = vunpack.c.h.b16 %v980
      %v1077 = vpack.c.b16 %v1013, %v1013
      %v1078 = vpack.c.b16 %v1014, %v1014
      %v1079 = vpack.c.b16 %v1015, %v1015
      %v1080 = vpack.c.b16 %v1016, %v1016
      %v1081 = vpack.c.b16 %v1017, %v1017
      %v1082 = vpack.c.b16 %v1018, %v1018
      %v1083 = vpack.c.b16 %v1019, %v1019
      %v1084 = vpack.c.b16 %v1020, %v1020
      %v1085 = vpack.c.b16 %v1021, %v1021
      %v1086 = vpack.c.b16 %v1022, %v1022
      %v1087 = vpack.c.b16 %v1023, %v1023
      %v1088 = vpack.c.b16 %v1024, %v1024
      %v1089 = vpack.c.b16 %v1025, %v1025
      %v1090 = vpack.c.b16 %v1026, %v1026
      %v1091 = vpack.c.b16 %v1027, %v1027
      %v1092 = vpack.c.b16 %v1028, %v1028
      %v1093 = vpack.c.b16 %v1029, %v1029
      %v1094 = vpack.c.b16 %v1030, %v1030
      %v1095 = vpack.c.b16 %v1031, %v1031
      %v1096 = vpack.c.b16 %v1032, %v1032
      %v1097 = vpack.c.b16 %v1033, %v1033
      %v1098 = vpack.c.b16 %v1034, %v1034
      %v1099 = vpack.c.b16 %v1035, %v1035
      %v1100 = vpack.c.b16 %v1036, %v1036
      %v1101 = vpack.c.b16 %v1037, %v1037
      %v1102 = vpack.c.b16 %v1038, %v1038
      %v1103 = vpack.c.b16 %v1039, %v1039
      %v1104 = vpack.c.b16 %v1040, %v1040
      %v1105 = vpack.c.b16 %v1041, %v1041
      %v1106 = vpack.c.b16 %v1042, %v1042
      %v1107 = vpack.c.b16 %v1043, %v1043
      %v1108 = vpack.c.b16 %v1044, %v1044
      %v1109 = vpack.c.b16 %v1045, %v1045
      %v1110 = vpack.c.b16 %v1046, %v1046
      %v1111 = vpack.c.b16 %v1047, %v1047
      %v1112 = vpack.c.b16 %v1048, %v1048
      %v1113 = vpack.c.b16 %v1049, %v1049
      %v1114 = vpack.c.b16 %v1050, %v1050
      %v1115 = vpack.c.b16 %v1051, %v1051
      %v1116 = vpack.c.b16 %v1052, %v1052
      %v1117 = vpack.c.b16 %v1053, %v1053
      %v1118 = vpack.c.b16 %v1054, %v1054
      %v1119 = vpack.c.b16 %v1055, %v1055
      %v1120 = vpack.c.b16 %v1056, %v1056
      %v1121 = vpack.c.b16 %v1057, %v1057
      %v1122 = vpack.c.b16 %v1058, %v1058
      %v1123 = vpack.c.b16 %v1059, %v1059
      %v1124 = vpack.c.b16 %v1060, %v1060
      %v1125 = vpack.c.b16 %v1061, %v1061
      %v1126 = vpack.c.b16 %v1062, %v1062
      %v1127 = vpack.c.b16 %v1063, %v1063
      %v1128 = vpack.c.b16 %v1064, %v1064
      %v1129 = vpack.c.b16 %v1065, %v1065
      %v1130 = vpack.c.b16 %v1066, %v1066
      %v1131 = vpack.c.b16 %v1067, %v1067
      %v1132 = vpack.c.b16 %v1068, %v1068
      %v1133 = vpack.c.b16 %v1069, %v1069
      %v1134 = vpack.c.b16 %v1070, %v1070
      %v1135 = vpack.c.b16 %v1071, %v1071
      %v1136 = vpack.c.b16 %v1072, %v1072
      %v1137 = vpack.c.b16 %v1073, %v1073
      %v1138 = vpack.c.b16 %v1074, %v1074
      %v1139 = vpack.c.b16 %v1075, %v1075
      %v1140 = vpack.c.b16 %v1076, %v1076
      %1205 = vst [vmem:[%s145] sm:$0xf] %v1077
      %1206 = vst [vmem:[%s145 + $0x4] sm:$0xf] %v1078
      %1207 = vst [vmem:[%s145 + $0x8] sm:$0xf] %v1079
      %1208 = vst [vmem:[%s145 + $0xc] sm:$0xf] %v1080
      %1209 = vst [vmem:[%s145 + $0x10] sm:$0xf] %v1081
      %1210 = vst [vmem:[%s145 + $0x14] sm:$0xf] %v1082
      %1211 = vst [vmem:[%s145 + $0x18] sm:$0xf] %v1083
      %1212 = vst [vmem:[%s145 + $0x1c] sm:$0xf] %v1084
      %1213 = vst [vmem:[%s145 + $0x20] sm:$0xf] %v1085
      %1214 = vst [vmem:[%s145 + $0x24] sm:$0xf] %v1086
      %1215 = vst [vmem:[%s145 + $0x28] sm:$0xf] %v1087
      %1216 = vst [vmem:[%s145 + $0x2c] sm:$0xf] %v1088
      %1217 = vst [vmem:[%s145 + $0x30] sm:$0xf] %v1089
      %1218 = vst [vmem:[%s145 + $0x34] sm:$0xf] %v1090
      %1219 = vst [vmem:[%s145 + $0x38] sm:$0xf] %v1091
      %1220 = vst [vmem:[%s145 + $0x3c] sm:$0xf] %v1092
      %1221 = vst [vmem:[%s145 + $0x40] sm:$0xf] %v1093
      %1222 = vst [vmem:[%s145 + $0x44] sm:$0xf] %v1094
      %1223 = vst [vmem:[%s145 + $0x48] sm:$0xf] %v1095
      %1224 = vst [vmem:[%s145 + $0x4c] sm:$0xf] %v1096
      %1225 = vst [vmem:[%s145 + $0x50] sm:$0xf] %v1097
      %1226 = vst [vmem:[%s145 + $0x54] sm:$0xf] %v1098
      %1227 = vst [vmem:[%s145 + $0x58] sm:$0xf] %v1099
      %1228 = vst [vmem:[%s145 + $0x5c] sm:$0xf] %v1100
      %1229 = vst [vmem:[%s145 + $0x60] sm:$0xf] %v1101
      %1230 = vst [vmem:[%s145 + $0x64] sm:$0xf] %v1102
      %1231 = vst [vmem:[%s145 + $0x68] sm:$0xf] %v1103
      %1232 = vst [vmem:[%s145 + $0x6c] sm:$0xf] %v1104
      %1233 = vst [vmem:[%s145 + $0x70] sm:$0xf] %v1105
      %1234 = vst [vmem:[%s145 + $0x74] sm:$0xf] %v1106
      %1235 = vst [vmem:[%s145 + $0x78] sm:$0xf] %v1107
      %1236 = vst [vmem:[%s145 + $0x7c] sm:$0xf] %v1108
      %1237 = vst [vmem:[%s145 + $0x80] sm:$0xf] %v1109
      %1238 = vst [vmem:[%s145 + $0x84] sm:$0xf] %v1110
      %1239 = vst [vmem:[%s145 + $0x88] sm:$0xf] %v1111
      %1240 = vst [vmem:[%s145 + $0x8c] sm:$0xf] %v1112
      %1241 = vst [vmem:[%s145 + $0x90] sm:$0xf] %v1113
      %1242 = vst [vmem:[%s145 + $0x94] sm:$0xf] %v1114
      %1243 = vst [vmem:[%s145 + $0x98] sm:$0xf] %v1115
      %1244 = vst [vmem:[%s145 + $0x9c] sm:$0xf] %v1116
      %1245 = vst [vmem:[%s145 + $0xa0] sm:$0xf] %v1117
      %1246 = vst [vmem:[%s145 + $0xa4] sm:$0xf] %v1118
      %1247 = vst [vmem:[%s145 + $0xa8] sm:$0xf] %v1119
      %1248 = vst [vmem:[%s145 + $0xac] sm:$0xf] %v1120
      %1249 = vst [vmem:[%s145 + $0xb0] sm:$0xf] %v1121
      %1250 = vst [vmem:[%s145 + $0xb4] sm:$0xf] %v1122
      %1251 = vst [vmem:[%s145 + $0xb8] sm:$0xf] %v1123
      %1252 = vst [vmem:[%s145 + $0xbc] sm:$0xf] %v1124
      %1253 = vst [vmem:[%s145 + $0xc0] sm:$0xf] %v1125
      %1254 = vst [vmem:[%s145 + $0xc4] sm:$0xf] %v1126
      %1255 = vst [vmem:[%s145 + $0xc8] sm:$0xf] %v1127
      %1256 = vst [vmem:[%s145 + $0xcc] sm:$0xf] %v1128
      %1257 = vst [vmem:[%s145 + $0xd0] sm:$0xf] %v1129
      %1258 = vst [vmem:[%s145 + $0xd4] sm:$0xf] %v1130
      %1259 = vst [vmem:[%s145 + $0xd8] sm:$0xf] %v1131
      %1260 = vst [vmem:[%s145 + $0xdc] sm:$0xf] %v1132
      %1261 = vst [vmem:[%s145 + $0xe0] sm:$0xf] %v1133
      %1262 = vst [vmem:[%s145 + $0xe4] sm:$0xf] %v1134
      %1263 = vst [vmem:[%s145 + $0xe8] sm:$0xf] %v1135
      %1264 = vst [vmem:[%s145 + $0xec] sm:$0xf] %v1136
      %1265 = vst [vmem:[%s145 + $0xf0] sm:$0xf] %v1137
      %1266 = vst [vmem:[%s145 + $0xf4] sm:$0xf] %v1138
      %1267 = vst [vmem:[%s145 + $0xf8] sm:$0xf] %v1139
      %1268 = vst [vmem:[%s145 + $0xfc] sm:$0xf] %v1140
      %s1269 = smul.u32 64, %s13
      %p1270 = scmp.lt.s32.totalorder %s1269, 255
      %s1271 = scalar_select %p1270, %s1269, 255
      %s1272 = smul.addr %s1271, 4
      %s1273 = scalar_lea.vmem %s2, %s1272
      // Predicated region
      $region29: #{discriminator_forward.8} parent=27 // pred_check
        %p1274 = pneg %p78
      $region30: #{discriminator_forward.8} parent=27 // pred_check_branch
        %1276 = sbr.rel (%p1274) target = $region32
      $region31: #{discriminator_forward.8} parent=27 // pred_region
        %s1277 = smul.u32 64, %s13
      $region32: #{discriminator_forward.8} parent=27 // pred_fallthru
        _
    $region28: #{discriminator_forward.8} parent=5 // pred_fallthru
      _
    %p1278 = scmp.le.s32.totalorder 2, %s8
    // Predicated region
    $region33: #{discriminator_forward.8} parent=5 // pred_check
      %p1279 = pneg %p1278
    $region34: #{discriminator_forward.8} parent=5 // pred_check_branch
      %1281 = sbr.rel (%p1279) target = $region36
    $region35: #{discriminator_forward.8} parent=5 // pred_region
      %s1282 = ssub.s32 %s8, 2
      // Predicated region
      $region37: #{discriminator_forward.8} parent=35 // pred_check
        %p1283 = pneg %p84
      $region38: #{discriminator_forward.8} parent=35 // pred_check_branch
        %1285 = sbr.rel (%p1283) target = $region40
      $region39: #{discriminator_forward.8} parent=35 // pred_region
        %s1286 = smul.u32 64, %s14
        %p1287 = scmp.lt.s32.totalorder %s1286, 255
        %s1288 = scalar_select %p1287, %s1286, 255
        %s1289 = smul.addr %s1288, 4
        %s1290 = scalar_lea.vmem %s2, %s1289
      $region40: #{discriminator_forward.8} parent=35 // pred_fallthru
        _
    $region36: #{discriminator_forward.8} parent=5 // pred_fallthru
      _
  $region6: #{discriminator_forward.8} parent=0 // loop_footer
    %s12 = sadd.s32 1, %s8
  $region7: #{discriminator_forward.8} parent=0 // loop_footer_branch
    %7 = sbr.rel target = $region3
  $region8: #{discriminator_forward.8} parent=0 // loop_exit
    _

// kernel: discriminator_forward.9
$region0: #{discriminator_forward.9}
  #allocation0 [shape = 'u32[]', space=smem, size = 0x4, offset = 0x4, fixed_abs, tag = 'smem constant byte address 0x4 - core index']
  #allocation1 [shape = 'u32[144,128]{1,0:T(1,128)}', space=vmem, size = 0x12000, scoped, tag = 'internal scratch']
  %s0 = inlined_call_operand.vmem [shape: bf16[512,128], index: 0, kind: input, shape index: {}]
  %s1 = inlined_call_operand.vmem [shape: bf16[128,128], index: 1, kind: input, shape index: {}]
  %s2 = inlined_call_operand.vmem [shape: bf16[512,128], index: 2, kind: output, shape index: {0}]
  %s3 = inlined_call_operand.vmem [shape: f32[2,2,128], index: 3, kind: output, shape index: {1}]
  %4 = xla_tuple %s2, %s3
  %s5 = sld [smem:[#allocation0]]
  $region49: #{discriminator_forward.9} parent=0
    _
  %s7 = ssub.s32 1, %s5
  %s8 = scalar_select 0, %s7, %s5
  loop: start=0, step=1, limit=4
  $region2: #{discriminator_forward.9} parent=0 // loop_pre_header
    _
  $region3: #{discriminator_forward.9} parent=0 // loop_header
    %s10 = sphi 0, %s14
    %p11 = scmp.ge.s32.totalorder %s10, 4
    %s20 = sphi 0, %s22
    %s23 = sphi 0, %s20
    %s24 = sphi 0, %s23
    %s40 = sphi 0, %s24
    %s44 = sphi 0, %s44
    %s46 = sphi 0, %s44
    %s47 = sphi 0, %s46
    %s61 = sphi 0, %s47
    %s67 = sphi 0, %s69
    %s70 = sphi 0, %s67
    %s71 = sphi 0, %s70
    %s87 = sphi 0, %s71
    %s93 = sphi 0, %s95
    %s96 = sphi 0, %s93
    %s97 = sphi 0, %s96
    %s113 = sphi 0, %s97
  $region4: #{discriminator_forward.9} parent=0 // loop_header_branch
    %13 = sbr.rel (%p11) target = $region8
  $region5: #{discriminator_forward.9} parent=0 // loop_body
    %s15 = ssub.s32 %s10, 1
    %s16 = ssub.s32 %s10, 2
    %s17 = sadd.s32 %s10, 1
    %s18 = ssub.s32 %s10, %s17
    %p19 = scmp.eq.s32.totalorder %s18, 0
    %s21 = sadd.s32 %s20, 1
    %s22 = scalar_select %p19, %s20, %s21
    %p25 = pneg %p19
    %p26 = scmp.eq.s32.totalorder %s10, 1
    %p27 = por %p25, %p26
    %p28 = scmp.ne.s32.totalorder %s20, %s23
    %p29 = scmp.eq.s32.totalorder %s10, 0
    %p30 = por %p28, %p29
    %p31 = scmp.ne.s32.totalorder %s20, %s23
    %p32 = scmp.eq.s32.totalorder %s15, 1
    %p33 = por %p31, %p32
    %p34 = scmp.ne.s32.totalorder %s23, %s24
    %p35 = scmp.eq.s32.totalorder %s15, 0
    %p36 = por %p34, %p35
    %p37 = scmp.ne.s32.totalorder %s23, %s24
    %p38 = scmp.eq.s32.totalorder %s16, 1
    %p39 = por %p37, %p38
    %p41 = scmp.ne.s32.totalorder %s24, %s40
    %p42 = scmp.eq.s32.totalorder %s16, 0
    %p43 = por %p41, %p42
    %s45 = sadd.s32 %s44, 1
    %p48 = scmp.eq.s32.totalorder %s10, 1
    %p49 = scmp.ne.s32.totalorder %s44, %s46
    %p50 = scmp.eq.s32.totalorder %s10, 0
    %p51 = por %p49, %p50
    %p52 = scmp.ne.s32.totalorder %s44, %s46
    %p53 = scmp.eq.s32.totalorder %s15, 1
    %p54 = por %p52, %p53
    %p55 = scmp.ne.s32.totalorder %s46, %s47
    %p56 = scmp.eq.s32.totalorder %s15, 0
    %p57 = por %p55, %p56
    %p58 = scmp.ne.s32.totalorder %s46, %s47
    %p59 = scmp.eq.s32.totalorder %s16, 1
    %p60 = por %p58, %p59
    %p62 = scmp.ne.s32.totalorder %s47, %s61
    %p63 = scmp.eq.s32.totalorder %s16, 0
    %p64 = por %p62, %p63
    %s65 = ssub.s32 %s10, %s17
    %p66 = scmp.eq.s32.totalorder %s65, 0
    %s68 = sadd.s32 %s67, 1
    %s69 = scalar_select %p66, %s67, %s68
    %p72 = pneg %p66
    %p73 = scmp.eq.s32.totalorder %s10, 1
    %p74 = por %p72, %p73
    %p75 = scmp.ne.s32.totalorder %s67, %s70
    %p76 = scmp.eq.s32.totalorder %s10, 0
    %p77 = por %p75, %p76
    %p78 = scmp.ne.s32.totalorder %s67, %s70
    %p79 = scmp.eq.s32.totalorder %s15, 1
    %p80 = por %p78, %p79
    %p81 = scmp.ne.s32.totalorder %s70, %s71
    %p82 = scmp.eq.s32.totalorder %s15, 0
    %p83 = por %p81, %p82
    %p84 = scmp.ne.s32.totalorder %s70, %s71
    %p85 = scmp.eq.s32.totalorder %s16, 1
    %p86 = por %p84, %p85
    %p88 = scmp.ne.s32.totalorder %s71, %s87
    %p89 = scmp.eq.s32.totalorder %s16, 0
    %p90 = por %p88, %p89
    %s91 = ssub.s32 %s10, %s17
    %p92 = scmp.eq.s32.totalorder %s91, 0
    %s94 = sadd.s32 %s93, 1
    %s95 = scalar_select %p92, %s93, %s94
    %p98 = pneg %p92
    %p99 = scmp.eq.s32.totalorder %s10, 1
    %p100 = por %p98, %p99
    %p101 = scmp.ne.s32.totalorder %s93, %s96
    %p102 = scmp.eq.s32.totalorder %s10, 0
    %p103 = por %p101, %p102
    %p104 = scmp.ne.s32.totalorder %s93, %s96
    %p105 = scmp.eq.s32.totalorder %s15, 1
    %p106 = por %p104, %p105
    %p107 = scmp.ne.s32.totalorder %s96, %s97
    %p108 = scmp.eq.s32.totalorder %s15, 0
    %p109 = por %p107, %p108
    %p110 = scmp.ne.s32.totalorder %s96, %s97
    %p111 = scmp.eq.s32.totalorder %s16, 1
    %p112 = por %p110, %p111
    %p114 = scmp.ne.s32.totalorder %s97, %s113
    %p115 = scmp.eq.s32.totalorder %s16, 0
    %p116 = por %p114, %p115
    %p117 = scmp.le.s32.totalorder 1, %s10
    %p118 = scmp.lt.s32.totalorder %s10, 3
    %p119 = pnand %p117, %p118
    %p120 = pneg %p119
    // Predicated region
    $region9: #{discriminator_forward.9} parent=5 // pred_check
      _
    $region10: #{discriminator_forward.9} parent=5 // pred_check_branch
      %122 = sbr.rel (%p119) target = $region12
    $region11: #{discriminator_forward.9} parent=5 // pred_region
      %s123 = ssub.s32 %s10, 1
      // Predicated region
      $region13: #{discriminator_forward.9} parent=11 // pred_check
        %p124 = pneg %p57
      $region14: #{discriminator_forward.9} parent=11 // pred_check_branch
        %126 = sbr.rel (%p124) target = $region16
      $region15: #{discriminator_forward.9} parent=11 // pred_region
        _
      $region16: #{discriminator_forward.9} parent=11 // pred_fallthru
        _
    $region12: #{discriminator_forward.9} parent=5 // pred_fallthru
      _
    %p127 = scmp.lt.s32.totalorder %s10, 2
    // Predicated region
    $region17: #{discriminator_forward.9} parent=5 // pred_check
      %p128 = pneg %p127
    $region18: #{discriminator_forward.9} parent=5 // pred_check_branch
      %130 = sbr.rel (%p128) target = $region20
    $region19: #{discriminator_forward.9} parent=5 // pred_region
      // Predicated region
      $region21: #{discriminator_forward.9} parent=19 // pred_check
        %p131 = pneg %p30
      $region22: #{discriminator_forward.9} parent=19 // pred_check_branch
        %133 = sbr.rel (%p131) target = $region24
      $region23: #{discriminator_forward.9} parent=19 // pred_region
        %s134 = smul.u32 32, %s10
        %p135 = scmp.lt.s32.totalorder %s134, 63
        %s136 = scalar_select %p135, %s134, 63
        %s137 = smul.addr %s136, 4
        %s138 = scalar_lea.vmem %s0, %s137
        %s139 = smul.u32 32, %s10
      $region24: #{discriminator_forward.9} parent=19 // pred_fallthru
        _
    $region20: #{discriminator_forward.9} parent=5 // pred_fallthru
      _
    %p140 = scmp.le.s32.totalorder 1, %s10
    %p141 = scmp.lt.s32.totalorder %s10, 3
    %p142 = pnand %p140, %p141
    %p143 = pneg %p142
    // Predicated region
    $region25: #{discriminator_forward.9} parent=5 // pred_check
      _
    $region26: #{discriminator_forward.9} parent=5 // pred_check_branch
      %145 = sbr.rel (%p142) target = $region28
    $region27: #{discriminator_forward.9} parent=5 // pred_region
      %s146 = ssub.s32 %s10, 1
      %s147 = smul.u32 32, %s15
      %p148 = scmp.lt.s32.totalorder %s147, 63
      %s149 = scalar_select %p148, %s147, 63
      %s150 = smul.addr %s149, 4
      %s151 = scalar_lea.vmem %s0, %s150
      %p152 = pneg %p36
      %p153 = pneg %p33
      %p154 = pneg %p57
      %p155 = pneg %p54
      %p156 = pneg %p83
      %p157 = pneg %p80
      %s158 = smul.u32 32, %s15
      %p159 = scmp.lt.s32.totalorder %s158, 63
      %s160 = scalar_select %p159, %s158, 63
      %s161 = smul.addr %s160, 4
      %s162 = scalar_lea.vmem %s2, %s161
      %p163 = pneg %p109
      %p164 = pneg %p106
      %p165 = scmp.lt.s32.totalorder %s15, 1
      %s166 = scalar_select %p165, %s15, 1
      %s167 = smul.addr %s166, 2
      %s168 = scalar_lea.vmem %s3, %s167
      %s169 = smul.u32 32, %s15
      %p170 = scmp.lt.s32.totalorder %s169, 63
      %s171 = scalar_select %p170, %s169, 63
      %s172 = smul.addr %s171, 4
      %s173 = scalar_lea.vmem %s0, %s172
      %s174 = smul.u32 32, %s15
      %s175 = smul.u32 32, %s15
      %p176 = scmp.lt.s32.totalorder %s175, 63
      %s177 = scalar_select %p176, %s175, 63
      %s178 = smul.addr %s177, 4
      %s179 = scalar_lea.vmem %s2, %s178
      %s180 = smul.u32 32, %s15
      %p181 = scmp.lt.s32.totalorder %s15, 1
      %s182 = scalar_select %p181, %s15, 1
      %s183 = smul.addr %s182, 2
      %s184 = scalar_lea.vmem %s3, %s183
      %v186 = vld [vmem:[%s173] sm:$0xf]
      %v187 = vld [vmem:[%s173 + $0x4] sm:$0xf]
      %v188 = vld [vmem:[%s173 + $0x8] sm:$0xf]
      %v189 = vld [vmem:[%s173 + $0xc] sm:$0xf]
      %v190 = vld [vmem:[%s173 + $0x10] sm:$0xf]
      %v191 = vld [vmem:[%s173 + $0x14] sm:$0xf]
      %v192 = vld [vmem:[%s173 + $0x18] sm:$0xf]
      %v193 = vld [vmem:[%s173 + $0x1c] sm:$0xf]
      %v194 = vld [vmem:[%s173 + $0x20] sm:$0xf]
      %v195 = vld [vmem:[%s173 + $0x24] sm:$0xf]
      %v196 = vld [vmem:[%s173 + $0x28] sm:$0xf]
      %v197 = vld [vmem:[%s173 + $0x2c] sm:$0xf]
      %v198 = vld [vmem:[%s173 + $0x30] sm:$0xf]
      %v199 = vld [vmem:[%s173 + $0x34] sm:$0xf]
      %v200 = vld [vmem:[%s173 + $0x38] sm:$0xf]
      %v201 = vld [vmem:[%s173 + $0x3c] sm:$0xf]
      %v202 = vld [vmem:[%s173 + $0x40] sm:$0xf]
      %v203 = vld [vmem:[%s173 + $0x44] sm:$0xf]
      %v204 = vld [vmem:[%s173 + $0x48] sm:$0xf]
      %v205 = vld [vmem:[%s173 + $0x4c] sm:$0xf]
      %v206 = vld [vmem:[%s173 + $0x50] sm:$0xf]
      %v207 = vld [vmem:[%s173 + $0x54] sm:$0xf]
      %v208 = vld [vmem:[%s173 + $0x58] sm:$0xf]
      %v209 = vld [vmem:[%s173 + $0x5c] sm:$0xf]
      %v210 = vld [vmem:[%s173 + $0x60] sm:$0xf]
      %v211 = vld [vmem:[%s173 + $0x64] sm:$0xf]
      %v212 = vld [vmem:[%s173 + $0x68] sm:$0xf]
      %v213 = vld [vmem:[%s173 + $0x6c] sm:$0xf]
      %v214 = vld [vmem:[%s173 + $0x70] sm:$0xf]
      %v215 = vld [vmem:[%s173 + $0x74] sm:$0xf]
      %v216 = vld [vmem:[%s173 + $0x78] sm:$0xf]
      %v217 = vld [vmem:[%s173 + $0x7c] sm:$0xf]
      %v218 = vld [vmem:[%s1] sm:$0xf]
      %v219 = vld [vmem:[%s1 + $0x4] sm:$0xf]
      %v220 = vld [vmem:[%s1 + $0x8] sm:$0xf]
      %v221 = vld [vmem:[%s1 + $0xc] sm:$0xf]
      %v222 = vld [vmem:[%s1 + $0x10] sm:$0xf]
      %v223 = vld [vmem:[%s1 + $0x14] sm:$0xf]
      %v224 = vld [vmem:[%s1 + $0x18] sm:$0xf]
      %v225 = vld [vmem:[%s1 + $0x1c] sm:$0xf]
      %v226 = vld [vmem:[%s1 + $0x20] sm:$0xf]
      %v227 = vld [vmem:[%s1 + $0x24] sm:$0xf]
      %v228 = vld [vmem:[%s1 + $0x28] sm:$0xf]
      %v229 = vld [vmem:[%s1 + $0x2c] sm:$0xf]
      %v230 = vld [vmem:[%s1 + $0x30] sm:$0xf]
      %v231 = vld [vmem:[%s1 + $0x34] sm:$0xf]
      %v232 = vld [vmem:[%s1 + $0x38] sm:$0xf]
      %v233 = vld [vmem:[%s1 + $0x3c] sm:$0xf]
      %v266 = vunpack.c.l.b16 %v186
      %v267 = vunpack.c.l.b16 %v187
      %v268 = vunpack.c.l.b16 %v188
      %v269 = vunpack.c.l.b16 %v189
      %v270 = vunpack.c.l.b16 %v190
      %v271 = vunpack.c.l.b16 %v191
      %v272 = vunpack.c.l.b16 %v192
      %v273 = vunpack.c.l.b16 %v193
      %v274 = vunpack.c.l.b16 %v194
      %v275 = vunpack.c.l.b16 %v195
      %v276 = vunpack.c.l.b16 %v196
      %v277 = vunpack.c.l.b16 %v197
      %v278 = vunpack.c.l.b16 %v198
      %v279 = vunpack.c.l.b16 %v199
      %v280 = vunpack.c.l.b16 %v200
      %v281 = vunpack.c.l.b16 %v201
      %v282 = vunpack.c.l.b16 %v202
      %v283 = vunpack.c.l.b16 %v203
      %v284 = vunpack.c.l.b16 %v204
      %v285 = vunpack.c.l.b16 %v205
      %v286 = vunpack.c.l.b16 %v206
      %v287 = vunpack.c.l.b16 %v207
      %v288 = vunpack.c.l.b16 %v208
      %v289 = vunpack.c.l.b16 %v209
      %v290 = vunpack.c.l.b16 %v210
      %v291 = vunpack.c.l.b16 %v211
      %v292 = vunpack.c.l.b16 %v212
      %v293 = vunpack.c.l.b16 %v213
      %v294 = vunpack.c.l.b16 %v214
      %v295 = vunpack.c.l.b16 %v215
      %v296 = vunpack.c.l.b16 %v216
      %v297 = vunpack.c.l.b16 %v217
      %v298 = vpack.c.b16 %v267, %v266
      %v299 = vpack.c.b16 %v269, %v268
      %v300 = vpack.c.b16 %v271, %v270
      %v301 = vpack.c.b16 %v273, %v272
      %v302 = vpack.c.b16 %v275, %v274
      %v303 = vpack.c.b16 %v277, %v276
      %v304 = vpack.c.b16 %v279, %v278
      %v305 = vpack.c.b16 %v281, %v280
      %v306 = vpack.c.b16 %v283, %v282
      %v307 = vpack.c.b16 %v285, %v284
      %v308 = vpack.c.b16 %v287, %v286
      %v309 = vpack.c.b16 %v289, %v288
      %v310 = vpack.c.b16 %v291, %v290
      %v311 = vpack.c.b16 %v293, %v292
      %v312 = vpack.c.b16 %v295, %v294
      %v313 = vpack.c.b16 %v297, %v296
      %v346 = vunpack.c.l.b16 %v218
      %v347 = vunpack.c.l.b16 %v219
      %v348 = vunpack.c.l.b16 %v220
      %v349 = vunpack.c.l.b16 %v221
      %v350 = vunpack.c.l.b16 %v222
      %v351 = vunpack.c.l.b16 %v223
      %v352 = vunpack.c.l.b16 %v224
      %v353 = vunpack.c.l.b16 %v225
      %v354 = vunpack.c.l.b16 %v226
      %v355 = vunpack.c.l.b16 %v227
      %v356 = vunpack.c.l.b16 %v228
      %v357 = vunpack.c.l.b16 %v229
      %v358 = vunpack.c.l.b16 %v230
      %v359 = vunpack.c.l.b16 %v231
      %v360 = vunpack.c.l.b16 %v232
      %v361 = vunpack.c.l.b16 %v233
      %v362 = vpack.c.b16 %v347, %v346
      %v363 = vpack.c.b16 %v349, %v348
      %v364 = vpack.c.b16 %v351, %v350
      %v365 = vpack.c.b16 %v353, %v352
      %v366 = vpack.c.b16 %v355, %v354
      %v367 = vpack.c.b16 %v357, %v356
      %v368 = vpack.c.b16 %v359, %v358
      %v369 = vpack.c.b16 %v361, %v360
      %378 = vmatprep.subr.bf16.mxu0 0
      %379 = vmatpush1.bf16.msra.mxu0 %v362
      %380 = vmatprep.subr.bf16.mxu0 0
      %381 = vmatpush1.bf16.msra.mxu0 %v363
      %382 = vmatprep.subr.bf16.mxu0 0
      %383 = vmatpush1.bf16.msra.mxu0 %v364
      %384 = vmatprep.subr.bf16.mxu0 0
      %385 = vmatpush1.bf16.msra.mxu0 %v365
      %386 = vmatprep.subr.bf16.mxu0 0
      %387 = vmatpush1.bf16.msra.mxu0 %v366
      %388 = vmatprep.subr.bf16.mxu0 0
      %389 = vmatpush1.bf16.msra.mxu0 %v367
      %390 = vmatprep.subr.bf16.mxu0 0
      %391 = vmatpush1.bf16.msra.mxu0 %v368
      %392 = vmatprep.subr.bf16.mxu0 0
      %393 = vmatpush1.bf16.msra.mxu0 %v369
      %394 = vmatprep.subr.bf16.mxu0 0
      %395 = vmatpush1.bf16.msra.mxu0 0
      %396 = vmatprep.subr.bf16.mxu0 0
      %397 = vmatpush1.bf16.msra.mxu0 0
      %398 = vmatprep.subr.bf16.mxu0 0
      %399 = vmatpush1.bf16.msra.mxu0 0
      %400 = vmatprep.subr.bf16.mxu0 0
      %401 = vmatpush1.bf16.msra.mxu0 0
      %402 = vmatprep.subr.bf16.mxu0 0
      %403 = vmatpush1.bf16.msra.mxu0 0
      %404 = vmatprep.subr.bf16.mxu0 0
      %405 = vmatpush1.bf16.msra.mxu0 0
      %406 = vmatprep.subr.bf16.mxu0 0
      %407 = vmatpush1.bf16.msra.mxu0 0
      %408 = vmatprep.subr.bf16.mxu0 0
      %409 = vmatpush1.bf16.msra.mxu0 0
      %410 = vmatprep.mubr.bf16.mxu0 0
      %411 = vmatmul.mubr.bf16.gmra.mrb[0].mxu0 %v298
      %v412 = vpop.f32.mrb[0].mxu0
      %v413 = vadd.f32 0.0, %v412
      %v414 = vpop.f32.mrb[0].mxu0
      %v415 = vpop.f32.mrb[0].mxu0
      %v416 = vadd.f32 0.0, %v415
      %v417 = vpop.f32.mrb[0].mxu0
      %418 = vmatprep.mubr.bf16.mxu0 0
      %419 = vmatmul.mubr.bf16.gmra.mrb[0].mxu0 %v299
      %v420 = vpop.f32.mrb[0].mxu0
      %v421 = vadd.f32 0.0, %v420
      %v422 = vpop.f32.mrb[0].mxu0
      %v423 = vpop.f32.mrb[0].mxu0
      %v424 = vadd.f32 0.0, %v423
      %v425 = vpop.f32.mrb[0].mxu0
      %426 = vmatprep.mubr.bf16.mxu0 0
      %427 = vmatmul.mubr.bf16.gmra.mrb[0].mxu0 %v300
      %v428 = vpop.f32.mrb[0].mxu0
      %v429 = vadd.f32 0.0, %v428
      %v430 = vpop.f32.mrb[0].mxu0
      %v431 = vpop.f32.mrb[0].mxu0
      %v432 = vadd.f32 0.0, %v431
      %v433 = vpop.f32.mrb[0].mxu0
      %434 = vmatprep.mubr.bf16.mxu0 0
      %435 = vmatmul.mubr.bf16.gmra.mrb[0].mxu0 %v301
      %v436 = vpop.f32.mrb[0].mxu0
      %v437 = vadd.f32 0.0, %v436
      %v438 = vpop.f32.mrb[0].mxu0
      %v439 = vpop.f32.mrb[0].mxu0
      %v440 = vadd.f32 0.0, %v439
      %v441 = vpop.f32.mrb[0].mxu0
      %442 = vmatprep.mubr.bf16.mxu0 0
      %443 = vmatmul.mubr.bf16.gmra.mrb[0].mxu0 %v302
      %v444 = vpop.f32.mrb[0].mxu0
      %v445 = vadd.f32 0.0, %v444
      %v446 = vpop.f32.mrb[0].mxu0
      %v447 = vpop.f32.mrb[0].mxu0
      %v448 = vadd.f32 0.0, %v447
      %v449 = vpop.f32.mrb[0].mxu0
      %450 = vmatprep.mubr.bf16.mxu0 0
      %451 = vmatmul.mubr.bf16.gmra.mrb[0].mxu0 %v303
      %v452 = vpop.f32.mrb[0].mxu0
      %v453 = vadd.f32 0.0, %v452
      %v454 = vpop.f32.mrb[0].mxu0
      %v455 = vpop.f32.mrb[0].mxu0
      %v456 = vadd.f32 0.0, %v455
      %v457 = vpop.f32.mrb[0].mxu0
      %458 = vmatprep.mubr.bf16.mxu0 0
      %459 = vmatmul.mubr.bf16.gmra.mrb[0].mxu0 %v304
      %v460 = vpop.f32.mrb[0].mxu0
      %v461 = vadd.f32 0.0, %v460
      %v462 = vpop.f32.mrb[0].mxu0
      %v463 = vpop.f32.mrb[0].mxu0
      %v464 = vadd.f32 0.0, %v463
      %v465 = vpop.f32.mrb[0].mxu0
      %466 = vmatprep.mubr.bf16.mxu0 0
      %467 = vmatmul.mubr.bf16.gmra.mrb[0].mxu0 %v305
      %v468 = vpop.f32.mrb[0].mxu0
      %v469 = vadd.f32 0.0, %v468
      %v470 = vpop.f32.mrb[0].mxu0
      %v471 = vpop.f32.mrb[0].mxu0
      %v472 = vadd.f32 0.0, %v471
      %v473 = vpop.f32.mrb[0].mxu0
      %474 = vmatprep.mubr.bf16.mxu0 0
      %475 = vmatmul.mubr.bf16.gmra.mrb[0].mxu0 %v306
      %v476 = vpop.f32.mrb[0].mxu0
      %v477 = vadd.f32 0.0, %v476
      %v478 = vpop.f32.mrb[0].mxu0
      %v479 = vpop.f32.mrb[0].mxu0
      %v480 = vadd.f32 0.0, %v479
      %v481 = vpop.f32.mrb[0].mxu0
      %482 = vmatprep.mubr.bf16.mxu0 0
      %483 = vmatmul.mubr.bf16.gmra.mrb[0].mxu0 %v307
      %v484 = vpop.f32.mrb[0].mxu0
      %v485 = vadd.f32 0.0, %v484
      %v486 = vpop.f32.mrb[0].mxu0
      %v487 = vpop.f32.mrb[0].mxu0
      %v488 = vadd.f32 0.0, %v487
      %v489 = vpop.f32.mrb[0].mxu0
      %490 = vmatprep.mubr.bf16.mxu0 0
      %491 = vmatmul.mubr.bf16.gmra.mrb[0].mxu0 %v308
      %v492 = vpop.f32.mrb[0].mxu0
      %v493 = vadd.f32 0.0, %v492
      %v494 = vpop.f32.mrb[0].mxu0
      %v495 = vpop.f32.mrb[0].mxu0
      %v496 = vadd.f32 0.0, %v495
      %v497 = vpop.f32.mrb[0].mxu0
      %498 = vmatprep.mubr.bf16.mxu0 0
      %499 = vmatmul.mubr.bf16.gmra.mrb[0].mxu0 %v309
      %v500 = vpop.f32.mrb[0].mxu0
      %v501 = vadd.f32 0.0, %v500
      %v502 = vpop.f32.mrb[0].mxu0
      %v503 = vpop.f32.mrb[0].mxu0
      %v504 = vadd.f32 0.0, %v503
      %v505 = vpop.f32.mrb[0].mxu0
      %506 = vmatprep.mubr.bf16.mxu0 0
      %507 = vmatmul.mubr.bf16.gmra.mrb[0].mxu0 %v310
      %v508 = vpop.f32.mrb[0].mxu0
      %v509 = vadd.f32 0.0, %v508
      %v510 = vpop.f32.mrb[0].mxu0
      %v511 = vpop.f32.mrb[0].mxu0
      %v512 = vadd.f32 0.0, %v511
      %v513 = vpop.f32.mrb[0].mxu0
      %514 = vmatprep.mubr.bf16.mxu0 0
      %515 = vmatmul.mubr.bf16.gmra.mrb[0].mxu0 %v311
      %v516 = vpop.f32.mrb[0].mxu0
      %v517 = vadd.f32 0.0, %v516
      %v518 = vpop.f32.mrb[0].mxu0
      %v519 = vpop.f32.mrb[0].mxu0
      %v520 = vadd.f32 0.0, %v519
      %v521 = vpop.f32.mrb[0].mxu0
      %522 = vmatprep.mubr.bf16.mxu0 0
      %523 = vmatmul.mubr.bf16.gmra.mrb[0].mxu0 %v312
      %v524 = vpop.f32.mrb[0].mxu0
      %v525 = vadd.f32 0.0, %v524
      %v526 = vpop.f32.mrb[0].mxu0
      %v527 = vpop.f32.mrb[0].mxu0
      %v528 = vadd.f32 0.0, %v527
      %v529 = vpop.f32.mrb[0].mxu0
      %530 = vmatprep.mubr.bf16.mxu0 0
      %531 = vmatmul.mubr.bf16.gmra.mrb[0].mxu0 %v313
      %v532 = vpop.f32.mrb[0].mxu0
      %v533 = vadd.f32 0.0, %v532
      %v534 = vpop.f32.mrb[0].mxu0
      %v535 = vpop.f32.mrb[0].mxu0
      %v536 = vadd.f32 0.0, %v535
      %v537 = vpop.f32.mrb[0].mxu0
      %538 = vdwg.mxu0
      %v539 = vpack.c.bf16 %v416, %v413
      %v540 = vpack.c.bf16 %v424, %v421
      %v541 = vpack.c.bf16 %v432, %v429
      %v542 = vpack.c.bf16 %v440, %v437
      %v543 = vpack.c.bf16 %v448, %v445
      %v544 = vpack.c.bf16 %v456, %v453
      %v545 = vpack.c.bf16 %v464, %v461
      %v546 = vpack.c.bf16 %v472, %v469
      %v547 = vpack.c.bf16 %v480, %v477
      %v548 = vpack.c.bf16 %v488, %v485
      %v549 = vpack.c.bf16 %v496, %v493
      %v550 = vpack.c.bf16 %v504, %v501
      %v551 = vpack.c.bf16 %v512, %v509
      %v552 = vpack.c.bf16 %v520, %v517
      %v553 = vpack.c.bf16 %v528, %v525
      %v554 = vpack.c.bf16 %v536, %v533
      %v571 = vunpack.c.l.b16 %v539
      %v572 = vunpack.c.h.b16 %v539
      %v573 = vunpack.c.l.b16 %v540
      %v574 = vunpack.c.h.b16 %v540
      %v575 = vunpack.c.l.b16 %v541
      %v576 = vunpack.c.h.b16 %v541
      %v577 = vunpack.c.l.b16 %v542
      %v578 = vunpack.c.h.b16 %v542
      %v579 = vunpack.c.l.b16 %v543
      %v580 = vunpack.c.h.b16 %v543
      %v581 = vunpack.c.l.b16 %v544
      %v582 = vunpack.c.h.b16 %v544
      %v583 = vunpack.c.l.b16 %v545
      %v584 = vunpack.c.h.b16 %v545
      %v585 = vunpack.c.l.b16 %v546
      %v586 = vunpack.c.h.b16 %v546
      %v587 = vunpack.c.l.b16 %v547
      %v588 = vunpack.c.h.b16 %v547
      %v589 = vunpack.c.l.b16 %v548
      %v590 = vunpack.c.h.b16 %v548
      %v591 = vunpack.c.l.b16 %v549
      %v592 = vunpack.c.h.b16 %v549
      %v593 = vunpack.c.l.b16 %v550
      %v594 = vunpack.c.h.b16 %v550
      %v595 = vunpack.c.l.b16 %v551
      %v596 = vunpack.c.h.b16 %v551
      %v597 = vunpack.c.l.b16 %v552
      %v598 = vunpack.c.h.b16 %v552
      %v599 = vunpack.c.l.b16 %v553
      %v600 = vunpack.c.h.b16 %v553
      %v601 = vunpack.c.l.b16 %v554
      %v602 = vunpack.c.h.b16 %v554
      %v603 = vpack.c.b16 %v571, %v571
      %v604 = vpack.c.b16 %v572, %v572
      %v605 = vpack.c.b16 %v573, %v573
      %v606 = vpack.c.b16 %v574, %v574
      %v607 = vpack.c.b16 %v575, %v575
      %v608 = vpack.c.b16 %v576, %v576
      %v609 = vpack.c.b16 %v577, %v577
      %v610 = vpack.c.b16 %v578, %v578
      %v611 = vpack.c.b16 %v579, %v579
      %v612 = vpack.c.b16 %v580, %v580
      %v613 = vpack.c.b16 %v581, %v581
      %v614 = vpack.c.b16 %v582, %v582
      %v615 = vpack.c.b16 %v583, %v583
      %v616 = vpack.c.b16 %v584, %v584
      %v617 = vpack.c.b16 %v585, %v585
      %v618 = vpack.c.b16 %v586, %v586
      %v619 = vpack.c.b16 %v587, %v587
      %v620 = vpack.c.b16 %v588, %v588
      %v621 = vpack.c.b16 %v589, %v589
      %v622 = vpack.c.b16 %v590, %v590
      %v623 = vpack.c.b16 %v591, %v591
      %v624 = vpack.c.b16 %v592, %v592
      %v625 = vpack.c.b16 %v593, %v593
      %v626 = vpack.c.b16 %v594, %v594
      %v627 = vpack.c.b16 %v595, %v595
      %v628 = vpack.c.b16 %v596, %v596
      %v629 = vpack.c.b16 %v597, %v597
      %v630 = vpack.c.b16 %v598, %v598
      %v631 = vpack.c.b16 %v599, %v599
      %v632 = vpack.c.b16 %v600, %v600
      %v633 = vpack.c.b16 %v601, %v601
      %v634 = vpack.c.b16 %v602, %v602
      %667 = vst [vmem:[%s179] sm:$0xf] %v603
      %668 = vst [vmem:[%s179 + $0x4] sm:$0xf] %v604
      %669 = vst [vmem:[%s179 + $0x8] sm:$0xf] %v605
      %670 = vst [vmem:[%s179 + $0xc] sm:$0xf] %v606
      %671 = vst [vmem:[%s179 + $0x10] sm:$0xf] %v607
      %672 = vst [vmem:[%s179 + $0x14] sm:$0xf] %v608
      %673 = vst [vmem:[%s179 + $0x18] sm:$0xf] %v609
      %674 = vst [vmem:[%s179 + $0x1c] sm:$0xf] %v610
      %675 = vst [vmem:[%s179 + $0x20] sm:$0xf] %v611
      %676 = vst [vmem:[%s179 + $0x24] sm:$0xf] %v612
      %677 = vst [vmem:[%s179 + $0x28] sm:$0xf] %v613
      %678 = vst [vmem:[%s179 + $0x2c] sm:$0xf] %v614
      %679 = vst [vmem:[%s179 + $0x30] sm:$0xf] %v615
      %680 = vst [vmem:[%s179 + $0x34] sm:$0xf] %v616
      %681 = vst [vmem:[%s179 + $0x38] sm:$0xf] %v617
      %682 = vst [vmem:[%s179 + $0x3c] sm:$0xf] %v618
      %683 = vst [vmem:[%s179 + $0x40] sm:$0xf] %v619
      %684 = vst [vmem:[%s179 + $0x44] sm:$0xf] %v620
      %685 = vst [vmem:[%s179 + $0x48] sm:$0xf] %v621
      %686 = vst [vmem:[%s179 + $0x4c] sm:$0xf] %v622
      %687 = vst [vmem:[%s179 + $0x50] sm:$0xf] %v623
      %688 = vst [vmem:[%s179 + $0x54] sm:$0xf] %v624
      %689 = vst [vmem:[%s179 + $0x58] sm:$0xf] %v625
      %690 = vst [vmem:[%s179 + $0x5c] sm:$0xf] %v626
      %691 = vst [vmem:[%s179 + $0x60] sm:$0xf] %v627
      %692 = vst [vmem:[%s179 + $0x64] sm:$0xf] %v628
      %693 = vst [vmem:[%s179 + $0x68] sm:$0xf] %v629
      %694 = vst [vmem:[%s179 + $0x6c] sm:$0xf] %v630
      %695 = vst [vmem:[%s179 + $0x70] sm:$0xf] %v631
      %696 = vst [vmem:[%s179 + $0x74] sm:$0xf] %v632
      %697 = vst [vmem:[%s179 + $0x78] sm:$0xf] %v633
      %698 = vst [vmem:[%s179 + $0x7c] sm:$0xf] %v634
      %v699 = vadd.f32 %v413, %v416
      %v700 = vadd.f32 %v699, %v421
      %v701 = vadd.f32 %v700, %v424
      %v702 = vadd.f32 %v701, %v429
      %v703 = vadd.f32 %v702, %v432
      %v704 = vadd.f32 %v703, %v437
      %v705 = vadd.f32 %v704, %v440
      %v706 = vadd.f32 %v705, %v445
      %v707 = vadd.f32 %v706, %v448
      %v708 = vadd.f32 %v707, %v453
      %v709 = vadd.f32 %v708, %v456
      %v710 = vadd.f32 %v709, %v461
      %v711 = vadd.f32 %v710, %v464
      %v712 = vadd.f32 %v711, %v469
      %v713 = vadd.f32 %v712, %v472
      %v714 = vadd.f32 %v713, %v477
      %v715 = vadd.f32 %v714, %v480
      %v716 = vadd.f32 %v715, %v485
      %v717 = vadd.f32 %v716, %v488
      %v718 = vadd.f32 %v717, %v493
      %v719 = vadd.f32 %v718, %v496
      %v720 = vadd.f32 %v719, %v501
      %v721 = vadd.f32 %v720, %v504
      %v722 = vadd.f32 %v721, %v509
      %v723 = vadd.f32 %v722, %v512
      %v724 = vadd.f32 %v723, %v517
      %v725 = vadd.f32 %v724, %v520
      %v726 = vadd.f32 %v725, %v525
      %v727 = vadd.f32 %v726, %v528
      %v728 = vadd.f32 %v727, %v533
      %v729 = vadd.f32 %v728, %v536
      %v730 = vrot.slane %v729, 4
      %v731 = vadd.f32 %v729, %v730
      %v732 = vrot.slane %v731, 2
      %v733 = vadd.f32 %v731, %v732
      %v734 = vrot.slane %v733, 1
      %v735 = vadd.f32 %v733, %v734
      %736 = vst [vmem:[%s184] sm:$0x1] %v735
      %v737 = vmul.f32 %v413, %v413
      %v738 = vmul.f32 %v416, %v416
      %v739 = vmul.f32 %v421, %v421
      %v740 = vmul.f32 %v424, %v424
      %v741 = vmul.f32 %v429, %v429
      %v742 = vmul.f32 %v432, %v432
      %v743 = vmul.f32 %v437, %v437
      %v744 = vmul.f32 %v440, %v440
      %v745 = vmul.f32 %v445, %v445
      %v746 = vmul.f32 %v448, %v448
      %v747 = vmul.f32 %v453, %v453
      %v748 = vmul.f32 %v456, %v456
      %v749 = vmul.f32 %v461, %v461
      %v750 = vmul.f32 %v464, %v464
      %v751 = vmul.f32 %v469, %v469
      %v752 = vmul.f32 %v472, %v472
      %v753 = vmul.f32 %v477, %v477
      %v754 = vmul.f32 %v480, %v480
      %v755 = vmul.f32 %v485, %v485
      %v756 = vmul.f32 %v488, %v488
      %v757 = vmul.f32 %v493, %v493
      %v758 = vmul.f32 %v496, %v496
      %v759 = vmul.f32 %v501, %v501
      %v760 = vmul.f32 %v504, %v504
      %v761 = vmul.f32 %v509, %v509
      %v762 = vmul.f32 %v512, %v512
      %v763 = vmul.f32 %v517, %v517
      %v764 = vmul.f32 %v520, %v520
      %v765 = vmul.f32 %v525, %v525
      %v766 = vmul.f32 %v528, %v528
      %v767 = vmul.f32 %v533, %v533
      %v768 = vmul.f32 %v536, %v536
      %v769 = vadd.f32 %v737, %v738
      %v770 = vadd.f32 %v769, %v739
      %v771 = vadd.f32 %v770, %v740
      %v772 = vadd.f32 %v771, %v741
      %v773 = vadd.f32 %v772, %v742
      %v774 = vadd.f32 %v773, %v743
      %v775 = vadd.f32 %v774, %v744
      %v776 = vadd.f32 %v775, %v745
      %v777 = vadd.f32 %v776, %v746
      %v778 = vadd.f32 %v777, %v747
      %v779 = vadd.f32 %v778, %v748
      %v780 = vadd.f32 %v779, %v749
      %v781 = vadd.f32 %v780, %v750
      %v782 = vadd.f32 %v781, %v751
      %v783 = vadd.f32 %v782, %v752
      %v784 = vadd.f32 %v783, %v753
      %v785 = vadd.f32 %v784, %v754
      %v786 = vadd.f32 %v785, %v755
      %v787 = vadd.f32 %v786, %v756
      %v788 = vadd.f32 %v787, %v757
      %v789 = vadd.f32 %v788, %v758
      %v790 = vadd.f32 %v789, %v759
      %v791 = vadd.f32 %v790, %v760
      %v792 = vadd.f32 %v791, %v761
      %v793 = vadd.f32 %v792, %v762
      %v794 = vadd.f32 %v793, %v763
      %v795 = vadd.f32 %v794, %v764
      %v796 = vadd.f32 %v795, %v765
      %v797 = vadd.f32 %v796, %v766
      %v798 = vadd.f32 %v797, %v767
      %v799 = vadd.f32 %v798, %v768
      %v800 = vrot.slane %v799, 4
      %v801 = vadd.f32 %v799, %v800
      %v802 = vrot.slane %v801, 2
      %v803 = vadd.f32 %v801, %v802
      %v804 = vrot.slane %v803, 1
      %v805 = vadd.f32 %v803, %v804
      %806 = vst [vmem:[%s184 + $0x1] sm:$0x1] %v805
      %s807 = smul.u32 32, %s15
      %p808 = scmp.lt.s32.totalorder %s807, 63
      %s809 = scalar_select %p808, %s807, 63
      %s810 = smul.addr %s809, 4
      %s811 = scalar_lea.vmem %s2, %s810
      %p812 = scmp.lt.s32.totalorder %s15, 1
      %s813 = scalar_select %p812, %s15, 1
      %s814 = smul.addr %s813, 2
      %s815 = scalar_lea.vmem %s3, %s814
      // Predicated region
      $region29: #{discriminator_forward.9} parent=27 // pred_check
        %p816 = pneg %p80
      $region30: #{discriminator_forward.9} parent=27 // pred_check_branch
        %818 = sbr.rel (%p816) target = $region32
      $region31: #{discriminator_forward.9} parent=27 // pred_region
        %s819 = smul.u32 32, %s15
      $region32: #{discriminator_forward.9} parent=27 // pred_fallthru
        _
      // Predicated region
      $region33: #{discriminator_forward.9} parent=27 // pred_check
        %p820 = pneg %p106
      $region34: #{discriminator_forward.9} parent=27 // pred_check_branch
        %822 = sbr.rel (%p820) target = $region36
      $region35: #{discriminator_forward.9} parent=27 // pred_region
        _
      $region36: #{discriminator_forward.9} parent=27 // pred_fallthru
        _
    $region28: #{discriminator_forward.9} parent=5 // pred_fallthru
      _
    %p823 = scmp.le.s32.totalorder 2, %s10
    // Predicated region
    $region37: #{discriminator_forward.9} parent=5 // pred_check
      %p824 = pneg %p823
    $region38: #{discriminator_forward.9} parent=5 // pred_check_branch
      %826 = sbr.rel (%p824) target = $region40
    $region39: #{discriminator_forward.9} parent=5 // pred_region
      %s827 = ssub.s32 %s10, 2
      // Predicated region
      $region41: #{discriminator_forward.9} parent=39 // pred_check
        %p828 = pneg %p86
      $region42: #{discriminator_forward.9} parent=39 // pred_check_branch
        %830 = sbr.rel (%p828) target = $region44
      $region43: #{discriminator_forward.9} parent=39 // pred_region
        %s831 = smul.u32 32, %s16
        %p832 = scmp.lt.s32.totalorder %s831, 63
        %s833 = scalar_select %p832, %s831, 63
        %s834 = smul.addr %s833, 4
        %s835 = scalar_lea.vmem %s2, %s834
      $region44: #{discriminator_forward.9} parent=39 // pred_fallthru
        _
      // Predicated region
      $region45: #{discriminator_forward.9} parent=39 // pred_check
        %p836 = pneg %p112
      $region46: #{discriminator_forward.9} parent=39 // pred_check_branch
        %838 = sbr.rel (%p836) target = $region48
      $region47: #{discriminator_forward.9} parent=39 // pred_region
        %p839 = scmp.lt.s32.totalorder %s16, 1
        %s840 = scalar_select %p839, %s16, 1
        %s841 = smul.addr %s840, 2
        %s842 = scalar_lea.vmem %s3, %s841
      $region48: #{discriminator_forward.9} parent=39 // pred_fallthru
        _
    $region40: #{discriminator_forward.9} parent=5 // pred_fallthru
      _
  $region6: #{discriminator_forward.9} parent=0 // loop_footer
    %s14 = sadd.s32 1, %s10
  $region7: #{discriminator_forward.9} parent=0 // loop_footer_branch
    %9 = sbr.rel target = $region3
  $region8: #{discriminator_forward.9} parent=0 // loop_exit
    _

// kernel: discriminator_forward.10
$region0: #{discriminator_forward.10}
  #allocation0 [shape = 'u32[]', space=smem, size = 0x4, offset = 0x4, fixed_abs, tag = 'smem constant byte address 0x4 - core index']
  #allocation1 [shape = 'u32[144,128]{1,0:T(1,128)}', space=vmem, size = 0x12000, scoped, tag = 'internal scratch']
  %s0 = inlined_call_operand.vmem [shape: bf16[512,128], index: 0, kind: input, shape index: {}]
  %s1 = inlined_call_operand.vmem [shape: f32[1,128], index: 1, kind: input, shape index: {}]
  %s2 = inlined_call_operand.vmem [shape: f32[1,128], index: 2, kind: input, shape index: {}]
  %s3 = inlined_call_operand.vmem [shape: bf16[512,128], index: 3, kind: output, shape index: {}]
  %s4 = sld [smem:[#allocation0]]
  $region45: #{discriminator_forward.10} parent=0
    _
  %s6 = ssub.s32 1, %s4
  %s7 = scalar_select 0, %s6, %s4
  loop: start=0, step=1, limit=4
  $region2: #{discriminator_forward.10} parent=0 // loop_pre_header
    _
  $region3: #{discriminator_forward.10} parent=0 // loop_header
    %s9 = sphi 0, %s13
    %p10 = scmp.ge.s32.totalorder %s9, 4
    %s19 = sphi 0, %s21
    %s22 = sphi 0, %s19
    %s23 = sphi 0, %s22
    %s39 = sphi 0, %s23
    %s43 = sphi 0, %s43
    %s45 = sphi 0, %s43
    %s46 = sphi 0, %s45
    %s60 = sphi 0, %s46
    %s64 = sphi 0, %s64
    %s66 = sphi 0, %s64
    %s67 = sphi 0, %s66
    %s81 = sphi 0, %s67
    %s87 = sphi 0, %s89
    %s90 = sphi 0, %s87
    %s91 = sphi 0, %s90
    %s107 = sphi 0, %s91
  $region4: #{discriminator_forward.10} parent=0 // loop_header_branch
    %12 = sbr.rel (%p10) target = $region8
  $region5: #{discriminator_forward.10} parent=0 // loop_body
    %s14 = ssub.s32 %s9, 1
    %s15 = ssub.s32 %s9, 2
    %s16 = sadd.s32 %s9, 1
    %s17 = ssub.s32 %s9, %s16
    %p18 = scmp.eq.s32.totalorder %s17, 0
    %s20 = sadd.s32 %s19, 1
    %s21 = scalar_select %p18, %s19, %s20
    %p24 = pneg %p18
    %p25 = scmp.eq.s32.totalorder %s9, 1
    %p26 = por %p24, %p25
    %p27 = scmp.ne.s32.totalorder %s19, %s22
    %p28 = scmp.eq.s32.totalorder %s9, 0
    %p29 = por %p27, %p28
    %p30 = scmp.ne.s32.totalorder %s19, %s22
    %p31 = scmp.eq.s32.totalorder %s14, 1
    %p32 = por %p30, %p31
    %p33 = scmp.ne.s32.totalorder %s22, %s23
    %p34 = scmp.eq.s32.totalorder %s14, 0
    %p35 = por %p33, %p34
    %p36 = scmp.ne.s32.totalorder %s22, %s23
    %p37 = scmp.eq.s32.totalorder %s15, 1
    %p38 = por %p36, %p37
    %p40 = scmp.ne.s32.totalorder %s23, %s39
    %p41 = scmp.eq.s32.totalorder %s15, 0
    %p42 = por %p40, %p41
    %s44 = sadd.s32 %s43, 1
    %p47 = scmp.eq.s32.totalorder %s9, 1
    %p48 = scmp.ne.s32.totalorder %s43, %s45
    %p49 = scmp.eq.s32.totalorder %s9, 0
    %p50 = por %p48, %p49
    %p51 = scmp.ne.s32.totalorder %s43, %s45
    %p52 = scmp.eq.s32.totalorder %s14, 1
    %p53 = por %p51, %p52
    %p54 = scmp.ne.s32.totalorder %s45, %s46
    %p55 = scmp.eq.s32.totalorder %s14, 0
    %p56 = por %p54, %p55
    %p57 = scmp.ne.s32.totalorder %s45, %s46
    %p58 = scmp.eq.s32.totalorder %s15, 1
    %p59 = por %p57, %p58
    %p61 = scmp.ne.s32.totalorder %s46, %s60
    %p62 = scmp.eq.s32.totalorder %s15, 0
    %p63 = por %p61, %p62
    %s65 = sadd.s32 %s64, 1
    %p68 = scmp.eq.s32.totalorder %s9, 1
    %p69 = scmp.ne.s32.totalorder %s64, %s66
    %p70 = scmp.eq.s32.totalorder %s9, 0
    %p71 = por %p69, %p70
    %p72 = scmp.ne.s32.totalorder %s64, %s66
    %p73 = scmp.eq.s32.totalorder %s14, 1
    %p74 = por %p72, %p73
    %p75 = scmp.ne.s32.totalorder %s66, %s67
    %p76 = scmp.eq.s32.totalorder %s14, 0
    %p77 = por %p75, %p76
    %p78 = scmp.ne.s32.totalorder %s66, %s67
    %p79 = scmp.eq.s32.totalorder %s15, 1
    %p80 = por %p78, %p79
    %p82 = scmp.ne.s32.totalorder %s67, %s81
    %p83 = scmp.eq.s32.totalorder %s15, 0
    %p84 = por %p82, %p83
    %s85 = ssub.s32 %s9, %s16
    %p86 = scmp.eq.s32.totalorder %s85, 0
    %s88 = sadd.s32 %s87, 1
    %s89 = scalar_select %p86, %s87, %s88
    %p92 = pneg %p86
    %p93 = scmp.eq.s32.totalorder %s9, 1
    %p94 = por %p92, %p93
    %p95 = scmp.ne.s32.totalorder %s87, %s90
    %p96 = scmp.eq.s32.totalorder %s9, 0
    %p97 = por %p95, %p96
    %p98 = scmp.ne.s32.totalorder %s87, %s90
    %p99 = scmp.eq.s32.totalorder %s14, 1
    %p100 = por %p98, %p99
    %p101 = scmp.ne.s32.totalorder %s90, %s91
    %p102 = scmp.eq.s32.totalorder %s14, 0
    %p103 = por %p101, %p102
    %p104 = scmp.ne.s32.totalorder %s90, %s91
    %p105 = scmp.eq.s32.totalorder %s15, 1
    %p106 = por %p104, %p105
    %p108 = scmp.ne.s32.totalorder %s91, %s107
    %p109 = scmp.eq.s32.totalorder %s15, 0
    %p110 = por %p108, %p109
    %p111 = scmp.le.s32.totalorder 1, %s9
    %p112 = scmp.lt.s32.totalorder %s9, 3
    %p113 = pnand %p111, %p112
    %p114 = pneg %p113
    // Predicated region
    $region9: #{discriminator_forward.10} parent=5 // pred_check
      _
    $region10: #{discriminator_forward.10} parent=5 // pred_check_branch
      %116 = sbr.rel (%p113) target = $region12
    $region11: #{discriminator_forward.10} parent=5 // pred_region
      %s117 = ssub.s32 %s9, 1
      // Predicated region
      $region13: #{discriminator_forward.10} parent=11 // pred_check
        %p118 = pneg %p56
      $region14: #{discriminator_forward.10} parent=11 // pred_check_branch
        %120 = sbr.rel (%p118) target = $region16
      $region15: #{discriminator_forward.10} parent=11 // pred_region
        _
      $region16: #{discriminator_forward.10} parent=11 // pred_fallthru
        _
      // Predicated region
      $region17: #{discriminator_forward.10} parent=11 // pred_check
        %p121 = pneg %p77
      $region18: #{discriminator_forward.10} parent=11 // pred_check_branch
        %123 = sbr.rel (%p121) target = $region20
      $region19: #{discriminator_forward.10} parent=11 // pred_region
        _
      $region20: #{discriminator_forward.10} parent=11 // pred_fallthru
        _
    $region12: #{discriminator_forward.10} parent=5 // pred_fallthru
      _
    %p124 = scmp.lt.s32.totalorder %s9, 2
    // Predicated region
    $region21: #{discriminator_forward.10} parent=5 // pred_check
      %p125 = pneg %p124
    $region22: #{discriminator_forward.10} parent=5 // pred_check_branch
      %127 = sbr.rel (%p125) target = $region24
    $region23: #{discriminator_forward.10} parent=5 // pred_region
      // Predicated region
      $region25: #{discriminator_forward.10} parent=23 // pred_check
        %p128 = pneg %p29
      $region26: #{discriminator_forward.10} parent=23 // pred_check_branch
        %130 = sbr.rel (%p128) target = $region28
      $region27: #{discriminator_forward.10} parent=23 // pred_region
        %s131 = smul.u32 32, %s9
        %p132 = scmp.lt.s32.totalorder %s131, 63
        %s133 = scalar_select %p132, %s131, 63
        %s134 = smul.addr %s133, 4
        %s135 = scalar_lea.vmem %s0, %s134
        %s136 = smul.u32 32, %s9
      $region28: #{discriminator_forward.10} parent=23 // pred_fallthru
        _
    $region24: #{discriminator_forward.10} parent=5 // pred_fallthru
      _
    %p137 = scmp.le.s32.totalorder 1, %s9
    %p138 = scmp.lt.s32.totalorder %s9, 3
    %p139 = pnand %p137, %p138
    %p140 = pneg %p139
    // Predicated region
    $region29: #{discriminator_forward.10} parent=5 // pred_check
      _
    $region30: #{discriminator_forward.10} parent=5 // pred_check_branch
      %142 = sbr.rel (%p139) target = $region32
    $region31: #{discriminator_forward.10} parent=5 // pred_region
      %s143 = ssub.s32 %s9, 1
      %s144 = smul.u32 32, %s14
      %p145 = scmp.lt.s32.totalorder %s144, 63
      %s146 = scalar_select %p145, %s144, 63
      %s147 = smul.addr %s146, 4
      %s148 = scalar_lea.vmem %s0, %s147
      %p149 = pneg %p35
      %p150 = pneg %p32
      %p151 = pneg %p56
      %p152 = pneg %p53
      %p153 = pneg %p77
      %p154 = pneg %p74
      %p155 = pneg %p103
      %p156 = pneg %p100
      %s157 = smul.u32 32, %s14
      %p158 = scmp.lt.s32.totalorder %s157, 63
      %s159 = scalar_select %p158, %s157, 63
      %s160 = smul.addr %s159, 4
      %s161 = scalar_lea.vmem %s3, %s160
      %s162 = smul.u32 32, %s14
      %p163 = scmp.lt.s32.totalorder %s162, 63
      %s164 = scalar_select %p163, %s162, 63
      %s165 = smul.addr %s164, 4
      %s166 = scalar_lea.vmem %s0, %s165
      %s167 = smul.u32 32, %s14
      %s168 = smul.u32 32, %s14
      %p169 = scmp.lt.s32.totalorder %s168, 63
      %s170 = scalar_select %p169, %s168, 63
      %s171 = smul.addr %s170, 4
      %s172 = scalar_lea.vmem %s3, %s171
      %s173 = smul.u32 32, %s14
      %v174 = vld [vmem:[%s166] sm:$0xf]
      %v175 = vld [vmem:[%s166 + $0x4] sm:$0xf]
      %v176 = vld [vmem:[%s166 + $0x8] sm:$0xf]
      %v177 = vld [vmem:[%s166 + $0xc] sm:$0xf]
      %v178 = vld [vmem:[%s166 + $0x10] sm:$0xf]
      %v179 = vld [vmem:[%s166 + $0x14] sm:$0xf]
      %v180 = vld [vmem:[%s166 + $0x18] sm:$0xf]
      %v181 = vld [vmem:[%s166 + $0x1c] sm:$0xf]
      %v182 = vld [vmem:[%s166 + $0x20] sm:$0xf]
      %v183 = vld [vmem:[%s166 + $0x24] sm:$0xf]
      %v184 = vld [vmem:[%s166 + $0x28] sm:$0xf]
      %v185 = vld [vmem:[%s166 + $0x2c] sm:$0xf]
      %v186 = vld [vmem:[%s166 + $0x30] sm:$0xf]
      %v187 = vld [vmem:[%s166 + $0x34] sm:$0xf]
      %v188 = vld [vmem:[%s166 + $0x38] sm:$0xf]
      %v189 = vld [vmem:[%s166 + $0x3c] sm:$0xf]
      %v190 = vld [vmem:[%s166 + $0x40] sm:$0xf]
      %v191 = vld [vmem:[%s166 + $0x44] sm:$0xf]
      %v192 = vld [vmem:[%s166 + $0x48] sm:$0xf]
      %v193 = vld [vmem:[%s166 + $0x4c] sm:$0xf]
      %v194 = vld [vmem:[%s166 + $0x50] sm:$0xf]
      %v195 = vld [vmem:[%s166 + $0x54] sm:$0xf]
      %v196 = vld [vmem:[%s166 + $0x58] sm:$0xf]
      %v197 = vld [vmem:[%s166 + $0x5c] sm:$0xf]
      %v198 = vld [vmem:[%s166 + $0x60] sm:$0xf]
      %v199 = vld [vmem:[%s166 + $0x64] sm:$0xf]
      %v200 = vld [vmem:[%s166 + $0x68] sm:$0xf]
      %v201 = vld [vmem:[%s166 + $0x6c] sm:$0xf]
      %v202 = vld [vmem:[%s166 + $0x70] sm:$0xf]
      %v203 = vld [vmem:[%s166 + $0x74] sm:$0xf]
      %v204 = vld [vmem:[%s166 + $0x78] sm:$0xf]
      %v205 = vld [vmem:[%s166 + $0x7c] sm:$0xf]
      %v206 = vunpack.c.l.bf16 %v174
      %v207 = vunpack.c.l.bf16 %v175
      %v208 = vunpack.c.l.bf16 %v176
      %v209 = vunpack.c.l.bf16 %v177
      %v210 = vunpack.c.l.bf16 %v178
      %v211 = vunpack.c.l.bf16 %v179
      %v212 = vunpack.c.l.bf16 %v180
      %v213 = vunpack.c.l.bf16 %v181
      %v214 = vunpack.c.l.bf16 %v182
      %v215 = vunpack.c.l.bf16 %v183
      %v216 = vunpack.c.l.bf16 %v184
      %v217 = vunpack.c.l.bf16 %v185
      %v218 = vunpack.c.l.bf16 %v186
      %v219 = vunpack.c.l.bf16 %v187
      %v220 = vunpack.c.l.bf16 %v188
      %v221 = vunpack.c.l.bf16 %v189
      %v222 = vunpack.c.l.bf16 %v190
      %v223 = vunpack.c.l.bf16 %v191
      %v224 = vunpack.c.l.bf16 %v192
      %v225 = vunpack.c.l.bf16 %v193
      %v226 = vunpack.c.l.bf16 %v194
      %v227 = vunpack.c.l.bf16 %v195
      %v228 = vunpack.c.l.bf16 %v196
      %v229 = vunpack.c.l.bf16 %v197
      %v230 = vunpack.c.l.bf16 %v198
      %v231 = vunpack.c.l.bf16 %v199
      %v232 = vunpack.c.l.bf16 %v200
      %v233 = vunpack.c.l.bf16 %v201
      %v234 = vunpack.c.l.bf16 %v202
      %v235 = vunpack.c.l.bf16 %v203
      %v236 = vunpack.c.l.bf16 %v204
      %v237 = vunpack.c.l.bf16 %v205
      %v238 = vld [vmem:[%s1] sm:$0x1]
      %v240 = vlaneseq
      %v241 = vshrl.u32 %v240, 7
      %v242 = vsub.s32 0, %v241
      %v243 = vrot.slane %v238, %v242
      %v245 = vmul.f32 %v206, %v243
      %v246 = vmul.f32 %v207, %v243
      %v247 = vmul.f32 %v208, %v243
      %v248 = vmul.f32 %v209, %v243
      %v249 = vmul.f32 %v210, %v243
      %v250 = vmul.f32 %v211, %v243
      %v251 = vmul.f32 %v212, %v243
      %v252 = vmul.f32 %v213, %v243
      %v253 = vmul.f32 %v214, %v243
      %v254 = vmul.f32 %v215, %v243
      %v255 = vmul.f32 %v216, %v243
      %v256 = vmul.f32 %v217, %v243
      %v257 = vmul.f32 %v218, %v243
      %v258 = vmul.f32 %v219, %v243
      %v259 = vmul.f32 %v220, %v243
      %v260 = vmul.f32 %v221, %v243
      %v261 = vmul.f32 %v222, %v243
      %v262 = vmul.f32 %v223, %v243
      %v263 = vmul.f32 %v224, %v243
      %v264 = vmul.f32 %v225, %v243
      %v265 = vmul.f32 %v226, %v243
      %v266 = vmul.f32 %v227, %v243
      %v267 = vmul.f32 %v228, %v243
      %v268 = vmul.f32 %v229, %v243
      %v269 = vmul.f32 %v230, %v243
      %v270 = vmul.f32 %v231, %v243
      %v271 = vmul.f32 %v232, %v243
      %v272 = vmul.f32 %v233, %v243
      %v273 = vmul.f32 %v234, %v243
      %v274 = vmul.f32 %v235, %v243
      %v275 = vmul.f32 %v236, %v243
      %v276 = vmul.f32 %v237, %v243
      %v277 = vld [vmem:[%s2] sm:$0x1]
      %v279 = vlaneseq
      %v280 = vshrl.u32 %v279, 7
      %v281 = vsub.s32 0, %v280
      %v282 = vrot.slane %v277, %v281
      %v284 = vadd.f32 %v245, %v282
      %v285 = vadd.f32 %v246, %v282
      %v286 = vadd.f32 %v247, %v282
      %v287 = vadd.f32 %v248, %v282
      %v288 = vadd.f32 %v249, %v282
      %v289 = vadd.f32 %v250, %v282
      %v290 = vadd.f32 %v251, %v282
      %v291 = vadd.f32 %v252, %v282
      %v292 = vadd.f32 %v253, %v282
      %v293 = vadd.f32 %v254, %v282
      %v294 = vadd.f32 %v255, %v282
      %v295 = vadd.f32 %v256, %v282
      %v296 = vadd.f32 %v257, %v282
      %v297 = vadd.f32 %v258, %v282
      %v298 = vadd.f32 %v259, %v282
      %v299 = vadd.f32 %v260, %v282
      %v300 = vadd.f32 %v261, %v282
      %v301 = vadd.f32 %v262, %v282
      %v302 = vadd.f32 %v263, %v282
      %v303 = vadd.f32 %v264, %v282
      %v304 = vadd.f32 %v265, %v282
      %v305 = vadd.f32 %v266, %v282
      %v306 = vadd.f32 %v267, %v282
      %v307 = vadd.f32 %v268, %v282
      %v308 = vadd.f32 %v269, %v282
      %v309 = vadd.f32 %v270, %v282
      %v310 = vadd.f32 %v271, %v282
      %v311 = vadd.f32 %v272, %v282
      %v312 = vadd.f32 %v273, %v282
      %v313 = vadd.f32 %v274, %v282
      %v314 = vadd.f32 %v275, %v282
      %v315 = vadd.f32 %v276, %v282
      %vm316 = vcmp.gt.f32.partialorder %v284, 0.0
      %vm317 = vcmp.gt.f32.partialorder %v285, 0.0
      %vm318 = vcmp.gt.f32.partialorder %v286, 0.0
      %vm319 = vcmp.gt.f32.partialorder %v287, 0.0
      %vm320 = vcmp.gt.f32.partialorder %v288, 0.0
      %vm321 = vcmp.gt.f32.partialorder %v289, 0.0
      %vm322 = vcmp.gt.f32.partialorder %v290, 0.0
      %vm323 = vcmp.gt.f32.partialorder %v291, 0.0
      %vm324 = vcmp.gt.f32.partialorder %v292, 0.0
      %vm325 = vcmp.gt.f32.partialorder %v293, 0.0
      %vm326 = vcmp.gt.f32.partialorder %v294, 0.0
      %vm327 = vcmp.gt.f32.partialorder %v295, 0.0
      %vm328 = vcmp.gt.f32.partialorder %v296, 0.0
      %vm329 = vcmp.gt.f32.partialorder %v297, 0.0
      %vm330 = vcmp.gt.f32.partialorder %v298, 0.0
      %vm331 = vcmp.gt.f32.partialorder %v299, 0.0
      %vm332 = vcmp.gt.f32.partialorder %v300, 0.0
      %vm333 = vcmp.gt.f32.partialorder %v301, 0.0
      %vm334 = vcmp.gt.f32.partialorder %v302, 0.0
      %vm335 = vcmp.gt.f32.partialorder %v303, 0.0
      %vm336 = vcmp.gt.f32.partialorder %v304, 0.0
      %vm337 = vcmp.gt.f32.partialorder %v305, 0.0
      %vm338 = vcmp.gt.f32.partialorder %v306, 0.0
      %vm339 = vcmp.gt.f32.partialorder %v307, 0.0
      %vm340 = vcmp.gt.f32.partialorder %v308, 0.0
      %vm341 = vcmp.gt.f32.partialorder %v309, 0.0
      %vm342 = vcmp.gt.f32.partialorder %v310, 0.0
      %vm343 = vcmp.gt.f32.partialorder %v311, 0.0
      %vm344 = vcmp.gt.f32.partialorder %v312, 0.0
      %vm345 = vcmp.gt.f32.partialorder %v313, 0.0
      %vm346 = vcmp.gt.f32.partialorder %v314, 0.0
      %vm347 = vcmp.gt.f32.partialorder %v315, 0.0
      %v348 = vmul.f32 %v284, 0.2
      %v349 = vmul.f32 %v285, 0.2
      %v350 = vmul.f32 %v286, 0.2
      %v351 = vmul.f32 %v287, 0.2
      %v352 = vmul.f32 %v288, 0.2
      %v353 = vmul.f32 %v289, 0.2
      %v354 = vmul.f32 %v290, 0.2
      %v355 = vmul.f32 %v291, 0.2
      %v356 = vmul.f32 %v292, 0.2
      %v357 = vmul.f32 %v293, 0.2
      %v358 = vmul.f32 %v294, 0.2
      %v359 = vmul.f32 %v295, 0.2
      %v360 = vmul.f32 %v296, 0.2
      %v361 = vmul.f32 %v297, 0.2
      %v362 = vmul.f32 %v298, 0.2
      %v363 = vmul.f32 %v299, 0.2
      %v364 = vmul.f32 %v300, 0.2
      %v365 = vmul.f32 %v301, 0.2
      %v366 = vmul.f32 %v302, 0.2
      %v367 = vmul.f32 %v303, 0.2
      %v368 = vmul.f32 %v304, 0.2
      %v369 = vmul.f32 %v305, 0.2
      %v370 = vmul.f32 %v306, 0.2
      %v371 = vmul.f32 %v307, 0.2
      %v372 = vmul.f32 %v308, 0.2
      %v373 = vmul.f32 %v309, 0.2
      %v374 = vmul.f32 %v310, 0.2
      %v375 = vmul.f32 %v311, 0.2
      %v376 = vmul.f32 %v312, 0.2
      %v377 = vmul.f32 %v313, 0.2
      %v378 = vmul.f32 %v314, 0.2
      %v379 = vmul.f32 %v315, 0.2
      %v380 = vsel %vm316, %v284, %v348
      %v381 = vsel %vm317, %v285, %v349
      %v382 = vsel %vm318, %v286, %v350
      %v383 = vsel %vm319, %v287, %v351
      %v384 = vsel %vm320, %v288, %v352
      %v385 = vsel %vm321, %v289, %v353
      %v386 = vsel %vm322, %v290, %v354
      %v387 = vsel %vm323, %v291, %v355
      %v388 = vsel %vm324, %v292, %v356
      %v389 = vsel %vm325, %v293, %v357
      %v390 = vsel %vm326, %v294, %v358
      %v391 = vsel %vm327, %v295, %v359
      %v392 = vsel %vm328, %v296, %v360
      %v393 = vsel %vm329, %v297, %v361
      %v394 = vsel %vm330, %v298, %v362
      %v395 = vsel %vm331, %v299, %v363
      %v396 = vsel %vm332, %v300, %v364
      %v397 = vsel %vm333, %v301, %v365
      %v398 = vsel %vm334, %v302, %v366
      %v399 = vsel %vm335, %v303, %v367
      %v400 = vsel %vm336, %v304, %v368
      %v401 = vsel %vm337, %v305, %v369
      %v402 = vsel %vm338, %v306, %v370
      %v403 = vsel %vm339, %v307, %v371
      %v404 = vsel %vm340, %v308, %v372
      %v405 = vsel %vm341, %v309, %v373
      %v406 = vsel %vm342, %v310, %v374
      %v407 = vsel %vm343, %v311, %v375
      %v408 = vsel %vm344, %v312, %v376
      %v409 = vsel %vm345, %v313, %v377
      %v410 = vsel %vm346, %v314, %v378
      %v411 = vsel %vm347, %v315, %v379
      %v412 = vpack.c.bf16 %v381, %v380
      %v413 = vpack.c.bf16 %v383, %v382
      %v414 = vpack.c.bf16 %v385, %v384
      %v415 = vpack.c.bf16 %v387, %v386
      %v416 = vpack.c.bf16 %v389, %v388
      %v417 = vpack.c.bf16 %v391, %v390
      %v418 = vpack.c.bf16 %v393, %v392
      %v419 = vpack.c.bf16 %v395, %v394
      %v420 = vpack.c.bf16 %v397, %v396
      %v421 = vpack.c.bf16 %v399, %v398
      %v422 = vpack.c.bf16 %v401, %v400
      %v423 = vpack.c.bf16 %v403, %v402
      %v424 = vpack.c.bf16 %v405, %v404
      %v425 = vpack.c.bf16 %v407, %v406
      %v426 = vpack.c.bf16 %v409, %v408
      %v427 = vpack.c.bf16 %v411, %v410
      %v444 = vunpack.c.l.b16 %v412
      %v445 = vunpack.c.h.b16 %v412
      %v446 = vunpack.c.l.b16 %v413
      %v447 = vunpack.c.h.b16 %v413
      %v448 = vunpack.c.l.b16 %v414
      %v449 = vunpack.c.h.b16 %v414
      %v450 = vunpack.c.l.b16 %v415
      %v451 = vunpack.c.h.b16 %v415
      %v452 = vunpack.c.l.b16 %v416
      %v453 = vunpack.c.h.b16 %v416
      %v454 = vunpack.c.l.b16 %v417
      %v455 = vunpack.c.h.b16 %v417
      %v456 = vunpack.c.l.b16 %v418
      %v457 = vunpack.c.h.b16 %v418
      %v458 = vunpack.c.l.b16 %v419
      %v459 = vunpack.c.h.b16 %v419
      %v460 = vunpack.c.l.b16 %v420
      %v461 = vunpack.c.h.b16 %v420
      %v462 = vunpack.c.l.b16 %v421
      %v463 = vunpack.c.h.b16 %v421
      %v464 = vunpack.c.l.b16 %v422
      %v465 = vunpack.c.h.b16 %v422
      %v466 = vunpack.c.l.b16 %v423
      %v467 = vunpack.c.h.b16 %v423
      %v468 = vunpack.c.l.b16 %v424
      %v469 = vunpack.c.h.b16 %v424
      %v470 = vunpack.c.l.b16 %v425
      %v471 = vunpack.c.h.b16 %v425
      %v472 = vunpack.c.l.b16 %v426
      %v473 = vunpack.c.h.b16 %v426
      %v474 = vunpack.c.l.b16 %v427
      %v475 = vunpack.c.h.b16 %v427
      %v476 = vpack.c.b16 %v444, %v444
      %v477 = vpack.c.b16 %v445, %v445
      %v478 = vpack.c.b16 %v446, %v446
      %v479 = vpack.c.b16 %v447, %v447
      %v480 = vpack.c.b16 %v448, %v448
      %v481 = vpack.c.b16 %v449, %v449
      %v482 = vpack.c.b16 %v450, %v450
      %v483 = vpack.c.b16 %v451, %v451
      %v484 = vpack.c.b16 %v452, %v452
      %v485 = vpack.c.b16 %v453, %v453
      %v486 = vpack.c.b16 %v454, %v454
      %v487 = vpack.c.b16 %v455, %v455
      %v488 = vpack.c.b16 %v456, %v456
      %v489 = vpack.c.b16 %v457, %v457
      %v490 = vpack.c.b16 %v458, %v458
      %v491 = vpack.c.b16 %v459, %v459
      %v492 = vpack.c.b16 %v460, %v460
      %v493 = vpack.c.b16 %v461, %v461
      %v494 = vpack.c.b16 %v462, %v462
      %v495 = vpack.c.b16 %v463, %v463
      %v496 = vpack.c.b16 %v464, %v464
      %v497 = vpack.c.b16 %v465, %v465
      %v498 = vpack.c.b16 %v466, %v466
      %v499 = vpack.c.b16 %v467, %v467
      %v500 = vpack.c.b16 %v468, %v468
      %v501 = vpack.c.b16 %v469, %v469
      %v502 = vpack.c.b16 %v470, %v470
      %v503 = vpack.c.b16 %v471, %v471
      %v504 = vpack.c.b16 %v472, %v472
      %v505 = vpack.c.b16 %v473, %v473
      %v506 = vpack.c.b16 %v474, %v474
      %v507 = vpack.c.b16 %v475, %v475
      %540 = vst [vmem:[%s172] sm:$0xf] %v476
      %541 = vst [vmem:[%s172 + $0x4] sm:$0xf] %v477
      %542 = vst [vmem:[%s172 + $0x8] sm:$0xf] %v478
      %543 = vst [vmem:[%s172 + $0xc] sm:$0xf] %v479
      %544 = vst [vmem:[%s172 + $0x10] sm:$0xf] %v480
      %545 = vst [vmem:[%s172 + $0x14] sm:$0xf] %v481
      %546 = vst [vmem:[%s172 + $0x18] sm:$0xf] %v482
      %547 = vst [vmem:[%s172 + $0x1c] sm:$0xf] %v483
      %548 = vst [vmem:[%s172 + $0x20] sm:$0xf] %v484
      %549 = vst [vmem:[%s172 + $0x24] sm:$0xf] %v485
      %550 = vst [vmem:[%s172 + $0x28] sm:$0xf] %v486
      %551 = vst [vmem:[%s172 + $0x2c] sm:$0xf] %v487
      %552 = vst [vmem:[%s172 + $0x30] sm:$0xf] %v488
      %553 = vst [vmem:[%s172 + $0x34] sm:$0xf] %v489
      %554 = vst [vmem:[%s172 + $0x38] sm:$0xf] %v490
      %555 = vst [vmem:[%s172 + $0x3c] sm:$0xf] %v491
      %556 = vst [vmem:[%s172 + $0x40] sm:$0xf] %v492
      %557 = vst [vmem:[%s172 + $0x44] sm:$0xf] %v493
      %558 = vst [vmem:[%s172 + $0x48] sm:$0xf] %v494
      %559 = vst [vmem:[%s172 + $0x4c] sm:$0xf] %v495
      %560 = vst [vmem:[%s172 + $0x50] sm:$0xf] %v496
      %561 = vst [vmem:[%s172 + $0x54] sm:$0xf] %v497
      %562 = vst [vmem:[%s172 + $0x58] sm:$0xf] %v498
      %563 = vst [vmem:[%s172 + $0x5c] sm:$0xf] %v499
      %564 = vst [vmem:[%s172 + $0x60] sm:$0xf] %v500
      %565 = vst [vmem:[%s172 + $0x64] sm:$0xf] %v501
      %566 = vst [vmem:[%s172 + $0x68] sm:$0xf] %v502
      %567 = vst [vmem:[%s172 + $0x6c] sm:$0xf] %v503
      %568 = vst [vmem:[%s172 + $0x70] sm:$0xf] %v504
      %569 = vst [vmem:[%s172 + $0x74] sm:$0xf] %v505
      %570 = vst [vmem:[%s172 + $0x78] sm:$0xf] %v506
      %571 = vst [vmem:[%s172 + $0x7c] sm:$0xf] %v507
      %s572 = smul.u32 32, %s14
      %p573 = scmp.lt.s32.totalorder %s572, 63
      %s574 = scalar_select %p573, %s572, 63
      %s575 = smul.addr %s574, 4
      %s576 = scalar_lea.vmem %s3, %s575
      // Predicated region
      $region33: #{discriminator_forward.10} parent=31 // pred_check
        %p577 = pneg %p100
      $region34: #{discriminator_forward.10} parent=31 // pred_check_branch
        %579 = sbr.rel (%p577) target = $region36
      $region35: #{discriminator_forward.10} parent=31 // pred_region
        %s580 = smul.u32 32, %s14
      $region36: #{discriminator_forward.10} parent=31 // pred_fallthru
        _
    $region32: #{discriminator_forward.10} parent=5 // pred_fallthru
      _
    %p581 = scmp.le.s32.totalorder 2, %s9
    // Predicated region
    $region37: #{discriminator_forward.10} parent=5 // pred_check
      %p582 = pneg %p581
    $region38: #{discriminator_forward.10} parent=5 // pred_check_branch
      %584 = sbr.rel (%p582) target = $region40
    $region39: #{discriminator_forward.10} parent=5 // pred_region
      %s585 = ssub.s32 %s9, 2
      // Predicated region
      $region41: #{discriminator_forward.10} parent=39 // pred_check
        %p586 = pneg %p106
      $region42: #{discriminator_forward.10} parent=39 // pred_check_branch
        %588 = sbr.rel (%p586) target = $region44
      $region43: #{discriminator_forward.10} parent=39 // pred_region
        %s589 = smul.u32 32, %s15
        %p590 = scmp.lt.s32.totalorder %s589, 63
        %s591 = scalar_select %p590, %s589, 63
        %s592 = smul.addr %s591, 4
        %s593 = scalar_lea.vmem %s3, %s592
      $region44: #{discriminator_forward.10} parent=39 // pred_fallthru
        _
    $region40: #{discriminator_forward.10} parent=5 // pred_fallthru
      _
  $region6: #{discriminator_forward.10} parent=0 // loop_footer
    %s13 = sadd.s32 1, %s9
  $region7: #{discriminator_forward.10} parent=0 // loop_footer_branch
    %8 = sbr.rel target = $region3
  $region8: #{discriminator_forward.10} parent=0 // loop_exit
    _

// kernel: discriminator_forward.12
$region0: #{discriminator_forward.12}
  #allocation0 [shape = 'u32[]', space=smem, size = 0x4, offset = 0x4, fixed_abs, tag = 'smem constant byte address 0x4 - core index']
  #allocation1 [shape = 'u32[144,128]{1,0:T(1,128)}', space=vmem, size = 0x12000, scoped, tag = 'internal scratch']
  %s0 = inlined_call_operand.vmem [shape: bf16[128,128], index: 0, kind: input, shape index: {}]
  %s1 = inlined_call_operand.vmem [shape: f32[1,128], index: 1, kind: input, shape index: {}]
  %s2 = inlined_call_operand.vmem [shape: f32[1,128], index: 2, kind: input, shape index: {}]
  %s3 = inlined_call_operand.vmem [shape: bf16[128,128], index: 3, kind: output, shape index: {}]
  %s4 = sld [smem:[#allocation0]]
  $region22: #{discriminator_forward.12} parent=0
    _
  %s6 = ssub.s32 1, %s4
  %s7 = scalar_select 0, %s6, %s4
  // Predicated region
  $region2: #{discriminator_forward.12} parent=0 // pred_check
    _
  $region3: #{discriminator_forward.12} parent=0 // pred_check_branch
    %9 = sbr.rel (0) target = $region5
  $region4: #{discriminator_forward.12} parent=0 // pred_region
    _
  $region5: #{discriminator_forward.12} parent=0 // pred_fallthru
    _
  // Predicated region
  $region6: #{discriminator_forward.12} parent=0 // pred_check
    _
  $region7: #{discriminator_forward.12} parent=0 // pred_check_branch
    %11 = sbr.rel (0) target = $region9
  $region8: #{discriminator_forward.12} parent=0 // pred_region
    _
  $region9: #{discriminator_forward.12} parent=0 // pred_fallthru
    _
  // Predicated region
  $region10: #{discriminator_forward.12} parent=0 // pred_check
    _
  $region11: #{discriminator_forward.12} parent=0 // pred_check_branch
    %13 = sbr.rel (0) target = $region13
  $region12: #{discriminator_forward.12} parent=0 // pred_region
    _
  $region13: #{discriminator_forward.12} parent=0 // pred_fallthru
    _
  %v14 = vld [vmem:[%s0] sm:$0xf]
  %v15 = vld [vmem:[%s0 + $0x4] sm:$0xf]
  %v16 = vld [vmem:[%s0 + $0x8] sm:$0xf]
  %v17 = vld [vmem:[%s0 + $0xc] sm:$0xf]
  %v18 = vld [vmem:[%s0 + $0x10] sm:$0xf]
  %v19 = vld [vmem:[%s0 + $0x14] sm:$0xf]
  %v20 = vld [vmem:[%s0 + $0x18] sm:$0xf]
  %v21 = vld [vmem:[%s0 + $0x1c] sm:$0xf]
  %v22 = vld [vmem:[%s0 + $0x20] sm:$0xf]
  %v23 = vld [vmem:[%s0 + $0x24] sm:$0xf]
  %v24 = vld [vmem:[%s0 + $0x28] sm:$0xf]
  %v25 = vld [vmem:[%s0 + $0x2c] sm:$0xf]
  %v26 = vld [vmem:[%s0 + $0x30] sm:$0xf]
  %v27 = vld [vmem:[%s0 + $0x34] sm:$0xf]
  %v28 = vld [vmem:[%s0 + $0x38] sm:$0xf]
  %v29 = vld [vmem:[%s0 + $0x3c] sm:$0xf]
  %v30 = vunpack.c.l.bf16 %v14
  %v31 = vunpack.c.l.bf16 %v15
  %v32 = vunpack.c.l.bf16 %v16
  %v33 = vunpack.c.l.bf16 %v17
  %v34 = vunpack.c.l.bf16 %v18
  %v35 = vunpack.c.l.bf16 %v19
  %v36 = vunpack.c.l.bf16 %v20
  %v37 = vunpack.c.l.bf16 %v21
  %v38 = vunpack.c.l.bf16 %v22
  %v39 = vunpack.c.l.bf16 %v23
  %v40 = vunpack.c.l.bf16 %v24
  %v41 = vunpack.c.l.bf16 %v25
  %v42 = vunpack.c.l.bf16 %v26
  %v43 = vunpack.c.l.bf16 %v27
  %v44 = vunpack.c.l.bf16 %v28
  %v45 = vunpack.c.l.bf16 %v29
  %v46 = vld [vmem:[%s1] sm:$0x1]
  %v48 = vlaneseq
  %v49 = vshrl.u32 %v48, 7
  %v50 = vsub.s32 0, %v49
  %v51 = vrot.slane %v46, %v50
  %v53 = vmul.f32 %v30, %v51
  %v54 = vmul.f32 %v31, %v51
  %v55 = vmul.f32 %v32, %v51
  %v56 = vmul.f32 %v33, %v51
  %v57 = vmul.f32 %v34, %v51
  %v58 = vmul.f32 %v35, %v51
  %v59 = vmul.f32 %v36, %v51
  %v60 = vmul.f32 %v37, %v51
  %v61 = vmul.f32 %v38, %v51
  %v62 = vmul.f32 %v39, %v51
  %v63 = vmul.f32 %v40, %v51
  %v64 = vmul.f32 %v41, %v51
  %v65 = vmul.f32 %v42, %v51
  %v66 = vmul.f32 %v43, %v51
  %v67 = vmul.f32 %v44, %v51
  %v68 = vmul.f32 %v45, %v51
  %v69 = vld [vmem:[%s2] sm:$0x1]
  %v71 = vlaneseq
  %v72 = vshrl.u32 %v71, 7
  %v73 = vsub.s32 0, %v72
  %v74 = vrot.slane %v69, %v73
  %v76 = vadd.f32 %v53, %v74
  %v77 = vadd.f32 %v54, %v74
  %v78 = vadd.f32 %v55, %v74
  %v79 = vadd.f32 %v56, %v74
  %v80 = vadd.f32 %v57, %v74
  %v81 = vadd.f32 %v58, %v74
  %v82 = vadd.f32 %v59, %v74
  %v83 = vadd.f32 %v60, %v74
  %v84 = vadd.f32 %v61, %v74
  %v85 = vadd.f32 %v62, %v74
  %v86 = vadd.f32 %v63, %v74
  %v87 = vadd.f32 %v64, %v74
  %v88 = vadd.f32 %v65, %v74
  %v89 = vadd.f32 %v66, %v74
  %v90 = vadd.f32 %v67, %v74
  %v91 = vadd.f32 %v68, %v74
  %vm92 = vcmp.gt.f32.partialorder %v76, 0.0
  %vm93 = vcmp.gt.f32.partialorder %v77, 0.0
  %vm94 = vcmp.gt.f32.partialorder %v78, 0.0
  %vm95 = vcmp.gt.f32.partialorder %v79, 0.0
  %vm96 = vcmp.gt.f32.partialorder %v80, 0.0
  %vm97 = vcmp.gt.f32.partialorder %v81, 0.0
  %vm98 = vcmp.gt.f32.partialorder %v82, 0.0
  %vm99 = vcmp.gt.f32.partialorder %v83, 0.0
  %vm100 = vcmp.gt.f32.partialorder %v84, 0.0
  %vm101 = vcmp.gt.f32.partialorder %v85, 0.0
  %vm102 = vcmp.gt.f32.partialorder %v86, 0.0
  %vm103 = vcmp.gt.f32.partialorder %v87, 0.0
  %vm104 = vcmp.gt.f32.partialorder %v88, 0.0
  %vm105 = vcmp.gt.f32.partialorder %v89, 0.0
  %vm106 = vcmp.gt.f32.partialorder %v90, 0.0
  %vm107 = vcmp.gt.f32.partialorder %v91, 0.0
  %v108 = vmul.f32 %v76, 0.2
  %v109 = vmul.f32 %v77, 0.2
  %v110 = vmul.f32 %v78, 0.2
  %v111 = vmul.f32 %v79, 0.2
  %v112 = vmul.f32 %v80, 0.2
  %v113 = vmul.f32 %v81, 0.2
  %v114 = vmul.f32 %v82, 0.2
  %v115 = vmul.f32 %v83, 0.2
  %v116 = vmul.f32 %v84, 0.2
  %v117 = vmul.f32 %v85, 0.2
  %v118 = vmul.f32 %v86, 0.2
  %v119 = vmul.f32 %v87, 0.2
  %v120 = vmul.f32 %v88, 0.2
  %v121 = vmul.f32 %v89, 0.2
  %v122 = vmul.f32 %v90, 0.2
  %v123 = vmul.f32 %v91, 0.2
  %v124 = vsel %vm92, %v76, %v108
  %v125 = vsel %vm93, %v77, %v109
  %v126 = vsel %vm94, %v78, %v110
  %v127 = vsel %vm95, %v79, %v111
  %v128 = vsel %vm96, %v80, %v112
  %v129 = vsel %vm97, %v81, %v113
  %v130 = vsel %vm98, %v82, %v114
  %v131 = vsel %vm99, %v83, %v115
  %v132 = vsel %vm100, %v84, %v116
  %v133 = vsel %vm101, %v85, %v117
  %v134 = vsel %vm102, %v86, %v118
  %v135 = vsel %vm103, %v87, %v119
  %v136 = vsel %vm104, %v88, %v120
  %v137 = vsel %vm105, %v89, %v121
  %v138 = vsel %vm106, %v90, %v122
  %v139 = vsel %vm107, %v91, %v123
  %v140 = vpack.c.bf16 %v125, %v124
  %v141 = vpack.c.bf16 %v127, %v126
  %v142 = vpack.c.bf16 %v129, %v128
  %v143 = vpack.c.bf16 %v131, %v130
  %v144 = vpack.c.bf16 %v133, %v132
  %v145 = vpack.c.bf16 %v135, %v134
  %v146 = vpack.c.bf16 %v137, %v136
  %v147 = vpack.c.bf16 %v139, %v138
  %v156 = vunpack.c.l.b16 %v140
  %v157 = vunpack.c.h.b16 %v140
  %v158 = vunpack.c.l.b16 %v141
  %v159 = vunpack.c.h.b16 %v141
  %v160 = vunpack.c.l.b16 %v142
  %v161 = vunpack.c.h.b16 %v142
  %v162 = vunpack.c.l.b16 %v143
  %v163 = vunpack.c.h.b16 %v143
  %v164 = vunpack.c.l.b16 %v144
  %v165 = vunpack.c.h.b16 %v144
  %v166 = vunpack.c.l.b16 %v145
  %v167 = vunpack.c.h.b16 %v145
  %v168 = vunpack.c.l.b16 %v146
  %v169 = vunpack.c.h.b16 %v146
  %v170 = vunpack.c.l.b16 %v147
  %v171 = vunpack.c.h.b16 %v147
  %v172 = vpack.c.b16 %v156, %v156
  %v173 = vpack.c.b16 %v157, %v157
  %v174 = vpack.c.b16 %v158, %v158
  %v175 = vpack.c.b16 %v159, %v159
  %v176 = vpack.c.b16 %v160, %v160
  %v177 = vpack.c.b16 %v161, %v161
  %v178 = vpack.c.b16 %v162, %v162
  %v179 = vpack.c.b16 %v163, %v163
  %v180 = vpack.c.b16 %v164, %v164
  %v181 = vpack.c.b16 %v165, %v165
  %v182 = vpack.c.b16 %v166, %v166
  %v183 = vpack.c.b16 %v167, %v167
  %v184 = vpack.c.b16 %v168, %v168
  %v185 = vpack.c.b16 %v169, %v169
  %v186 = vpack.c.b16 %v170, %v170
  %v187 = vpack.c.b16 %v171, %v171
  %204 = vst [vmem:[%s3] sm:$0xf] %v172
  %205 = vst [vmem:[%s3 + $0x4] sm:$0xf] %v173
  %206 = vst [vmem:[%s3 + $0x8] sm:$0xf] %v174
  %207 = vst [vmem:[%s3 + $0xc] sm:$0xf] %v175
  %208 = vst [vmem:[%s3 + $0x10] sm:$0xf] %v176
  %209 = vst [vmem:[%s3 + $0x14] sm:$0xf] %v177
  %210 = vst [vmem:[%s3 + $0x18] sm:$0xf] %v178
  %211 = vst [vmem:[%s3 + $0x1c] sm:$0xf] %v179
  %212 = vst [vmem:[%s3 + $0x20] sm:$0xf] %v180
  %213 = vst [vmem:[%s3 + $0x24] sm:$0xf] %v181
  %214 = vst [vmem:[%s3 + $0x28] sm:$0xf] %v182
  %215 = vst [vmem:[%s3 + $0x2c] sm:$0xf] %v183
  %216 = vst [vmem:[%s3 + $0x30] sm:$0xf] %v184
  %217 = vst [vmem:[%s3 + $0x34] sm:$0xf] %v185
  %218 = vst [vmem:[%s3 + $0x38] sm:$0xf] %v186
  %219 = vst [vmem:[%s3 + $0x3c] sm:$0xf] %v187
  // Predicated region
  $region14: #{discriminator_forward.12} parent=0 // pred_check
    _
  $region15: #{discriminator_forward.12} parent=0 // pred_check_branch
    %221 = sbr.rel (0) target = $region17
  $region16: #{discriminator_forward.12} parent=0 // pred_region
    _
  $region17: #{discriminator_forward.12} parent=0 // pred_fallthru
    _
  // Predicated region
  $region18: #{discriminator_forward.12} parent=0 // pred_check
    _
  $region19: #{discriminator_forward.12} parent=0 // pred_check_branch
    %223 = sbr.rel (0) target = $region21
  $region20: #{discriminator_forward.12} parent=0 // pred_region
    _
  $region21: #{discriminator_forward.12} parent=0 // pred_fallthru
    _

// kernel: discriminator_forward.11
$region0: #{discriminator_forward.11}
  #allocation0 [shape = 'u32[]', space=smem, size = 0x4, offset = 0x4, fixed_abs, tag = 'smem constant byte address 0x4 - core index']
  #allocation1 [shape = 'u32[144,128]{1,0:T(1,128)}', space=vmem, size = 0x12000, scoped, tag = 'internal scratch']
  %s0 = inlined_call_operand.vmem [shape: bf16[128,256], index: 0, kind: input, shape index: {}]
  %s1 = inlined_call_operand.vmem [shape: bf16[256,128], index: 1, kind: input, shape index: {}]
  %s2 = inlined_call_operand.vmem [shape: bf16[128,128], index: 2, kind: output, shape index: {0}]
  %s3 = inlined_call_operand.vmem [shape: f32[1,2,128], index: 3, kind: output, shape index: {1}]
  %4 = xla_tuple %s2, %s3
  %s5 = sld [smem:[#allocation0]]
  $region26: #{discriminator_forward.11} parent=0
    _
  %s7 = ssub.s32 1, %s5
  %s8 = scalar_select 0, %s7, %s5
  // Predicated region
  $region2: #{discriminator_forward.11} parent=0 // pred_check
    _
  $region3: #{discriminator_forward.11} parent=0 // pred_check_branch
    %10 = sbr.rel (0) target = $region5
  $region4: #{discriminator_forward.11} parent=0 // pred_region
    _
  $region5: #{discriminator_forward.11} parent=0 // pred_fallthru
    _
  // Predicated region
  $region6: #{discriminator_forward.11} parent=0 // pred_check
    _
  $region7: #{discriminator_forward.11} parent=0 // pred_check_branch
    %12 = sbr.rel (0) target = $region9
  $region8: #{discriminator_forward.11} parent=0 // pred_region
    _
  $region9: #{discriminator_forward.11} parent=0 // pred_fallthru
    _
  %v14 = vld [vmem:[%s0] sm:$0xff]
  %v15 = vld [vmem:[%s0 + $0x8] sm:$0xff]
  %v16 = vld [vmem:[%s0 + $0x10] sm:$0xff]
  %v17 = vld [vmem:[%s0 + $0x18] sm:$0xff]
  %v18 = vld [vmem:[%s0 + $0x20] sm:$0xff]
  %v19 = vld [vmem:[%s0 + $0x28] sm:$0xff]
  %v20 = vld [vmem:[%s0 + $0x30] sm:$0xff]
  %v21 = vld [vmem:[%s0 + $0x38] sm:$0xff]
  %v22 = vld [vmem:[%s0 + $0x40] sm:$0xff]
  %v23 = vld [vmem:[%s0 + $0x48] sm:$0xff]
  %v24 = vld [vmem:[%s0 + $0x50] sm:$0xff]
  %v25 = vld [vmem:[%s0 + $0x58] sm:$0xff]
  %v26 = vld [vmem:[%s0 + $0x60] sm:$0xff]
  %v27 = vld [vmem:[%s0 + $0x68] sm:$0xff]
  %v28 = vld [vmem:[%s0 + $0x70] sm:$0xff]
  %v29 = vld [vmem:[%s0 + $0x78] sm:$0xff]
  %v30 = vld [vmem:[%s1] sm:$0xf]
  %v31 = vld [vmem:[%s1 + $0x4] sm:$0xf]
  %v32 = vld [vmem:[%s1 + $0x8] sm:$0xf]
  %v33 = vld [vmem:[%s1 + $0xc] sm:$0xf]
  %v34 = vld [vmem:[%s1 + $0x10] sm:$0xf]
  %v35 = vld [vmem:[%s1 + $0x14] sm:$0xf]
  %v36 = vld [vmem:[%s1 + $0x18] sm:$0xf]
  %v37 = vld [vmem:[%s1 + $0x1c] sm:$0xf]
  %v38 = vld [vmem:[%s1 + $0x20] sm:$0xf]
  %v39 = vld [vmem:[%s1 + $0x24] sm:$0xf]
  %v40 = vld [vmem:[%s1 + $0x28] sm:$0xf]
  %v41 = vld [vmem:[%s1 + $0x2c] sm:$0xf]
  %v42 = vld [vmem:[%s1 + $0x30] sm:$0xf]
  %v43 = vld [vmem:[%s1 + $0x34] sm:$0xf]
  %v44 = vld [vmem:[%s1 + $0x38] sm:$0xf]
  %v45 = vld [vmem:[%s1 + $0x3c] sm:$0xf]
  %v46 = vld [vmem:[%s1 + $0x40] sm:$0xf]
  %v47 = vld [vmem:[%s1 + $0x44] sm:$0xf]
  %v48 = vld [vmem:[%s1 + $0x48] sm:$0xf]
  %v49 = vld [vmem:[%s1 + $0x4c] sm:$0xf]
  %v50 = vld [vmem:[%s1 + $0x50] sm:$0xf]
  %v51 = vld [vmem:[%s1 + $0x54] sm:$0xf]
  %v52 = vld [vmem:[%s1 + $0x58] sm:$0xf]
  %v53 = vld [vmem:[%s1 + $0x5c] sm:$0xf]
  %v54 = vld [vmem:[%s1 + $0x60] sm:$0xf]
  %v55 = vld [vmem:[%s1 + $0x64] sm:$0xf]
  %v56 = vld [vmem:[%s1 + $0x68] sm:$0xf]
  %v57 = vld [vmem:[%s1 + $0x6c] sm:$0xf]
  %v58 = vld [vmem:[%s1 + $0x70] sm:$0xf]
  %v59 = vld [vmem:[%s1 + $0x74] sm:$0xf]
  %v60 = vld [vmem:[%s1 + $0x78] sm:$0xf]
  %v61 = vld [vmem:[%s1 + $0x7c] sm:$0xf]
  %v78 = vunpack.c.l.b16 %v14
  %v79 = vunpack.c.h.b16 %v14
  %v80 = vunpack.c.l.b16 %v15
  %v81 = vunpack.c.h.b16 %v15
  %v82 = vunpack.c.l.b16 %v16
  %v83 = vunpack.c.h.b16 %v16
  %v84 = vunpack.c.l.b16 %v17
  %v85 = vunpack.c.h.b16 %v17
  %v86 = vunpack.c.l.b16 %v18
  %v87 = vunpack.c.h.b16 %v18
  %v88 = vunpack.c.l.b16 %v19
  %v89 = vunpack.c.h.b16 %v19
  %v90 = vunpack.c.l.b16 %v20
  %v91 = vunpack.c.h.b16 %v20
  %v92 = vunpack.c.l.b16 %v21
  %v93 = vunpack.c.h.b16 %v21
  %v94 = vunpack.c.l.b16 %v22
  %v95 = vunpack.c.h.b16 %v22
  %v96 = vunpack.c.l.b16 %v23
  %v97 = vunpack.c.h.b16 %v23
  %v98 = vunpack.c.l.b16 %v24
  %v99 = vunpack.c.h.b16 %v24
  %v100 = vunpack.c.l.b16 %v25
  %v101 = vunpack.c.h.b16 %v25
  %v102 = vunpack.c.l.b16 %v26
  %v103 = vunpack.c.h.b16 %v26
  %v104 = vunpack.c.l.b16 %v27
  %v105 = vunpack.c.h.b16 %v27
  %v106 = vunpack.c.l.b16 %v28
  %v107 = vunpack.c.h.b16 %v28
  %v108 = vunpack.c.l.b16 %v29
  %v109 = vunpack.c.h.b16 %v29
  %v110 = vpack.c.b16 %v80, %v78
  %v111 = vpack.c.b16 %v81, %v79
  %v112 = vpack.c.b16 %v84, %v82
  %v113 = vpack.c.b16 %v85, %v83
  %v114 = vpack.c.b16 %v88, %v86
  %v115 = vpack.c.b16 %v89, %v87
  %v116 = vpack.c.b16 %v92, %v90
  %v117 = vpack.c.b16 %v93, %v91
  %v118 = vpack.c.b16 %v96, %v94
  %v119 = vpack.c.b16 %v97, %v95
  %v120 = vpack.c.b16 %v100, %v98
  %v121 = vpack.c.b16 %v101, %v99
  %v122 = vpack.c.b16 %v104, %v102
  %v123 = vpack.c.b16 %v105, %v103
  %v124 = vpack.c.b16 %v108, %v106
  %v125 = vpack.c.b16 %v109, %v107
  %v174 = vunpack.c.l.b16 %v30
  %v175 = vunpack.c.l.b16 %v31
  %v176 = vunpack.c.l.b16 %v32
  %v177 = vunpack.c.l.b16 %v33
  %v178 = vunpack.c.l.b16 %v34
  %v179 = vunpack.c.l.b16 %v35
  %v180 = vunpack.c.l.b16 %v36
  %v181 = vunpack.c.l.b16 %v37
  %v182 = vunpack.c.l.b16 %v38
  %v183 = vunpack.c.l.b16 %v39
  %v184 = vunpack.c.l.b16 %v40
  %v185 = vunpack.c.l.b16 %v41
  %v186 = vunpack.c.l.b16 %v42
  %v187 = vunpack.c.l.b16 %v43
  %v188 = vunpack.c.l.b16 %v44
  %v189 = vunpack.c.l.b16 %v45
  %v190 = vunpack.c.l.b16 %v46
  %v191 = vunpack.c.l.b16 %v47
  %v192 = vunpack.c.l.b16 %v48
  %v193 = vunpack.c.l.b16 %v49
  %v194 = vunpack.c.l.b16 %v50
  %v195 = vunpack.c.l.b16 %v51
  %v196 = vunpack.c.l.b16 %v52
  %v197 = vunpack.c.l.b16 %v53
  %v198 = vunpack.c.l.b16 %v54
  %v199 = vunpack.c.l.b16 %v55
  %v200 = vunpack.c.l.b16 %v56
  %v201 = vunpack.c.l.b16 %v57
  %v202 = vunpack.c.l.b16 %v58
  %v203 = vunpack.c.l.b16 %v59
  %v204 = vunpack.c.l.b16 %v60
  %v205 = vunpack.c.l.b16 %v61
  %v206 = vpack.c.b16 %v175, %v174
  %v207 = vpack.c.b16 %v177, %v176
  %v208 = vpack.c.b16 %v179, %v178
  %v209 = vpack.c.b16 %v181, %v180
  %v210 = vpack.c.b16 %v183, %v182
  %v211 = vpack.c.b16 %v185, %v184
  %v212 = vpack.c.b16 %v187, %v186
  %v213 = vpack.c.b16 %v189, %v188
  %v214 = vpack.c.b16 %v191, %v190
  %v215 = vpack.c.b16 %v193, %v192
  %v216 = vpack.c.b16 %v195, %v194
  %v217 = vpack.c.b16 %v197, %v196
  %v218 = vpack.c.b16 %v199, %v198
  %v219 = vpack.c.b16 %v201, %v200
  %v220 = vpack.c.b16 %v203, %v202
  %v221 = vpack.c.b16 %v205, %v204
  %238 = vmatprep.subr.bf16.mxu0 0
  %239 = vmatpush1.bf16.msra.mxu0 %v206
  %240 = vmatprep.subr.bf16.mxu0 0
  %241 = vmatpush1.bf16.msra.mxu0 %v207
  %242 = vmatprep.subr.bf16.mxu0 0
  %243 = vmatpush1.bf16.msra.mxu0 %v208
  %244 = vmatprep.subr.bf16.mxu0 0
  %245 = vmatpush1.bf16.msra.mxu0 %v209
  %246 = vmatprep.subr.bf16.mxu0 0
  %247 = vmatpush1.bf16.msra.mxu0 %v210
  %248 = vmatprep.subr.bf16.mxu0 0
  %249 = vmatpush1.bf16.msra.mxu0 %v211
  %250 = vmatprep.subr.bf16.mxu0 0
  %251 = vmatpush1.bf16.msra.mxu0 %v212
  %252 = vmatprep.subr.bf16.mxu0 0
  %253 = vmatpush1.bf16.msra.mxu0 %v213
  %254 = vmatprep.subr.bf16.mxu0 0
  %255 = vmatpush1.bf16.msra.mxu0 %v214
  %256 = vmatprep.subr.bf16.mxu0 0
  %257 = vmatpush1.bf16.msra.mxu0 %v215
  %258 = vmatprep.subr.bf16.mxu0 0
  %259 = vmatpush1.bf16.msra.mxu0 %v216
  %260 = vmatprep.subr.bf16.mxu0 0
  %261 = vmatpush1.bf16.msra.mxu0 %v217
  %262 = vmatprep.subr.bf16.mxu0 0
  %263 = vmatpush1.bf16.msra.mxu0 %v218
  %264 = vmatprep.subr.bf16.mxu0 0
  %265 = vmatpush1.bf16.msra.mxu0 %v219
  %266 = vmatprep.subr.bf16.mxu0 0
  %267 = vmatpush1.bf16.msra.mxu0 %v220
  %268 = vmatprep.subr.bf16.mxu0 0
  %269 = vmatpush1.bf16.msra.mxu0 %v221
  %270 = vmatprep.mubr.bf16.mxu0 %v111
  %271 = vmatmul.mubr.bf16.gmra.mrb[0].mxu0 %v110
  %v272 = vpop.f32.mrb[0].mxu0
  %v273 = vadd.f32 0.0, %v272
  %v274 = vpop.f32.mrb[0].mxu0
  %v275 = vpop.f32.mrb[0].mxu0
  %v276 = vadd.f32 0.0, %v275
  %v277 = vpop.f32.mrb[0].mxu0
  %278 = vmatprep.mubr.bf16.mxu0 %v113
  %279 = vmatmul.mubr.bf16.gmra.mrb[0].mxu0 %v112
  %v280 = vpop.f32.mrb[0].mxu0
  %v281 = vadd.f32 0.0, %v280
  %v282 = vpop.f32.mrb[0].mxu0
  %v283 = vpop.f32.mrb[0].mxu0
  %v284 = vadd.f32 0.0, %v283
  %v285 = vpop.f32.mrb[0].mxu0
  %286 = vmatprep.mubr.bf16.mxu0 %v115
  %287 = vmatmul.mubr.bf16.gmra.mrb[0].mxu0 %v114
  %v288 = vpop.f32.mrb[0].mxu0
  %v289 = vadd.f32 0.0, %v288
  %v290 = vpop.f32.mrb[0].mxu0
  %v291 = vpop.f32.mrb[0].mxu0
  %v292 = vadd.f32 0.0, %v291
  %v293 = vpop.f32.mrb[0].mxu0
  %294 = vmatprep.mubr.bf16.mxu0 %v117
  %295 = vmatmul.mubr.bf16.gmra.mrb[0].mxu0 %v116
  %v296 = vpop.f32.mrb[0].mxu0
  %v297 = vadd.f32 0.0, %v296
  %v298 = vpop.f32.mrb[0].mxu0
  %v299 = vpop.f32.mrb[0].mxu0
  %v300 = vadd.f32 0.0, %v299
  %v301 = vpop.f32.mrb[0].mxu0
  %302 = vmatprep.mubr.bf16.mxu0 %v119
  %303 = vmatmul.mubr.bf16.gmra.mrb[0].mxu0 %v118
  %v304 = vpop.f32.mrb[0].mxu0
  %v305 = vadd.f32 0.0, %v304
  %v306 = vpop.f32.mrb[0].mxu0
  %v307 = vpop.f32.mrb[0].mxu0
  %v308 = vadd.f32 0.0, %v307
  %v309 = vpop.f32.mrb[0].mxu0
  %310 = vmatprep.mubr.bf16.mxu0 %v121
  %311 = vmatmul.mubr.bf16.gmra.mrb[0].mxu0 %v120
  %v312 = vpop.f32.mrb[0].mxu0
  %v313 = vadd.f32 0.0, %v312
  %v314 = vpop.f32.mrb[0].mxu0
  %v315 = vpop.f32.mrb[0].mxu0
  %v316 = vadd.f32 0.0, %v315
  %v317 = vpop.f32.mrb[0].mxu0
  %318 = vmatprep.mubr.bf16.mxu0 %v123
  %319 = vmatmul.mubr.bf16.gmra.mrb[0].mxu0 %v122
  %v320 = vpop.f32.mrb[0].mxu0
  %v321 = vadd.f32 0.0, %v320
  %v322 = vpop.f32.mrb[0].mxu0
  %v323 = vpop.f32.mrb[0].mxu0
  %v324 = vadd.f32 0.0, %v323
  %v325 = vpop.f32.mrb[0].mxu0
  %326 = vmatprep.mubr.bf16.mxu0 %v125
  %327 = vmatmul.mubr.bf16.gmra.mrb[0].mxu0 %v124
  %v328 = vpop.f32.mrb[0].mxu0
  %v329 = vadd.f32 0.0, %v328
  %v330 = vpop.f32.mrb[0].mxu0
  %v331 = vpop.f32.mrb[0].mxu0
  %v332 = vadd.f32 0.0, %v331
  %v333 = vpop.f32.mrb[0].mxu0
  %334 = vdwg.mxu0
  %v335 = vpack.c.bf16 %v276, %v273
  %v336 = vpack.c.bf16 %v284, %v281
  %v337 = vpack.c.bf16 %v292, %v289
  %v338 = vpack.c.bf16 %v300, %v297
  %v339 = vpack.c.bf16 %v308, %v305
  %v340 = vpack.c.bf16 %v316, %v313
  %v341 = vpack.c.bf16 %v324, %v321
  %v342 = vpack.c.bf16 %v332, %v329
  %v351 = vunpack.c.l.b16 %v335
  %v352 = vunpack.c.h.b16 %v335
  %v353 = vunpack.c.l.b16 %v336
  %v354 = vunpack.c.h.b16 %v336
  %v355 = vunpack.c.l.b16 %v337
  %v356 = vunpack.c.h.b16 %v337
  %v357 = vunpack.c.l.b16 %v338
  %v358 = vunpack.c.h.b16 %v338
  %v359 = vunpack.c.l.b16 %v339
  %v360 = vunpack.c.h.b16 %v339
  %v361 = vunpack.c.l.b16 %v340
  %v362 = vunpack.c.h.b16 %v340
  %v363 = vunpack.c.l.b16 %v341
  %v364 = vunpack.c.h.b16 %v341
  %v365 = vunpack.c.l.b16 %v342
  %v366 = vunpack.c.h.b16 %v342
  %v367 = vpack.c.b16 %v351, %v351
  %v368 = vpack.c.b16 %v352, %v352
  %v369 = vpack.c.b16 %v353, %v353
  %v370 = vpack.c.b16 %v354, %v354
  %v371 = vpack.c.b16 %v355, %v355
  %v372 = vpack.c.b16 %v356, %v356
  %v373 = vpack.c.b16 %v357, %v357
  %v374 = vpack.c.b16 %v358, %v358
  %v375 = vpack.c.b16 %v359, %v359
  %v376 = vpack.c.b16 %v360, %v360
  %v377 = vpack.c.b16 %v361, %v361
  %v378 = vpack.c.b16 %v362, %v362
  %v379 = vpack.c.b16 %v363, %v363
  %v380 = vpack.c.b16 %v364, %v364
  %v381 = vpack.c.b16 %v365, %v365
  %v382 = vpack.c.b16 %v366, %v366
  %399 = vst [vmem:[%s2] sm:$0xf] %v367
  %400 = vst [vmem:[%s2 + $0x4] sm:$0xf] %v368
  %401 = vst [vmem:[%s2 + $0x8] sm:$0xf] %v369
  %402 = vst [vmem:[%s2 + $0xc] sm:$0xf] %v370
  %403 = vst [vmem:[%s2 + $0x10] sm:$0xf] %v371
  %404 = vst [vmem:[%s2 + $0x14] sm:$0xf] %v372
  %405 = vst [vmem:[%s2 + $0x18] sm:$0xf] %v373
  %406 = vst [vmem:[%s2 + $0x1c] sm:$0xf] %v374
  %407 = vst [vmem:[%s2 + $0x20] sm:$0xf] %v375
  %408 = vst [vmem:[%s2 + $0x24] sm:$0xf] %v376
  %409 = vst [vmem:[%s2 + $0x28] sm:$0xf] %v377
  %410 = vst [vmem:[%s2 + $0x2c] sm:$0xf] %v378
  %411 = vst [vmem:[%s2 + $0x30] sm:$0xf] %v379
  %412 = vst [vmem:[%s2 + $0x34] sm:$0xf] %v380
  %413 = vst [vmem:[%s2 + $0x38] sm:$0xf] %v381
  %414 = vst [vmem:[%s2 + $0x3c] sm:$0xf] %v382
  %v415 = vadd.f32 %v273, %v276
  %v416 = vadd.f32 %v415, %v281
  %v417 = vadd.f32 %v416, %v284
  %v418 = vadd.f32 %v417, %v289
  %v419 = vadd.f32 %v418, %v292
  %v420 = vadd.f32 %v419, %v297
  %v421 = vadd.f32 %v420, %v300
  %v422 = vadd.f32 %v421, %v305
  %v423 = vadd.f32 %v422, %v308
  %v424 = vadd.f32 %v423, %v313
  %v425 = vadd.f32 %v424, %v316
  %v426 = vadd.f32 %v425, %v321
  %v427 = vadd.f32 %v426, %v324
  %v428 = vadd.f32 %v427, %v329
  %v429 = vadd.f32 %v428, %v332
  %v430 = vrot.slane %v429, 4
  %v431 = vadd.f32 %v429, %v430
  %v432 = vrot.slane %v431, 2
  %v433 = vadd.f32 %v431, %v432
  %v434 = vrot.slane %v433, 1
  %v435 = vadd.f32 %v433, %v434
  %436 = vst [vmem:[%s3] sm:$0x1] %v435
  %v437 = vmul.f32 %v273, %v273
  %v438 = vmul.f32 %v276, %v276
  %v439 = vmul.f32 %v281, %v281
  %v440 = vmul.f32 %v284, %v284
  %v441 = vmul.f32 %v289, %v289
  %v442 = vmul.f32 %v292, %v292
  %v443 = vmul.f32 %v297, %v297
  %v444 = vmul.f32 %v300, %v300
  %v445 = vmul.f32 %v305, %v305
  %v446 = vmul.f32 %v308, %v308
  %v447 = vmul.f32 %v313, %v313
  %v448 = vmul.f32 %v316, %v316
  %v449 = vmul.f32 %v321, %v321
  %v450 = vmul.f32 %v324, %v324
  %v451 = vmul.f32 %v329, %v329
  %v452 = vmul.f32 %v332, %v332
  %v453 = vadd.f32 %v437, %v438
  %v454 = vadd.f32 %v453, %v439
  %v455 = vadd.f32 %v454, %v440
  %v456 = vadd.f32 %v455, %v441
  %v457 = vadd.f32 %v456, %v442
  %v458 = vadd.f32 %v457, %v443
  %v459 = vadd.f32 %v458, %v444
  %v460 = vadd.f32 %v459, %v445
  %v461 = vadd.f32 %v460, %v446
  %v462 = vadd.f32 %v461, %v447
  %v463 = vadd.f32 %v462, %v448
  %v464 = vadd.f32 %v463, %v449
  %v465 = vadd.f32 %v464, %v450
  %v466 = vadd.f32 %v465, %v451
  %v467 = vadd.f32 %v466, %v452
  %v468 = vrot.slane %v467, 4
  %v469 = vadd.f32 %v467, %v468
  %v470 = vrot.slane %v469, 2
  %v471 = vadd.f32 %v469, %v470
  %v472 = vrot.slane %v471, 1
  %v473 = vadd.f32 %v471, %v472
  %474 = vst [vmem:[%s3 + $0x1] sm:$0x1] %v473
  // Predicated region
  $region10: #{discriminator_forward.11} parent=0 // pred_check
    _
  $region11: #{discriminator_forward.11} parent=0 // pred_check_branch
    %476 = sbr.rel (0) target = $region13
  $region12: #{discriminator_forward.11} parent=0 // pred_region
    _
  $region13: #{discriminator_forward.11} parent=0 // pred_fallthru
    _
  // Predicated region
  $region14: #{discriminator_forward.11} parent=0 // pred_check
    _
  $region15: #{discriminator_forward.11} parent=0 // pred_check_branch
    %478 = sbr.rel (0) target = $region17
  $region16: #{discriminator_forward.11} parent=0 // pred_region
    _
  $region17: #{discriminator_forward.11} parent=0 // pred_fallthru
    _
  // Predicated region
  $region18: #{discriminator_forward.11} parent=0 // pred_check
    _
  $region19: #{discriminator_forward.11} parent=0 // pred_check_branch
    %480 = sbr.rel (0) target = $region21
  $region20: #{discriminator_forward.11} parent=0 // pred_region
    _
  $region21: #{discriminator_forward.11} parent=0 // pred_fallthru
    _
  // Predicated region
  $region22: #{discriminator_forward.11} parent=0 // pred_check
    _
  $region23: #{discriminator_forward.11} parent=0 // pred_check_branch
    %482 = sbr.rel (0) target = $region25
  $region24: #{discriminator_forward.11} parent=0 // pred_region
    _
  $region25: #{discriminator_forward.11} parent=0 // pred_fallthru
    _

// kernel: discriminator_forward.14
$region0: #{discriminator_forward.14}
  #allocation0 [shape = 'u32[]', space=smem, size = 0x4, offset = 0x4, fixed_abs, tag = 'smem constant byte address 0x4 - core index']
  #allocation1 [shape = 'u32[144,128]{1,0:T(1,128)}', space=vmem, size = 0x12000, scoped, tag = 'internal scratch']
  %s0 = inlined_call_operand.vmem [shape: bf16[32,128], index: 0, kind: input, shape index: {}]
  %s1 = inlined_call_operand.vmem [shape: f32[1,128], index: 1, kind: input, shape index: {}]
  %s2 = inlined_call_operand.vmem [shape: f32[1,128], index: 2, kind: input, shape index: {}]
  %s3 = inlined_call_operand.vmem [shape: bf16[32,128], index: 3, kind: output, shape index: {}]
  %s4 = sld [smem:[#allocation0]]
  $region22: #{discriminator_forward.14} parent=0
    _
  %s6 = ssub.s32 1, %s4
  %s7 = scalar_select 0, %s6, %s4
  // Predicated region
  $region2: #{discriminator_forward.14} parent=0 // pred_check
    _
  $region3: #{discriminator_forward.14} parent=0 // pred_check_branch
    %9 = sbr.rel (0) target = $region5
  $region4: #{discriminator_forward.14} parent=0 // pred_region
    _
  $region5: #{discriminator_forward.14} parent=0 // pred_fallthru
    _
  // Predicated region
  $region6: #{discriminator_forward.14} parent=0 // pred_check
    _
  $region7: #{discriminator_forward.14} parent=0 // pred_check_branch
    %11 = sbr.rel (0) target = $region9
  $region8: #{discriminator_forward.14} parent=0 // pred_region
    _
  $region9: #{discriminator_forward.14} parent=0 // pred_fallthru
    _
  // Predicated region
  $region10: #{discriminator_forward.14} parent=0 // pred_check
    _
  $region11: #{discriminator_forward.14} parent=0 // pred_check_branch
    %13 = sbr.rel (0) target = $region13
  $region12: #{discriminator_forward.14} parent=0 // pred_region
    _
  $region13: #{discriminator_forward.14} parent=0 // pred_fallthru
    _
  %v14 = vld [vmem:[%s0] sm:$0xf]
  %v15 = vld [vmem:[%s0 + $0x4] sm:$0xf]
  %v16 = vld [vmem:[%s0 + $0x8] sm:$0xf]
  %v17 = vld [vmem:[%s0 + $0xc] sm:$0xf]
  %v18 = vunpack.c.l.bf16 %v14
  %v19 = vunpack.c.l.bf16 %v15
  %v20 = vunpack.c.l.bf16 %v16
  %v21 = vunpack.c.l.bf16 %v17
  %v22 = vld [vmem:[%s1] sm:$0x1]
  %v24 = vlaneseq
  %v25 = vshrl.u32 %v24, 7
  %v26 = vsub.s32 0, %v25
  %v27 = vrot.slane %v22, %v26
  %v29 = vmul.f32 %v18, %v27
  %v30 = vmul.f32 %v19, %v27
  %v31 = vmul.f32 %v20, %v27
  %v32 = vmul.f32 %v21, %v27
  %v33 = vld [vmem:[%s2] sm:$0x1]
  %v35 = vlaneseq
  %v36 = vshrl.u32 %v35, 7
  %v37 = vsub.s32 0, %v36
  %v38 = vrot.slane %v33, %v37
  %v40 = vadd.f32 %v29, %v38
  %v41 = vadd.f32 %v30, %v38
  %v42 = vadd.f32 %v31, %v38
  %v43 = vadd.f32 %v32, %v38
  %vm44 = vcmp.gt.f32.partialorder %v40, 0.0
  %vm45 = vcmp.gt.f32.partialorder %v41, 0.0
  %vm46 = vcmp.gt.f32.partialorder %v42, 0.0
  %vm47 = vcmp.gt.f32.partialorder %v43, 0.0
  %v48 = vmul.f32 %v40, 0.2
  %v49 = vmul.f32 %v41, 0.2
  %v50 = vmul.f32 %v42, 0.2
  %v51 = vmul.f32 %v43, 0.2
  %v52 = vsel %vm44, %v40, %v48
  %v53 = vsel %vm45, %v41, %v49
  %v54 = vsel %vm46, %v42, %v50
  %v55 = vsel %vm47, %v43, %v51
  %v56 = vpack.c.bf16 %v53, %v52
  %v57 = vpack.c.bf16 %v55, %v54
  %v60 = vunpack.c.l.b16 %v56
  %v61 = vunpack.c.h.b16 %v56
  %v62 = vunpack.c.l.b16 %v57
  %v63 = vunpack.c.h.b16 %v57
  %v64 = vpack.c.b16 %v60, %v60
  %v65 = vpack.c.b16 %v61, %v61
  %v66 = vpack.c.b16 %v62, %v62
  %v67 = vpack.c.b16 %v63, %v63
  %72 = vst [vmem:[%s3] sm:$0xf] %v64
  %73 = vst [vmem:[%s3 + $0x4] sm:$0xf] %v65
  %74 = vst [vmem:[%s3 + $0x8] sm:$0xf] %v66
  %75 = vst [vmem:[%s3 + $0xc] sm:$0xf] %v67
  // Predicated region
  $region14: #{discriminator_forward.14} parent=0 // pred_check
    _
  $region15: #{discriminator_forward.14} parent=0 // pred_check_branch
    %77 = sbr.rel (0) target = $region17
  $region16: #{discriminator_forward.14} parent=0 // pred_region
    _
  $region17: #{discriminator_forward.14} parent=0 // pred_fallthru
    _
  // Predicated region
  $region18: #{discriminator_forward.14} parent=0 // pred_check
    _
  $region19: #{discriminator_forward.14} parent=0 // pred_check_branch
    %79 = sbr.rel (0) target = $region21
  $region20: #{discriminator_forward.14} parent=0 // pred_region
    _
  $region21: #{discriminator_forward.14} parent=0 // pred_fallthru
    _

// kernel: discriminator_forward.13
$region0: #{discriminator_forward.13}
  #allocation0 [shape = 'u32[]', space=smem, size = 0x4, offset = 0x4, fixed_abs, tag = 'smem constant byte address 0x4 - core index']
  #allocation1 [shape = 'u32[144,128]{1,0:T(1,128)}', space=vmem, size = 0x12000, scoped, tag = 'internal scratch']
  %s0 = inlined_call_operand.vmem [shape: bf16[32,512], index: 0, kind: input, shape index: {}]
  %s1 = inlined_call_operand.vmem [shape: bf16[512,128], index: 1, kind: input, shape index: {}]
  %s2 = inlined_call_operand.vmem [shape: bf16[32,128], index: 2, kind: output, shape index: {0}]
  %s3 = inlined_call_operand.vmem [shape: f32[1,2,128], index: 3, kind: output, shape index: {1}]
  %4 = xla_tuple %s2, %s3
  %s5 = sld [smem:[#allocation0]]
  $region26: #{discriminator_forward.13} parent=0
    _
  %s7 = ssub.s32 1, %s5
  %s8 = scalar_select 0, %s7, %s5
  // Predicated region
  $region2: #{discriminator_forward.13} parent=0 // pred_check
    _
  $region3: #{discriminator_forward.13} parent=0 // pred_check_branch
    %10 = sbr.rel (0) target = $region5
  $region4: #{discriminator_forward.13} parent=0 // pred_region
    _
  $region5: #{discriminator_forward.13} parent=0 // pred_fallthru
    _
  // Predicated region
  $region6: #{discriminator_forward.13} parent=0 // pred_check
    _
  $region7: #{discriminator_forward.13} parent=0 // pred_check_branch
    %12 = sbr.rel (0) target = $region9
  $region8: #{discriminator_forward.13} parent=0 // pred_region
    _
  $region9: #{discriminator_forward.13} parent=0 // pred_fallthru
    _
  %v14 = vld [vmem:[%s0] sm:$0xff]
  %v15 = vld [vmem:[%s0 + $0x8] sm:$0xff]
  %v16 = vld [vmem:[%s0 + $0x10] sm:$0xff]
  %v17 = vld [vmem:[%s0 + $0x18] sm:$0xff]
  %v18 = vld [vmem:[%s0 + $0x20] sm:$0xff]
  %v19 = vld [vmem:[%s0 + $0x28] sm:$0xff]
  %v20 = vld [vmem:[%s0 + $0x30] sm:$0xff]
  %v21 = vld [vmem:[%s0 + $0x38] sm:$0xff]
  %v22 = vld [vmem:[%s1] sm:$0xf]
  %v23 = vld [vmem:[%s1 + $0x4] sm:$0xf]
  %v24 = vld [vmem:[%s1 + $0x8] sm:$0xf]
  %v25 = vld [vmem:[%s1 + $0xc] sm:$0xf]
  %v26 = vld [vmem:[%s1 + $0x10] sm:$0xf]
  %v27 = vld [vmem:[%s1 + $0x14] sm:$0xf]
  %v28 = vld [vmem:[%s1 + $0x18] sm:$0xf]
  %v29 = vld [vmem:[%s1 + $0x1c] sm:$0xf]
  %v30 = vld [vmem:[%s1 + $0x20] sm:$0xf]
  %v31 = vld [vmem:[%s1 + $0x24] sm:$0xf]
  %v32 = vld [vmem:[%s1 + $0x28] sm:$0xf]
  %v33 = vld [vmem:[%s1 + $0x2c] sm:$0xf]
  %v34 = vld [vmem:[%s1 + $0x30] sm:$0xf]
  %v35 = vld [vmem:[%s1 + $0x34] sm:$0xf]
  %v36 = vld [vmem:[%s1 + $0x38] sm:$0xf]
  %v37 = vld [vmem:[%s1 + $0x3c] sm:$0xf]
  %v38 = vld [vmem:[%s1 + $0x40] sm:$0xf]
  %v39 = vld [vmem:[%s1 + $0x44] sm:$0xf]
  %v40 = vld [vmem:[%s1 + $0x48] sm:$0xf]
  %v41 = vld [vmem:[%s1 + $0x4c] sm:$0xf]
  %v42 = vld [vmem:[%s1 + $0x50] sm:$0xf]
  %v43 = vld [vmem:[%s1 + $0x54] sm:$0xf]
  %v44 = vld [vmem:[%s1 + $0x58] sm:$0xf]
  %v45 = vld [vmem:[%s1 + $0x5c] sm:$0xf]
  %v46 = vld [vmem:[%s1 + $0x60] sm:$0xf]
  %v47 = vld [vmem:[%s1 + $0x64] sm:$0xf]
  %v48 = vld [vmem:[%s1 + $0x68] sm:$0xf]
  %v49 = vld [vmem:[%s1 + $0x6c] sm:$0xf]
  %v50 = vld [vmem:[%s1 + $0x70] sm:$0xf]
  %v51 = vld [vmem:[%s1 + $0x74] sm:$0xf]
  %v52 = vld [vmem:[%s1 + $0x78] sm:$0xf]
  %v53 = vld [vmem:[%s1 + $0x7c] sm:$0xf]
  %v54 = vld [vmem:[%s1 + $0x80] sm:$0xf]
  %v55 = vld [vmem:[%s1 + $0x84] sm:$0xf]
  %v56 = vld [vmem:[%s1 + $0x88] sm:$0xf]
  %v57 = vld [vmem:[%s1 + $0x8c] sm:$0xf]
  %v58 = vld [vmem:[%s1 + $0x90] sm:$0xf]
  %v59 = vld [vmem:[%s1 + $0x94] sm:$0xf]
  %v60 = vld [vmem:[%s1 + $0x98] sm:$0xf]
  %v61 = vld [vmem:[%s1 + $0x9c] sm:$0xf]
  %v62 = vld [vmem:[%s1 + $0xa0] sm:$0xf]
  %v63 = vld [vmem:[%s1 + $0xa4] sm:$0xf]
  %v64 = vld [vmem:[%s1 + $0xa8] sm:$0xf]
  %v65 = vld [vmem:[%s1 + $0xac] sm:$0xf]
  %v66 = vld [vmem:[%s1 + $0xb0] sm:$0xf]
  %v67 = vld [vmem:[%s1 + $0xb4] sm:$0xf]
  %v68 = vld [vmem:[%s1 + $0xb8] sm:$0xf]
  %v69 = vld [vmem:[%s1 + $0xbc] sm:$0xf]
  %v70 = vld [vmem:[%s1 + $0xc0] sm:$0xf]
  %v71 = vld [vmem:[%s1 + $0xc4] sm:$0xf]
  %v72 = vld [vmem:[%s1 + $0xc8] sm:$0xf]
  %v73 = vld [vmem:[%s1 + $0xcc] sm:$0xf]
  %v74 = vld [vmem:[%s1 + $0xd0] sm:$0xf]
  %v75 = vld [vmem:[%s1 + $0xd4] sm:$0xf]
  %v76 = vld [vmem:[%s1 + $0xd8] sm:$0xf]
  %v77 = vld [vmem:[%s1 + $0xdc] sm:$0xf]
  %v78 = vld [vmem:[%s1 + $0xe0] sm:$0xf]
  %v79 = vld [vmem:[%s1 + $0xe4] sm:$0xf]
  %v80 = vld [vmem:[%s1 + $0xe8] sm:$0xf]
  %v81 = vld [vmem:[%s1 + $0xec] sm:$0xf]
  %v82 = vld [vmem:[%s1 + $0xf0] sm:$0xf]
  %v83 = vld [vmem:[%s1 + $0xf4] sm:$0xf]
  %v84 = vld [vmem:[%s1 + $0xf8] sm:$0xf]
  %v85 = vld [vmem:[%s1 + $0xfc] sm:$0xf]
  %v94 = vunpack.c.l.b16 %v14
  %v95 = vunpack.c.h.b16 %v14
  %v96 = vunpack.c.l.b16 %v15
  %v97 = vunpack.c.h.b16 %v15
  %v98 = vunpack.c.l.b16 %v16
  %v99 = vunpack.c.h.b16 %v16
  %v100 = vunpack.c.l.b16 %v17
  %v101 = vunpack.c.h.b16 %v17
  %v102 = vunpack.c.l.b16 %v18
  %v103 = vunpack.c.h.b16 %v18
  %v104 = vunpack.c.l.b16 %v19
  %v105 = vunpack.c.h.b16 %v19
  %v106 = vunpack.c.l.b16 %v20
  %v107 = vunpack.c.h.b16 %v20
  %v108 = vunpack.c.l.b16 %v21
  %v109 = vunpack.c.h.b16 %v21
  %v110 = vpack.c.b16 %v98, %v94
  %v111 = vpack.c.b16 %v99, %v95
  %v112 = vpack.c.b16 %v100, %v96
  %v113 = vpack.c.b16 %v101, %v97
  %v114 = vpack.c.b16 %v106, %v102
  %v115 = vpack.c.b16 %v107, %v103
  %v116 = vpack.c.b16 %v108, %v104
  %v117 = vpack.c.b16 %v109, %v105
  %v190 = vunpack.c.l.b16 %v22
  %v191 = vunpack.c.l.b16 %v23
  %v192 = vunpack.c.l.b16 %v24
  %v193 = vunpack.c.l.b16 %v25
  %v194 = vunpack.c.l.b16 %v26
  %v195 = vunpack.c.l.b16 %v27
  %v196 = vunpack.c.l.b16 %v28
  %v197 = vunpack.c.l.b16 %v29
  %v198 = vunpack.c.l.b16 %v30
  %v199 = vunpack.c.l.b16 %v31
  %v200 = vunpack.c.l.b16 %v32
  %v201 = vunpack.c.l.b16 %v33
  %v202 = vunpack.c.l.b16 %v34
  %v203 = vunpack.c.l.b16 %v35
  %v204 = vunpack.c.l.b16 %v36
  %v205 = vunpack.c.l.b16 %v37
  %v206 = vunpack.c.l.b16 %v38
  %v207 = vunpack.c.l.b16 %v39
  %v208 = vunpack.c.l.b16 %v40
  %v209 = vunpack.c.l.b16 %v41
  %v210 = vunpack.c.l.b16 %v42
  %v211 = vunpack.c.l.b16 %v43
  %v212 = vunpack.c.l.b16 %v44
  %v213 = vunpack.c.l.b16 %v45
  %v214 = vunpack.c.l.b16 %v46
  %v215 = vunpack.c.l.b16 %v47
  %v216 = vunpack.c.l.b16 %v48
  %v217 = vunpack.c.l.b16 %v49
  %v218 = vunpack.c.l.b16 %v50
  %v219 = vunpack.c.l.b16 %v51
  %v220 = vunpack.c.l.b16 %v52
  %v221 = vunpack.c.l.b16 %v53
  %v222 = vunpack.c.l.b16 %v54
  %v223 = vunpack.c.l.b16 %v55
  %v224 = vunpack.c.l.b16 %v56
  %v225 = vunpack.c.l.b16 %v57
  %v226 = vunpack.c.l.b16 %v58
  %v227 = vunpack.c.l.b16 %v59
  %v228 = vunpack.c.l.b16 %v60
  %v229 = vunpack.c.l.b16 %v61
  %v230 = vunpack.c.l.b16 %v62
  %v231 = vunpack.c.l.b16 %v63
  %v232 = vunpack.c.l.b16 %v64
  %v233 = vunpack.c.l.b16 %v65
  %v234 = vunpack.c.l.b16 %v66
  %v235 = vunpack.c.l.b16 %v67
  %v236 = vunpack.c.l.b16 %v68
  %v237 = vunpack.c.l.b16 %v69
  %v238 = vunpack.c.l.b16 %v70
  %v239 = vunpack.c.l.b16 %v71
  %v240 = vunpack.c.l.b16 %v72
  %v241 = vunpack.c.l.b16 %v73
  %v242 = vunpack.c.l.b16 %v74
  %v243 = vunpack.c.l.b16 %v75
  %v244 = vunpack.c.l.b16 %v76
  %v245 = vunpack.c.l.b16 %v77
  %v246 = vunpack.c.l.b16 %v78
  %v247 = vunpack.c.l.b16 %v79
  %v248 = vunpack.c.l.b16 %v80
  %v249 = vunpack.c.l.b16 %v81
  %v250 = vunpack.c.l.b16 %v82
  %v251 = vunpack.c.l.b16 %v83
  %v252 = vunpack.c.l.b16 %v84
  %v253 = vunpack.c.l.b16 %v85
  %v254 = vpack.c.b16 %v191, %v190
  %v255 = vpack.c.b16 %v193, %v192
  %v256 = vpack.c.b16 %v195, %v194
  %v257 = vpack.c.b16 %v197, %v196
  %v258 = vpack.c.b16 %v199, %v198
  %v259 = vpack.c.b16 %v201, %v200
  %v260 = vpack.c.b16 %v203, %v202
  %v261 = vpack.c.b16 %v205, %v204
  %v262 = vpack.c.b16 %v207, %v206
  %v263 = vpack.c.b16 %v209, %v208
  %v264 = vpack.c.b16 %v211, %v210
  %v265 = vpack.c.b16 %v213, %v212
  %v266 = vpack.c.b16 %v215, %v214
  %v267 = vpack.c.b16 %v217, %v216
  %v268 = vpack.c.b16 %v219, %v218
  %v269 = vpack.c.b16 %v221, %v220
  %v270 = vpack.c.b16 %v223, %v222
  %v271 = vpack.c.b16 %v225, %v224
  %v272 = vpack.c.b16 %v227, %v226
  %v273 = vpack.c.b16 %v229, %v228
  %v274 = vpack.c.b16 %v231, %v230
  %v275 = vpack.c.b16 %v233, %v232
  %v276 = vpack.c.b16 %v235, %v234
  %v277 = vpack.c.b16 %v237, %v236
  %v278 = vpack.c.b16 %v239, %v238
  %v279 = vpack.c.b16 %v241, %v240
  %v280 = vpack.c.b16 %v243, %v242
  %v281 = vpack.c.b16 %v245, %v244
  %v282 = vpack.c.b16 %v247, %v246
  %v283 = vpack.c.b16 %v249, %v248
  %v284 = vpack.c.b16 %v251, %v250
  %v285 = vpack.c.b16 %v253, %v252
  %318 = vmatprep.subr.bf16.mxu0 0
  %319 = vmatpush1.bf16.msra.mxu0 %v254
  %320 = vmatprep.subr.bf16.mxu0 0
  %321 = vmatpush1.bf16.msra.mxu0 %v255
  %322 = vmatprep.subr.bf16.mxu0 0
  %323 = vmatpush1.bf16.msra.mxu0 %v256
  %324 = vmatprep.subr.bf16.mxu0 0
  %325 = vmatpush1.bf16.msra.mxu0 %v257
  %326 = vmatprep.subr.bf16.mxu0 0
  %327 = vmatpush1.bf16.msra.mxu0 %v258
  %328 = vmatprep.subr.bf16.mxu0 0
  %329 = vmatpush1.bf16.msra.mxu0 %v259
  %330 = vmatprep.subr.bf16.mxu0 0
  %331 = vmatpush1.bf16.msra.mxu0 %v260
  %332 = vmatprep.subr.bf16.mxu0 0
  %333 = vmatpush1.bf16.msra.mxu0 %v261
  %334 = vmatprep.subr.bf16.mxu0 0
  %335 = vmatpush1.bf16.msra.mxu0 %v262
  %336 = vmatprep.subr.bf16.mxu0 0
  %337 = vmatpush1.bf16.msra.mxu0 %v263
  %338 = vmatprep.subr.bf16.mxu0 0
  %339 = vmatpush1.bf16.msra.mxu0 %v264
  %340 = vmatprep.subr.bf16.mxu0 0
  %341 = vmatpush1.bf16.msra.mxu0 %v265
  %342 = vmatprep.subr.bf16.mxu0 0
  %343 = vmatpush1.bf16.msra.mxu0 %v266
  %344 = vmatprep.subr.bf16.mxu0 0
  %345 = vmatpush1.bf16.msra.mxu0 %v267
  %346 = vmatprep.subr.bf16.mxu0 0
  %347 = vmatpush1.bf16.msra.mxu0 %v268
  %348 = vmatprep.subr.bf16.mxu0 0
  %349 = vmatpush1.bf16.msra.mxu0 %v269
  %350 = vmatprep.mubr.bf16.mxu0 %v111
  %351 = vmatmul.mubr.bf16.gmra.mrb[0].mxu0 %v110
  %v352 = vpop.f32.mrb[0].mxu0
  %v353 = vadd.f32 0.0, %v352
  %v354 = vpop.f32.mrb[0].mxu0
  %v355 = vpop.f32.mrb[0].mxu0
  %v356 = vadd.f32 0.0, %v355
  %v357 = vpop.f32.mrb[0].mxu0
  %358 = vmatprep.mubr.bf16.mxu0 %v115
  %359 = vmatmul.mubr.bf16.gmra.mrb[0].mxu0 %v114
  %v360 = vpop.f32.mrb[0].mxu0
  %v361 = vadd.f32 0.0, %v360
  %v362 = vpop.f32.mrb[0].mxu0
  %v363 = vpop.f32.mrb[0].mxu0
  %v364 = vadd.f32 0.0, %v363
  %v365 = vpop.f32.mrb[0].mxu0
  %366 = vdwg.mxu0
  %367 = vmatprep.subr.bf16.mxu0 0
  %368 = vmatpush1.bf16.msra.mxu0 %v270
  %369 = vmatprep.subr.bf16.mxu0 0
  %370 = vmatpush1.bf16.msra.mxu0 %v271
  %371 = vmatprep.subr.bf16.mxu0 0
  %372 = vmatpush1.bf16.msra.mxu0 %v272
  %373 = vmatprep.subr.bf16.mxu0 0
  %374 = vmatpush1.bf16.msra.mxu0 %v273
  %375 = vmatprep.subr.bf16.mxu0 0
  %376 = vmatpush1.bf16.msra.mxu0 %v274
  %377 = vmatprep.subr.bf16.mxu0 0
  %378 = vmatpush1.bf16.msra.mxu0 %v275
  %379 = vmatprep.subr.bf16.mxu0 0
  %380 = vmatpush1.bf16.msra.mxu0 %v276
  %381 = vmatprep.subr.bf16.mxu0 0
  %382 = vmatpush1.bf16.msra.mxu0 %v277
  %383 = vmatprep.subr.bf16.mxu0 0
  %384 = vmatpush1.bf16.msra.mxu0 %v278
  %385 = vmatprep.subr.bf16.mxu0 0
  %386 = vmatpush1.bf16.msra.mxu0 %v279
  %387 = vmatprep.subr.bf16.mxu0 0
  %388 = vmatpush1.bf16.msra.mxu0 %v280
  %389 = vmatprep.subr.bf16.mxu0 0
  %390 = vmatpush1.bf16.msra.mxu0 %v281
  %391 = vmatprep.subr.bf16.mxu0 0
  %392 = vmatpush1.bf16.msra.mxu0 %v282
  %393 = vmatprep.subr.bf16.mxu0 0
  %394 = vmatpush1.bf16.msra.mxu0 %v283
  %395 = vmatprep.subr.bf16.mxu0 0
  %396 = vmatpush1.bf16.msra.mxu0 %v284
  %397 = vmatprep.subr.bf16.mxu0 0
  %398 = vmatpush1.bf16.msra.mxu0 %v285
  %399 = vmatprep.mubr.bf16.mxu0 %v113
  %400 = vmatmul.mubr.bf16.gmra.mrb[0].mxu0 %v112
  %v401 = vpop.f32.mrb[0].mxu0
  %v402 = vadd.f32 %v353, %v401
  %v403 = vpop.f32.mrb[0].mxu0
  %v404 = vpop.f32.mrb[0].mxu0
  %v405 = vadd.f32 %v356, %v404
  %v406 = vpop.f32.mrb[0].mxu0
  %407 = vmatprep.mubr.bf16.mxu0 %v117
  %408 = vmatmul.mubr.bf16.gmra.mrb[0].mxu0 %v116
  %v409 = vpop.f32.mrb[0].mxu0
  %v410 = vadd.f32 %v361, %v409
  %v411 = vpop.f32.mrb[0].mxu0
  %v412 = vpop.f32.mrb[0].mxu0
  %v413 = vadd.f32 %v364, %v412
  %v414 = vpop.f32.mrb[0].mxu0
  %415 = vdwg.mxu0
  %v416 = vpack.c.bf16 %v405, %v402
  %v417 = vpack.c.bf16 %v413, %v410
  %v420 = vunpack.c.l.b16 %v416
  %v421 = vunpack.c.h.b16 %v416
  %v422 = vunpack.c.l.b16 %v417
  %v423 = vunpack.c.h.b16 %v417
  %v424 = vpack.c.b16 %v420, %v420
  %v425 = vpack.c.b16 %v421, %v421
  %v426 = vpack.c.b16 %v422, %v422
  %v427 = vpack.c.b16 %v423, %v423
  %432 = vst [vmem:[%s2] sm:$0xf] %v424
  %433 = vst [vmem:[%s2 + $0x4] sm:$0xf] %v425
  %434 = vst [vmem:[%s2 + $0x8] sm:$0xf] %v426
  %435 = vst [vmem:[%s2 + $0xc] sm:$0xf] %v427
  %v436 = vadd.f32 %v402, %v405
  %v437 = vadd.f32 %v436, %v410
  %v438 = vadd.f32 %v437, %v413
  %v439 = vrot.slane %v438, 4
  %v440 = vadd.f32 %v438, %v439
  %v441 = vrot.slane %v440, 2
  %v442 = vadd.f32 %v440, %v441
  %v443 = vrot.slane %v442, 1
  %v444 = vadd.f32 %v442, %v443
  %445 = vst [vmem:[%s3] sm:$0x1] %v444
  %v446 = vmul.f32 %v402, %v402
  %v447 = vmul.f32 %v405, %v405
  %v448 = vmul.f32 %v410, %v410
  %v449 = vmul.f32 %v413, %v413
  %v450 = vadd.f32 %v446, %v447
  %v451 = vadd.f32 %v450, %v448
  %v452 = vadd.f32 %v451, %v449
  %v453 = vrot.slane %v452, 4
  %v454 = vadd.f32 %v452, %v453
  %v455 = vrot.slane %v454, 2
  %v456 = vadd.f32 %v454, %v455
  %v457 = vrot.slane %v456, 1
  %v458 = vadd.f32 %v456, %v457
  %459 = vst [vmem:[%s3 + $0x1] sm:$0x1] %v458
  // Predicated region
  $region10: #{discriminator_forward.13} parent=0 // pred_check
    _
  $region11: #{discriminator_forward.13} parent=0 // pred_check_branch
    %461 = sbr.rel (0) target = $region13
  $region12: #{discriminator_forward.13} parent=0 // pred_region
    _
  $region13: #{discriminator_forward.13} parent=0 // pred_fallthru
    _
  // Predicated region
  $region14: #{discriminator_forward.13} parent=0 // pred_check
    _
  $region15: #{discriminator_forward.13} parent=0 // pred_check_branch
    %463 = sbr.rel (0) target = $region17
  $region16: #{discriminator_forward.13} parent=0 // pred_region
    _
  $region17: #{discriminator_forward.13} parent=0 // pred_fallthru
    _
  // Predicated region
  $region18: #{discriminator_forward.13} parent=0 // pred_check
    _
  $region19: #{discriminator_forward.13} parent=0 // pred_check_branch
    %465 = sbr.rel (0) target = $region21
  $region20: #{discriminator_forward.13} parent=0 // pred_region
    _
  $region21: #{discriminator_forward.13} parent=0 // pred_fallthru
    _
  // Predicated region
  $region22: #{discriminator_forward.13} parent=0 // pred_check
    _
  $region23: #{discriminator_forward.13} parent=0 // pred_check_branch
    %467 = sbr.rel (0) target = $region25
  $region24: #{discriminator_forward.13} parent=0 // pred_region
    _
  $region25: #{discriminator_forward.13} parent=0 // pred_fallthru
    _

// kernel: discriminator_forward.15
$region0: #{discriminator_forward.15}
  #allocation0 [shape = 'u32[]', space=smem, size = 0x4, offset = 0x4, fixed_abs, tag = 'smem constant byte address 0x4 - core index']
  #allocation1 [shape = 'u32[144,128]{1,0:T(1,128)}', space=vmem, size = 0x12000, scoped, tag = 'internal scratch']
  %s0 = inlined_call_operand.vmem [shape: bf16[2,1024], index: 0, kind: input, shape index: {}]
  %s1 = inlined_call_operand.vmem [shape: bf16[1024,128], index: 1, kind: input, shape index: {}]
  %s2 = inlined_call_operand.vmem [shape: f32[2,128], index: 2, kind: output, shape index: {}]
  %s3 = sld [smem:[#allocation0]]
  $region18: #{discriminator_forward.15} parent=0
    _
  %s5 = ssub.s32 1, %s3
  %s6 = scalar_select 0, %s5, %s3
  // Predicated region
  $region2: #{discriminator_forward.15} parent=0 // pred_check
    _
  $region3: #{discriminator_forward.15} parent=0 // pred_check_branch
    %8 = sbr.rel (0) target = $region5
  $region4: #{discriminator_forward.15} parent=0 // pred_region
    _
  $region5: #{discriminator_forward.15} parent=0 // pred_fallthru
    _
  // Predicated region
  $region6: #{discriminator_forward.15} parent=0 // pred_check
    _
  $region7: #{discriminator_forward.15} parent=0 // pred_check_branch
    %10 = sbr.rel (0) target = $region9
  $region8: #{discriminator_forward.15} parent=0 // pred_region
    _
  $region9: #{discriminator_forward.15} parent=0 // pred_fallthru
    _
  %v12 = vld [vmem:[%s0] sm:$0xff]
  %v13 = vld [vmem:[%s1] sm:$0xf]
  %v14 = vld [vmem:[%s1 + $0x4] sm:$0xf]
  %v15 = vld [vmem:[%s1 + $0x8] sm:$0xf]
  %v16 = vld [vmem:[%s1 + $0xc] sm:$0xf]
  %v17 = vld [vmem:[%s1 + $0x10] sm:$0xf]
  %v18 = vld [vmem:[%s1 + $0x14] sm:$0xf]
  %v19 = vld [vmem:[%s1 + $0x18] sm:$0xf]
  %v20 = vld [vmem:[%s1 + $0x1c] sm:$0xf]
  %v21 = vld [vmem:[%s1 + $0x20] sm:$0xf]
  %v22 = vld [vmem:[%s1 + $0x24] sm:$0xf]
  %v23 = vld [vmem:[%s1 + $0x28] sm:$0xf]
  %v24 = vld [vmem:[%s1 + $0x2c] sm:$0xf]
  %v25 = vld [vmem:[%s1 + $0x30] sm:$0xf]
  %v26 = vld [vmem:[%s1 + $0x34] sm:$0xf]
  %v27 = vld [vmem:[%s1 + $0x38] sm:$0xf]
  %v28 = vld [vmem:[%s1 + $0x3c] sm:$0xf]
  %v29 = vld [vmem:[%s1 + $0x40] sm:$0xf]
  %v30 = vld [vmem:[%s1 + $0x44] sm:$0xf]
  %v31 = vld [vmem:[%s1 + $0x48] sm:$0xf]
  %v32 = vld [vmem:[%s1 + $0x4c] sm:$0xf]
  %v33 = vld [vmem:[%s1 + $0x50] sm:$0xf]
  %v34 = vld [vmem:[%s1 + $0x54] sm:$0xf]
  %v35 = vld [vmem:[%s1 + $0x58] sm:$0xf]
  %v36 = vld [vmem:[%s1 + $0x5c] sm:$0xf]
  %v37 = vld [vmem:[%s1 + $0x60] sm:$0xf]
  %v38 = vld [vmem:[%s1 + $0x64] sm:$0xf]
  %v39 = vld [vmem:[%s1 + $0x68] sm:$0xf]
  %v40 = vld [vmem:[%s1 + $0x6c] sm:$0xf]
  %v41 = vld [vmem:[%s1 + $0x70] sm:$0xf]
  %v42 = vld [vmem:[%s1 + $0x74] sm:$0xf]
  %v43 = vld [vmem:[%s1 + $0x78] sm:$0xf]
  %v44 = vld [vmem:[%s1 + $0x7c] sm:$0xf]
  %v45 = vld [vmem:[%s1 + $0x80] sm:$0xf]
  %v46 = vld [vmem:[%s1 + $0x84] sm:$0xf]
  %v47 = vld [vmem:[%s1 + $0x88] sm:$0xf]
  %v48 = vld [vmem:[%s1 + $0x8c] sm:$0xf]
  %v49 = vld [vmem:[%s1 + $0x90] sm:$0xf]
  %v50 = vld [vmem:[%s1 + $0x94] sm:$0xf]
  %v51 = vld [vmem:[%s1 + $0x98] sm:$0xf]
  %v52 = vld [vmem:[%s1 + $0x9c] sm:$0xf]
  %v53 = vld [vmem:[%s1 + $0xa0] sm:$0xf]
  %v54 = vld [vmem:[%s1 + $0xa4] sm:$0xf]
  %v55 = vld [vmem:[%s1 + $0xa8] sm:$0xf]
  %v56 = vld [vmem:[%s1 + $0xac] sm:$0xf]
  %v57 = vld [vmem:[%s1 + $0xb0] sm:$0xf]
  %v58 = vld [vmem:[%s1 + $0xb4] sm:$0xf]
  %v59 = vld [vmem:[%s1 + $0xb8] sm:$0xf]
  %v60 = vld [vmem:[%s1 + $0xbc] sm:$0xf]
  %v61 = vld [vmem:[%s1 + $0xc0] sm:$0xf]
  %v62 = vld [vmem:[%s1 + $0xc4] sm:$0xf]
  %v63 = vld [vmem:[%s1 + $0xc8] sm:$0xf]
  %v64 = vld [vmem:[%s1 + $0xcc] sm:$0xf]
  %v65 = vld [vmem:[%s1 + $0xd0] sm:$0xf]
  %v66 = vld [vmem:[%s1 + $0xd4] sm:$0xf]
  %v67 = vld [vmem:[%s1 + $0xd8] sm:$0xf]
  %v68 = vld [vmem:[%s1 + $0xdc] sm:$0xf]
  %v69 = vld [vmem:[%s1 + $0xe0] sm:$0xf]
  %v70 = vld [vmem:[%s1 + $0xe4] sm:$0xf]
  %v71 = vld [vmem:[%s1 + $0xe8] sm:$0xf]
  %v72 = vld [vmem:[%s1 + $0xec] sm:$0xf]
  %v73 = vld [vmem:[%s1 + $0xf0] sm:$0xf]
  %v74 = vld [vmem:[%s1 + $0xf4] sm:$0xf]
  %v75 = vld [vmem:[%s1 + $0xf8] sm:$0xf]
  %v76 = vld [vmem:[%s1 + $0xfc] sm:$0xf]
  %v77 = vld [vmem:[%s1 + $0x100] sm:$0xf]
  %v78 = vld [vmem:[%s1 + $0x104] sm:$0xf]
  %v79 = vld [vmem:[%s1 + $0x108] sm:$0xf]
  %v80 = vld [vmem:[%s1 + $0x10c] sm:$0xf]
  %v81 = vld [vmem:[%s1 + $0x110] sm:$0xf]
  %v82 = vld [vmem:[%s1 + $0x114] sm:$0xf]
  %v83 = vld [vmem:[%s1 + $0x118] sm:$0xf]
  %v84 = vld [vmem:[%s1 + $0x11c] sm:$0xf]
  %v85 = vld [vmem:[%s1 + $0x120] sm:$0xf]
  %v86 = vld [vmem:[%s1 + $0x124] sm:$0xf]
  %v87 = vld [vmem:[%s1 + $0x128] sm:$0xf]
  %v88 = vld [vmem:[%s1 + $0x12c] sm:$0xf]
  %v89 = vld [vmem:[%s1 + $0x130] sm:$0xf]
  %v90 = vld [vmem:[%s1 + $0x134] sm:$0xf]
  %v91 = vld [vmem:[%s1 + $0x138] sm:$0xf]
  %v92 = vld [vmem:[%s1 + $0x13c] sm:$0xf]
  %v93 = vld [vmem:[%s1 + $0x140] sm:$0xf]
  %v94 = vld [vmem:[%s1 + $0x144] sm:$0xf]
  %v95 = vld [vmem:[%s1 + $0x148] sm:$0xf]
  %v96 = vld [vmem:[%s1 + $0x14c] sm:$0xf]
  %v97 = vld [vmem:[%s1 + $0x150] sm:$0xf]
  %v98 = vld [vmem:[%s1 + $0x154] sm:$0xf]
  %v99 = vld [vmem:[%s1 + $0x158] sm:$0xf]
  %v100 = vld [vmem:[%s1 + $0x15c] sm:$0xf]
  %v101 = vld [vmem:[%s1 + $0x160] sm:$0xf]
  %v102 = vld [vmem:[%s1 + $0x164] sm:$0xf]
  %v103 = vld [vmem:[%s1 + $0x168] sm:$0xf]
  %v104 = vld [vmem:[%s1 + $0x16c] sm:$0xf]
  %v105 = vld [vmem:[%s1 + $0x170] sm:$0xf]
  %v106 = vld [vmem:[%s1 + $0x174] sm:$0xf]
  %v107 = vld [vmem:[%s1 + $0x178] sm:$0xf]
  %v108 = vld [vmem:[%s1 + $0x17c] sm:$0xf]
  %v109 = vld [vmem:[%s1 + $0x180] sm:$0xf]
  %v110 = vld [vmem:[%s1 + $0x184] sm:$0xf]
  %v111 = vld [vmem:[%s1 + $0x188] sm:$0xf]
  %v112 = vld [vmem:[%s1 + $0x18c] sm:$0xf]
  %v113 = vld [vmem:[%s1 + $0x190] sm:$0xf]
  %v114 = vld [vmem:[%s1 + $0x194] sm:$0xf]
  %v115 = vld [vmem:[%s1 + $0x198] sm:$0xf]
  %v116 = vld [vmem:[%s1 + $0x19c] sm:$0xf]
  %v117 = vld [vmem:[%s1 + $0x1a0] sm:$0xf]
  %v118 = vld [vmem:[%s1 + $0x1a4] sm:$0xf]
  %v119 = vld [vmem:[%s1 + $0x1a8] sm:$0xf]
  %v120 = vld [vmem:[%s1 + $0x1ac] sm:$0xf]
  %v121 = vld [vmem:[%s1 + $0x1b0] sm:$0xf]
  %v122 = vld [vmem:[%s1 + $0x1b4] sm:$0xf]
  %v123 = vld [vmem:[%s1 + $0x1b8] sm:$0xf]
  %v124 = vld [vmem:[%s1 + $0x1bc] sm:$0xf]
  %v125 = vld [vmem:[%s1 + $0x1c0] sm:$0xf]
  %v126 = vld [vmem:[%s1 + $0x1c4] sm:$0xf]
  %v127 = vld [vmem:[%s1 + $0x1c8] sm:$0xf]
  %v128 = vld [vmem:[%s1 + $0x1cc] sm:$0xf]
  %v129 = vld [vmem:[%s1 + $0x1d0] sm:$0xf]
  %v130 = vld [vmem:[%s1 + $0x1d4] sm:$0xf]
  %v131 = vld [vmem:[%s1 + $0x1d8] sm:$0xf]
  %v132 = vld [vmem:[%s1 + $0x1dc] sm:$0xf]
  %v133 = vld [vmem:[%s1 + $0x1e0] sm:$0xf]
  %v134 = vld [vmem:[%s1 + $0x1e4] sm:$0xf]
  %v135 = vld [vmem:[%s1 + $0x1e8] sm:$0xf]
  %v136 = vld [vmem:[%s1 + $0x1ec] sm:$0xf]
  %v137 = vld [vmem:[%s1 + $0x1f0] sm:$0xf]
  %v138 = vld [vmem:[%s1 + $0x1f4] sm:$0xf]
  %v139 = vld [vmem:[%s1 + $0x1f8] sm:$0xf]
  %v140 = vld [vmem:[%s1 + $0x1fc] sm:$0xf]
  %v142 = vcombine.high %v12, %v12
  %v144 = vunpack.c.l.s4 1966171168
  %v145 = vunpack.c.0.s8 %v144
  %v146 = vlaneseq
  %v147 = vshrl.u32 %v146, 7
  %v148 = vsub.s32 %v145, %v147
  %v149 = vrot.slane %v12, %v148
  %v151 = vunpack.c.l.s4 1966171168
  %v152 = vunpack.c.0.s8 %v151
  %v153 = vlaneseq
  %v154 = vshrl.u32 %v153, 7
  %v155 = vsub.s32 %v152, %v154
  %v156 = vrot.slane %v142, %v155
  %v157 = vcombine.high %v149, %v149
  %v158 = vcombine.high %v156, %v156
  %v160 = vunpack.c.l.s4 1966171168
  %v161 = vunpack.c.0.s8 %v160
  %v162 = vlaneseq
  %v163 = vshrl.u32 %v162, 7
  %v164 = vsub.s32 %v161, %v163
  %v165 = vrot.slane %v149, %v164
  %v167 = vunpack.c.l.s4 1966171168
  %v168 = vunpack.c.0.s8 %v167
  %v169 = vlaneseq
  %v170 = vshrl.u32 %v169, 7
  %v171 = vsub.s32 %v168, %v170
  %v172 = vrot.slane %v156, %v171
  %v174 = vunpack.c.l.s4 1966171168
  %v175 = vunpack.c.0.s8 %v174
  %v176 = vlaneseq
  %v177 = vshrl.u32 %v176, 7
  %v178 = vsub.s32 %v175, %v177
  %v179 = vrot.slane %v157, %v178
  %v181 = vunpack.c.l.s4 1966171168
  %v182 = vunpack.c.0.s8 %v181
  %v183 = vlaneseq
  %v184 = vshrl.u32 %v183, 7
  %v185 = vsub.s32 %v182, %v184
  %v186 = vrot.slane %v158, %v185
  %v187 = vcombine.high %v165, %v165
  %v188 = vcombine.high %v172, %v172
  %v189 = vcombine.high %v179, %v179
  %v190 = vcombine.high %v186, %v186
  %v327 = vunpack.c.l.b16 %v13
  %v328 = vunpack.c.l.b16 %v14
  %v329 = vunpack.c.l.b16 %v15
  %v330 = vunpack.c.l.b16 %v16
  %v331 = vunpack.c.l.b16 %v17
  %v332 = vunpack.c.l.b16 %v18
  %v333 = vunpack.c.l.b16 %v19
  %v334 = vunpack.c.l.b16 %v20
  %v335 = vunpack.c.l.b16 %v21
  %v336 = vunpack.c.l.b16 %v22
  %v337 = vunpack.c.l.b16 %v23
  %v338 = vunpack.c.l.b16 %v24
  %v339 = vunpack.c.l.b16 %v25
  %v340 = vunpack.c.l.b16 %v26
  %v341 = vunpack.c.l.b16 %v27
  %v342 = vunpack.c.l.b16 %v28
  %v343 = vunpack.c.l.b16 %v29
  %v344 = vunpack.c.l.b16 %v30
  %v345 = vunpack.c.l.b16 %v31
  %v346 = vunpack.c.l.b16 %v32
  %v347 = vunpack.c.l.b16 %v33
  %v348 = vunpack.c.l.b16 %v34
  %v349 = vunpack.c.l.b16 %v35
  %v350 = vunpack.c.l.b16 %v36
  %v351 = vunpack.c.l.b16 %v37
  %v352 = vunpack.c.l.b16 %v38
  %v353 = vunpack.c.l.b16 %v39
  %v354 = vunpack.c.l.b16 %v40
  %v355 = vunpack.c.l.b16 %v41
  %v356 = vunpack.c.l.b16 %v42
  %v357 = vunpack.c.l.b16 %v43
  %v358 = vunpack.c.l.b16 %v44
  %v359 = vunpack.c.l.b16 %v45
  %v360 = vunpack.c.l.b16 %v46
  %v361 = vunpack.c.l.b16 %v47
  %v362 = vunpack.c.l.b16 %v48
  %v363 = vunpack.c.l.b16 %v49
  %v364 = vunpack.c.l.b16 %v50
  %v365 = vunpack.c.l.b16 %v51
  %v366 = vunpack.c.l.b16 %v52
  %v367 = vunpack.c.l.b16 %v53
  %v368 = vunpack.c.l.b16 %v54
  %v369 = vunpack.c.l.b16 %v55
  %v370 = vunpack.c.l.b16 %v56
  %v371 = vunpack.c.l.b16 %v57
  %v372 = vunpack.c.l.b16 %v58
  %v373 = vunpack.c.l.b16 %v59
  %v374 = vunpack.c.l.b16 %v60
  %v375 = vunpack.c.l.b16 %v61
  %v376 = vunpack.c.l.b16 %v62
  %v377 = vunpack.c.l.b16 %v63
  %v378 = vunpack.c.l.b16 %v64
  %v379 = vunpack.c.l.b16 %v65
  %v380 = vunpack.c.l.b16 %v66
  %v381 = vunpack.c.l.b16 %v67
  %v382 = vunpack.c.l.b16 %v68
  %v383 = vunpack.c.l.b16 %v69
  %v384 = vunpack.c.l.b16 %v70
  %v385 = vunpack.c.l.b16 %v71
  %v386 = vunpack.c.l.b16 %v72
  %v387 = vunpack.c.l.b16 %v73
  %v388 = vunpack.c.l.b16 %v74
  %v389 = vunpack.c.l.b16 %v75
  %v390 = vunpack.c.l.b16 %v76
  %v391 = vunpack.c.l.b16 %v77
  %v392 = vunpack.c.l.b16 %v78
  %v393 = vunpack.c.l.b16 %v79
  %v394 = vunpack.c.l.b16 %v80
  %v395 = vunpack.c.l.b16 %v81
  %v396 = vunpack.c.l.b16 %v82
  %v397 = vunpack.c.l.b16 %v83
  %v398 = vunpack.c.l.b16 %v84
  %v399 = vunpack.c.l.b16 %v85
  %v400 = vunpack.c.l.b16 %v86
  %v401 = vunpack.c.l.b16 %v87
  %v402 = vunpack.c.l.b16 %v88
  %v403 = vunpack.c.l.b16 %v89
  %v404 = vunpack.c.l.b16 %v90
  %v405 = vunpack.c.l.b16 %v91
  %v406 = vunpack.c.l.b16 %v92
  %v407 = vunpack.c.l.b16 %v93
  %v408 = vunpack.c.l.b16 %v94
  %v409 = vunpack.c.l.b16 %v95
  %v410 = vunpack.c.l.b16 %v96
  %v411 = vunpack.c.l.b16 %v97
  %v412 = vunpack.c.l.b16 %v98
  %v413 = vunpack.c.l.b16 %v99
  %v414 = vunpack.c.l.b16 %v100
  %v415 = vunpack.c.l.b16 %v101
  %v416 = vunpack.c.l.b16 %v102
  %v417 = vunpack.c.l.b16 %v103
  %v418 = vunpack.c.l.b16 %v104
  %v419 = vunpack.c.l.b16 %v105
  %v420 = vunpack.c.l.b16 %v106
  %v421 = vunpack.c.l.b16 %v107
  %v422 = vunpack.c.l.b16 %v108
  %v423 = vunpack.c.l.b16 %v109
  %v424 = vunpack.c.l.b16 %v110
  %v425 = vunpack.c.l.b16 %v111
  %v426 = vunpack.c.l.b16 %v112
  %v427 = vunpack.c.l.b16 %v113
  %v428 = vunpack.c.l.b16 %v114
  %v429 = vunpack.c.l.b16 %v115
  %v430 = vunpack.c.l.b16 %v116
  %v431 = vunpack.c.l.b16 %v117
  %v432 = vunpack.c.l.b16 %v118
  %v433 = vunpack.c.l.b16 %v119
  %v434 = vunpack.c.l.b16 %v120
  %v435 = vunpack.c.l.b16 %v121
  %v436 = vunpack.c.l.b16 %v122
  %v437 = vunpack.c.l.b16 %v123
  %v438 = vunpack.c.l.b16 %v124
  %v439 = vunpack.c.l.b16 %v125
  %v440 = vunpack.c.l.b16 %v126
  %v441 = vunpack.c.l.b16 %v127
  %v442 = vunpack.c.l.b16 %v128
  %v443 = vunpack.c.l.b16 %v129
  %v444 = vunpack.c.l.b16 %v130
  %v445 = vunpack.c.l.b16 %v131
  %v446 = vunpack.c.l.b16 %v132
  %v447 = vunpack.c.l.b16 %v133
  %v448 = vunpack.c.l.b16 %v134
  %v449 = vunpack.c.l.b16 %v135
  %v450 = vunpack.c.l.b16 %v136
  %v451 = vunpack.c.l.b16 %v137
  %v452 = vunpack.c.l.b16 %v138
  %v453 = vunpack.c.l.b16 %v139
  %v454 = vunpack.c.l.b16 %v140
  %v455 = vpack.c.b16 %v328, %v327
  %v456 = vpack.c.b16 %v330, %v329
  %v457 = vpack.c.b16 %v332, %v331
  %v458 = vpack.c.b16 %v334, %v333
  %v459 = vpack.c.b16 %v336, %v335
  %v460 = vpack.c.b16 %v338, %v337
  %v461 = vpack.c.b16 %v340, %v339
  %v462 = vpack.c.b16 %v342, %v341
  %v463 = vpack.c.b16 %v344, %v343
  %v464 = vpack.c.b16 %v346, %v345
  %v465 = vpack.c.b16 %v348, %v347
  %v466 = vpack.c.b16 %v350, %v349
  %v467 = vpack.c.b16 %v352, %v351
  %v468 = vpack.c.b16 %v354, %v353
  %v469 = vpack.c.b16 %v356, %v355
  %v470 = vpack.c.b16 %v358, %v357
  %v471 = vpack.c.b16 %v360, %v359
  %v472 = vpack.c.b16 %v362, %v361
  %v473 = vpack.c.b16 %v364, %v363
  %v474 = vpack.c.b16 %v366, %v365
  %v475 = vpack.c.b16 %v368, %v367
  %v476 = vpack.c.b16 %v370, %v369
  %v477 = vpack.c.b16 %v372, %v371
  %v478 = vpack.c.b16 %v374, %v373
  %v479 = vpack.c.b16 %v376, %v375
  %v480 = vpack.c.b16 %v378, %v377
  %v481 = vpack.c.b16 %v380, %v379
  %v482 = vpack.c.b16 %v382, %v381
  %v483 = vpack.c.b16 %v384, %v383
  %v484 = vpack.c.b16 %v386, %v385
  %v485 = vpack.c.b16 %v388, %v387
  %v486 = vpack.c.b16 %v390, %v389
  %v487 = vpack.c.b16 %v392, %v391
  %v488 = vpack.c.b16 %v394, %v393
  %v489 = vpack.c.b16 %v396, %v395
  %v490 = vpack.c.b16 %v398, %v397
  %v491 = vpack.c.b16 %v400, %v399
  %v492 = vpack.c.b16 %v402, %v401
  %v493 = vpack.c.b16 %v404, %v403
  %v494 = vpack.c.b16 %v406, %v405
  %v495 = vpack.c.b16 %v408, %v407
  %v496 = vpack.c.b16 %v410, %v409
  %v497 = vpack.c.b16 %v412, %v411
  %v498 = vpack.c.b16 %v414, %v413
  %v499 = vpack.c.b16 %v416, %v415
  %v500 = vpack.c.b16 %v418, %v417
  %v501 = vpack.c.b16 %v420, %v419
  %v502 = vpack.c.b16 %v422, %v421
  %v503 = vpack.c.b16 %v424, %v423
  %v504 = vpack.c.b16 %v426, %v425
  %v505 = vpack.c.b16 %v428, %v427
  %v506 = vpack.c.b16 %v430, %v429
  %v507 = vpack.c.b16 %v432, %v431
  %v508 = vpack.c.b16 %v434, %v433
  %v509 = vpack.c.b16 %v436, %v435
  %v510 = vpack.c.b16 %v438, %v437
  %v511 = vpack.c.b16 %v440, %v439
  %v512 = vpack.c.b16 %v442, %v441
  %v513 = vpack.c.b16 %v444, %v443
  %v514 = vpack.c.b16 %v446, %v445
  %v515 = vpack.c.b16 %v448, %v447
  %v516 = vpack.c.b16 %v450, %v449
  %v517 = vpack.c.b16 %v452, %v451
  %v518 = vpack.c.b16 %v454, %v453
  %583 = vmatprep.subr.bf16.mxu0 0
  %584 = vmatpush1.bf16.msra.mxu0 %v455
  %585 = vmatprep.subr.bf16.mxu0 0
  %586 = vmatpush1.bf16.msra.mxu0 %v456
  %587 = vmatprep.subr.bf16.mxu0 0
  %588 = vmatpush1.bf16.msra.mxu0 %v457
  %589 = vmatprep.subr.bf16.mxu0 0
  %590 = vmatpush1.bf16.msra.mxu0 %v458
  %591 = vmatprep.subr.bf16.mxu0 0
  %592 = vmatpush1.bf16.msra.mxu0 %v459
  %593 = vmatprep.subr.bf16.mxu0 0
  %594 = vmatpush1.bf16.msra.mxu0 %v460
  %595 = vmatprep.subr.bf16.mxu0 0
  %596 = vmatpush1.bf16.msra.mxu0 %v461
  %597 = vmatprep.subr.bf16.mxu0 0
  %598 = vmatpush1.bf16.msra.mxu0 %v462
  %599 = vmatprep.subr.bf16.mxu0 0
  %600 = vmatpush1.bf16.msra.mxu0 %v463
  %601 = vmatprep.subr.bf16.mxu0 0
  %602 = vmatpush1.bf16.msra.mxu0 %v464
  %603 = vmatprep.subr.bf16.mxu0 0
  %604 = vmatpush1.bf16.msra.mxu0 %v465
  %605 = vmatprep.subr.bf16.mxu0 0
  %606 = vmatpush1.bf16.msra.mxu0 %v466
  %607 = vmatprep.subr.bf16.mxu0 0
  %608 = vmatpush1.bf16.msra.mxu0 %v467
  %609 = vmatprep.subr.bf16.mxu0 0
  %610 = vmatpush1.bf16.msra.mxu0 %v468
  %611 = vmatprep.subr.bf16.mxu0 0
  %612 = vmatpush1.bf16.msra.mxu0 %v469
  %613 = vmatprep.subr.bf16.mxu0 0
  %614 = vmatpush1.bf16.msra.mxu0 %v470
  %615 = vmatprep.mubr.bf16.mxu0 %v179
  %616 = vmatmul.mubr.bf16.gmra.mrb[0].mxu0 %v165
  %v617 = vpop.f32.mrb[0].mxu0
  %v618 = vadd.f32 0.0, %v617
  %v619 = vpop.f32.mrb[0].mxu0
  %v620 = vpop.f32.mrb[0].mxu0
  %v621 = vpop.f32.mrb[0].mxu0
  %622 = vdwg.mxu0
  %623 = vmatprep.subr.bf16.mxu0 0
  %624 = vmatpush1.bf16.msra.mxu0 %v471
  %625 = vmatprep.subr.bf16.mxu0 0
  %626 = vmatpush1.bf16.msra.mxu0 %v472
  %627 = vmatprep.subr.bf16.mxu0 0
  %628 = vmatpush1.bf16.msra.mxu0 %v473
  %629 = vmatprep.subr.bf16.mxu0 0
  %630 = vmatpush1.bf16.msra.mxu0 %v474
  %631 = vmatprep.subr.bf16.mxu0 0
  %632 = vmatpush1.bf16.msra.mxu0 %v475
  %633 = vmatprep.subr.bf16.mxu0 0
  %634 = vmatpush1.bf16.msra.mxu0 %v476
  %635 = vmatprep.subr.bf16.mxu0 0
  %636 = vmatpush1.bf16.msra.mxu0 %v477
  %637 = vmatprep.subr.bf16.mxu0 0
  %638 = vmatpush1.bf16.msra.mxu0 %v478
  %639 = vmatprep.subr.bf16.mxu0 0
  %640 = vmatpush1.bf16.msra.mxu0 %v479
  %641 = vmatprep.subr.bf16.mxu0 0
  %642 = vmatpush1.bf16.msra.mxu0 %v480
  %643 = vmatprep.subr.bf16.mxu0 0
  %644 = vmatpush1.bf16.msra.mxu0 %v481
  %645 = vmatprep.subr.bf16.mxu0 0
  %646 = vmatpush1.bf16.msra.mxu0 %v482
  %647 = vmatprep.subr.bf16.mxu0 0
  %648 = vmatpush1.bf16.msra.mxu0 %v483
  %649 = vmatprep.subr.bf16.mxu0 0
  %650 = vmatpush1.bf16.msra.mxu0 %v484
  %651 = vmatprep.subr.bf16.mxu0 0
  %652 = vmatpush1.bf16.msra.mxu0 %v485
  %653 = vmatprep.subr.bf16.mxu0 0
  %654 = vmatpush1.bf16.msra.mxu0 %v486
  %655 = vmatprep.mubr.bf16.mxu0 %v189
  %656 = vmatmul.mubr.bf16.gmra.mrb[0].mxu0 %v187
  %v657 = vpop.f32.mrb[0].mxu0
  %v658 = vadd.f32 %v618, %v657
  %v659 = vpop.f32.mrb[0].mxu0
  %v660 = vpop.f32.mrb[0].mxu0
  %v661 = vpop.f32.mrb[0].mxu0
  %662 = vdwg.mxu0
  %663 = vmatprep.subr.bf16.mxu0 0
  %664 = vmatpush1.bf16.msra.mxu0 %v487
  %665 = vmatprep.subr.bf16.mxu0 0
  %666 = vmatpush1.bf16.msra.mxu0 %v488
  %667 = vmatprep.subr.bf16.mxu0 0
  %668 = vmatpush1.bf16.msra.mxu0 %v489
  %669 = vmatprep.subr.bf16.mxu0 0
  %670 = vmatpush1.bf16.msra.mxu0 %v490
  %671 = vmatprep.subr.bf16.mxu0 0
  %672 = vmatpush1.bf16.msra.mxu0 %v491
  %673 = vmatprep.subr.bf16.mxu0 0
  %674 = vmatpush1.bf16.msra.mxu0 %v492
  %675 = vmatprep.subr.bf16.mxu0 0
  %676 = vmatpush1.bf16.msra.mxu0 %v493
  %677 = vmatprep.subr.bf16.mxu0 0
  %678 = vmatpush1.bf16.msra.mxu0 %v494
  %679 = vmatprep.subr.bf16.mxu0 0
  %680 = vmatpush1.bf16.msra.mxu0 %v495
  %681 = vmatprep.subr.bf16.mxu0 0
  %682 = vmatpush1.bf16.msra.mxu0 %v496
  %683 = vmatprep.subr.bf16.mxu0 0
  %684 = vmatpush1.bf16.msra.mxu0 %v497
  %685 = vmatprep.subr.bf16.mxu0 0
  %686 = vmatpush1.bf16.msra.mxu0 %v498
  %687 = vmatprep.subr.bf16.mxu0 0
  %688 = vmatpush1.bf16.msra.mxu0 %v499
  %689 = vmatprep.subr.bf16.mxu0 0
  %690 = vmatpush1.bf16.msra.mxu0 %v500
  %691 = vmatprep.subr.bf16.mxu0 0
  %692 = vmatpush1.bf16.msra.mxu0 %v501
  %693 = vmatprep.subr.bf16.mxu0 0
  %694 = vmatpush1.bf16.msra.mxu0 %v502
  %695 = vmatprep.mubr.bf16.mxu0 %v186
  %696 = vmatmul.mubr.bf16.gmra.mrb[0].mxu0 %v172
  %v697 = vpop.f32.mrb[0].mxu0
  %v698 = vadd.f32 %v658, %v697
  %v699 = vpop.f32.mrb[0].mxu0
  %v700 = vpop.f32.mrb[0].mxu0
  %v701 = vpop.f32.mrb[0].mxu0
  %702 = vdwg.mxu0
  %703 = vmatprep.subr.bf16.mxu0 0
  %704 = vmatpush1.bf16.msra.mxu0 %v503
  %705 = vmatprep.subr.bf16.mxu0 0
  %706 = vmatpush1.bf16.msra.mxu0 %v504
  %707 = vmatprep.subr.bf16.mxu0 0
  %708 = vmatpush1.bf16.msra.mxu0 %v505
  %709 = vmatprep.subr.bf16.mxu0 0
  %710 = vmatpush1.bf16.msra.mxu0 %v506
  %711 = vmatprep.subr.bf16.mxu0 0
  %712 = vmatpush1.bf16.msra.mxu0 %v507
  %713 = vmatprep.subr.bf16.mxu0 0
  %714 = vmatpush1.bf16.msra.mxu0 %v508
  %715 = vmatprep.subr.bf16.mxu0 0
  %716 = vmatpush1.bf16.msra.mxu0 %v509
  %717 = vmatprep.subr.bf16.mxu0 0
  %718 = vmatpush1.bf16.msra.mxu0 %v510
  %719 = vmatprep.subr.bf16.mxu0 0
  %720 = vmatpush1.bf16.msra.mxu0 %v511
  %721 = vmatprep.subr.bf16.mxu0 0
  %722 = vmatpush1.bf16.msra.mxu0 %v512
  %723 = vmatprep.subr.bf16.mxu0 0
  %724 = vmatpush1.bf16.msra.mxu0 %v513
  %725 = vmatprep.subr.bf16.mxu0 0
  %726 = vmatpush1.bf16.msra.mxu0 %v514
  %727 = vmatprep.subr.bf16.mxu0 0
  %728 = vmatpush1.bf16.msra.mxu0 %v515
  %729 = vmatprep.subr.bf16.mxu0 0
  %730 = vmatpush1.bf16.msra.mxu0 %v516
  %731 = vmatprep.subr.bf16.mxu0 0
  %732 = vmatpush1.bf16.msra.mxu0 %v517
  %733 = vmatprep.subr.bf16.mxu0 0
  %734 = vmatpush1.bf16.msra.mxu0 %v518
  %735 = vmatprep.mubr.bf16.mxu0 %v190
  %736 = vmatmul.mubr.bf16.gmra.mrb[0].mxu0 %v188
  %v737 = vpop.f32.mrb[0].mxu0
  %v738 = vadd.f32 %v698, %v737
  %v739 = vpop.f32.mrb[0].mxu0
  %v740 = vpop.f32.mrb[0].mxu0
  %v741 = vpop.f32.mrb[0].mxu0
  %742 = vdwg.mxu0
  %v743 = vxor.u32 %v738, 2147483648
  %v744 = vmul.f32 %v743, 1.442695
  %v745 = vpow.pop %v744
  %v746 = vadd.f32 %v745, 1.0
  %v747 = vrcp.pop %v746
  %v748 = vmul.f32 1.0, %v747
  %749 = vst [vmem:[%s2] sm:$0x3] %v748
  // Predicated region
  $region10: #{discriminator_forward.15} parent=0 // pred_check
    _
  $region11: #{discriminator_forward.15} parent=0 // pred_check_branch
    %751 = sbr.rel (0) target = $region13
  $region12: #{discriminator_forward.15} parent=0 // pred_region
    _
  $region13: #{discriminator_forward.15} parent=0 // pred_fallthru
    _
  // Predicated region
  $region14: #{discriminator_forward.15} parent=0 // pred_check
    _
  $region15: #{discriminator_forward.15} parent=0 // pred_check_branch
    %753 = sbr.rel (0) target = $region17
  $region16: #{discriminator_forward.15} parent=0 // pred_region
    _
  $region17: #{discriminator_forward.15} parent=0 // pred_fallthru
    _

</llo_original>
